<compile_context>
chip_gen: v7x
topology: tpu7x:2x2x1
jax: 0.10.0
libtpu: 0.0.40
codegen_flags: <defaults>
</compile_context>

<pallas_src>
import math

import jax
import jax.numpy as jnp
from jax.experimental import pallas as pl
from jax.experimental.pallas import tpu as pltpu

# ---------------------------------------------------------------------------
# Small configs (structure preserved, sizes scaled down; D chosen lane-dense).
# ---------------------------------------------------------------------------
VOCAB = 64
MAX_LENGTH = 8      # stands in for max_length=77
BATCH = 2

# CLIP text transformer (openai/clip-vit-large-patch14, scaled down)
CLIP_D = 128
CLIP_H = 4
CLIP_DH = CLIP_D // CLIP_H
CLIP_FF = 4 * CLIP_D
CLIP_LAYERS = 2
CLIP_EPS = 1e-5
CLIP_VEC_ROWS = 8                        # ln1w, ln1b, ln2w, ln2b, bo, b2, bqkv, b1
CLIP_VEC_W = max(3 * CLIP_D, CLIP_FF)    # widest packed vector row

# T5 v1.1 encoder (google/t5-v1_1-xl, scaled down)
T5_D = 128
T5_H = 4
T5_DH = T5_D // T5_H
T5_FF = 2 * T5_D
T5_LAYERS = 2
T5_BUCKETS = 32
T5_MAXDIST = 128
T5_EPS = 1e-6


def _nbytes(a):
    return math.prod(a.shape) * a.dtype.itemsize


# ---------------------------------------------------------------------------
# Shared in-kernel multi-head attention with ONE fused output projection.
# ---------------------------------------------------------------------------
def _fused_multi_head_attention(qkv, bias_per_head, wo_bf16, B, L, H, dh, scale):
    """qkv: (B*L, 3*H*dh) f32; bias_per_head: list of H (L,L) f32 additive biases.

    Per-head scores / softmax stay in f32 (tiny L x L slabs); the H per-head
    contexts are concatenated once and pushed through a SINGLE
    (B*L, H*dh) @ (H*dh, D) bf16 matmul (K = H*dh) instead of H tiny K=dh dots.
    """
    hdh = H * dh
    ctxs = []
    for hd in range(H):
        q = qkv[:, hd * dh:(hd + 1) * dh].reshape(B, L, dh)
        k = qkv[:, hdh + hd * dh: hdh + (hd + 1) * dh].reshape(B, L, dh)
        v = qkv[:, 2 * hdh + hd * dh: 2 * hdh + (hd + 1) * dh].reshape(B, L, dh)
        qs = q if scale is None else q * scale
        s = jnp.einsum('bqd,bkd->bqk', qs, k,
                       preferred_element_type=jnp.float32)
        s = s + bias_per_head[hd][None]
        m = jnp.max(s, axis=-1, keepdims=True)
        p = jnp.exp(s - m)
        inv = pl.reciprocal(jnp.sum(p, axis=-1, keepdims=True), approx=True)
        ctxs.append(jnp.einsum('bqk,bkd->bqd', p * inv, v,
                               preferred_element_type=jnp.float32).reshape(B * L, dh))
    ctx = jnp.concatenate(ctxs, axis=-1)                       # (B*L, H*dh)
    return jnp.dot(ctx.astype(jnp.bfloat16), wo_bf16,
                   preferred_element_type=jnp.float32)         # (B*L, D)


# ---------------------------------------------------------------------------
# Fused T5 encoder kernel: grid=(num_layers,), residual stream = output block.
# ---------------------------------------------------------------------------
def _t5_encoder_kernel(x_emb_ref, bias_ref, vec_ref, w_ref, wo_ff_ref, lnf_ref,
                       o_ref):
    layer = pl.program_id(0)
    B, L, H, dh, D, F = BATCH, MAX_LENGTH, T5_H, T5_DH, T5_D, T5_FF

    @pl.when(layer == 0)
    def _():
        o_ref[...] = x_emb_ref[...]

    x = o_ref[...]                                   # (B*L, D) resident residual stream
    w = w_ref[0]                                     # (D, [3D | D | 2F]) bf16 packed slab
    ln1 = vec_ref[0, 0:1, :]                         # (1, D)
    ln2 = vec_ref[0, 1:2, :]

    def rmsnorm(v, g):                               # T5 LayerNorm: no mean, no bias
        return v * jax.lax.rsqrt(jnp.mean(v * v, axis=-1, keepdims=True) + T5_EPS) * g

    # ---- self-attention (T5: no 1/sqrt(d) scaling; additive relative bias) ----
    h = rmsnorm(x, ln1)
    qkv = jnp.dot(h.astype(jnp.bfloat16), w[:, :3 * D],
                  preferred_element_type=jnp.float32)            # fused Wq|Wk|Wv
    bias_per_head = [bias_ref[hd] for hd in range(H)]            # (L, L) each
    attn = _fused_multi_head_attention(qkv, bias_per_head, w[:, 3 * D:4 * D],
                                       B, L, H, dh, scale=None)
    x = x + attn

    # ---- gated-GELU FFN (wi_0 | wi_1 fused into one matmul, split in lanes) ----
    h = rmsnorm(x, ln2)
    hg = jnp.dot(h.astype(jnp.bfloat16), w[:, 4 * D:4 * D + 2 * F],
                 preferred_element_type=jnp.float32)             # (B*L, 2F)
    h0 = hg[:, :F]
    h1 = hg[:, F:]
    c = math.sqrt(2.0 / math.pi)
    g = 0.5 * h0 * (1.0 + jnp.tanh(c * (h0 + 0.044715 * h0 * h0 * h0)))  # gelu_new
    x = x + jnp.dot((g * h1).astype(jnp.bfloat16), wo_ff_ref[0],
                    preferred_element_type=jnp.float32)
    o_ref[...] = x

    @pl.when(layer == pl.num_programs(0) - 1)
    def _():
        o_ref[...] = rmsnorm(x, lnf_ref[...])        # final T5 RMSNorm


# ---------------------------------------------------------------------------
# Fused CLIP text encoder kernel (pre-LN, causal mask, quick-GELU).
# ---------------------------------------------------------------------------
def _clip_encoder_kernel(x_emb_ref, mask_ref, vec_ref, w_ref, w2_ref, lnf_ref,
                         o_ref):
    layer = pl.program_id(0)
    B, L, H, dh, D, F = BATCH, MAX_LENGTH, CLIP_H, CLIP_DH, CLIP_D, CLIP_FF

    @pl.when(layer == 0)
    def _():
        o_ref[...] = x_emb_ref[...]

    x = o_ref[...]                                   # (B*L, D) resident residual stream
    w = w_ref[0]                                     # (D, [3D | D | F]) bf16 packed slab
    vec = vec_ref[0]                                 # (8, VEC_W) f32 packed vectors
    ln1w, ln1b = vec[0:1, :D], vec[1:2, :D]
    ln2w, ln2b = vec[2:3, :D], vec[3:4, :D]
    bo, b2 = vec[4:5, :D], vec[5:6, :D]
    bqkv = vec[6:7, :3 * D]
    b1 = vec[7:8, :F]

    def layernorm(v, g, b):
        mu = jnp.mean(v, axis=-1, keepdims=True)
        vc = v - mu
        var = jnp.mean(vc * vc, axis=-1, keepdims=True)
        return vc * jax.lax.rsqrt(var + CLIP_EPS) * g + b

    # ---- causal self-attention (scale = 1/sqrt(d_head)) ----
    h = layernorm(x, ln1w, ln1b)
    qkv = jnp.dot(h.astype(jnp.bfloat16), w[:, :3 * D],
                  preferred_element_type=jnp.float32) + bqkv
    causal = mask_ref[...]                           # (L, L), built once on host
    attn = _fused_multi_head_attention(qkv, [causal] * H, w[:, 3 * D:4 * D],
                                       B, L, H, dh, scale=1.0 / math.sqrt(dh))
    x = x + attn + bo

    # ---- MLP (quick-GELU) ----
    h = layernorm(x, ln2w, ln2b)
    h1 = jnp.dot(h.astype(jnp.bfloat16), w[:, 4 * D:4 * D + F],
                 preferred_element_type=jnp.float32) + b1
    gq = h1 * (1.0 / (1.0 + jnp.exp(-1.702 * h1)))   # quick_gelu
    x = x + jnp.dot(gq.astype(jnp.bfloat16), w2_ref[0],
                    preferred_element_type=jnp.float32) + b2
    o_ref[...] = x

    @pl.when(layer == pl.num_programs(0) - 1)
    def _():
        o_ref[...] = layernorm(x, lnf_ref[0:1, :], lnf_ref[1:2, :])  # layer='last'


# ---------------------------------------------------------------------------
# BlockSpec / VMEM helpers
# ---------------------------------------------------------------------------
def _full(shape):
    n = len(shape)
    return pl.BlockSpec(shape, lambda l: (0,) * n)


def _per_layer(shape):
    n = len(shape)
    return pl.BlockSpec((1,) + shape, lambda l: (l,) + (0,) * n)


def _vmem_limit(per_layer_bytes, resident_bytes):
    # per-layer weight tiles are double-buffered by the pipeline; residents are
    # counted x2 conservatively; generous headroom for compiler-internal scratch.
    return int(2 * per_layer_bytes + 2 * resident_bytes + (8 << 20))


# ---------------------------------------------------------------------------
# T5 glue: embedding lookup + relative position bias (plain JAX), fused kernel
# ---------------------------------------------------------------------------
def _t5_relative_position_bucket(rel_pos, num_buckets=T5_BUCKETS, max_distance=T5_MAXDIST):
    num_buckets = num_buckets // 2                   # bidirectional (encoder)
    rel_buckets = (rel_pos > 0).astype(jnp.int32) * num_buckets
    rel_pos = jnp.abs(rel_pos)
    max_exact = num_buckets // 2
    is_small = rel_pos < max_exact
    rel_f = jnp.maximum(rel_pos, 1).astype(jnp.float32)
    rel_if_large = max_exact + (
        jnp.log(rel_f / max_exact) / math.log(max_distance / max_exact)
        * (num_buckets - max_exact)).astype(jnp.int32)
    rel_if_large = jnp.minimum(rel_if_large, num_buckets - 1)
    return rel_buckets + jnp.where(is_small, rel_pos, rel_if_large)


def compute_t5_position_bias(rel_table, L):
    ctx = jnp.arange(L, dtype=jnp.int32)[:, None]
    mem = jnp.arange(L, dtype=jnp.int32)[None, :]
    buckets = _t5_relative_position_bucket(mem - ctx)          # (L, L)
    values = rel_table[buckets]                                # (L, L, H)
    return jnp.transpose(values, (2, 0, 1)).astype(jnp.float32)  # (H, L, L)


def t5_encoder_forward(params, tokens):
    B, L = tokens.shape
    D, H, F, NL = T5_D, T5_H, T5_FF, T5_LAYERS
    x = jnp.take(params["embed"], tokens, axis=0).astype(jnp.float32).reshape(B * L, D)
    bias = compute_t5_position_bias(params["rel_bias"], L)     # shared by all layers

    per_layer = (_nbytes(params["w"]) + _nbytes(params["wo_ff"])
                 + _nbytes(params["vecs"])) // NL
    resident = 2 * _nbytes(x) + _nbytes(bias) + _nbytes(params["lnf"])

    out = pl.pallas_call(
        _t5_encoder_kernel,
        out_shape=jax.ShapeDtypeStruct((B * L, D), jnp.float32),
        grid=(NL,),
        in_specs=[
            _full((B * L, D)),                      # token embeddings (aliased to out)
            _full((H, L, L)),                       # relative position bias (resident)
            _per_layer((2, D)),                     # packed {ln1, ln2} scales
            _per_layer((D, 3 * D + D + 2 * F)),     # packed {Wq|Wk|Wv, Wo, wi_0|wi_1} bf16
            _per_layer((F, D)),                     # FFN output proj, bf16
            _full((1, D)),                          # final RMSNorm scale
        ],
        out_specs=_full((B * L, D)),
        input_output_aliases={0: 0},
        compiler_params=pltpu.CompilerParams(
            dimension_semantics=("arbitrary",),
            vmem_limit_bytes=_vmem_limit(per_layer, resident)),
    )(x, bias, params["vecs"], params["w"], params["wo_ff"], params["lnf"])
    return out.reshape(B, L, D)


# ---------------------------------------------------------------------------
# CLIP glue: token + learned position embeddings (plain JAX), fused kernel
# ---------------------------------------------------------------------------
def clip_text_forward(params, tokens):
    B, L = tokens.shape
    D, F, NL = CLIP_D, CLIP_FF, CLIP_LAYERS
    x = (jnp.take(params["tok_emb"], tokens, axis=0)
         + params["pos_emb"][None, :L, :]).astype(jnp.float32).reshape(B * L, D)

    # Causal mask built once here (resident input), not per layer in the kernel.
    row = jax.lax.broadcasted_iota(jnp.int32, (L, L), 0)
    col = jax.lax.broadcasted_iota(jnp.int32, (L, L), 1)
    causal = jnp.where(col <= row, 0.0, -1e9).astype(jnp.float32)

    per_layer = (_nbytes(params["w"]) + _nbytes(params["w2"])
                 + _nbytes(params["vecs"])) // NL
    resident = 2 * _nbytes(x) + _nbytes(causal) + _nbytes(params["lnf"])

    out = pl.pallas_call(
        _clip_encoder_kernel,
        out_shape=jax.ShapeDtypeStruct((B * L, D), jnp.float32),
        grid=(NL,),
        in_specs=[
            _full((B * L, D)),                      # embeddings (aliased to out)
            _full((L, L)),                          # causal mask (resident)
            _per_layer((CLIP_VEC_ROWS, CLIP_VEC_W)),  # packed LN scales + biases
            _per_layer((D, 3 * D + D + F)),         # packed {Wqkv, Wo, fc1} bf16
            _per_layer((F, D)),                     # fc2, bf16
            _full((2, D)),                          # final LN weight / bias
        ],
        out_specs=_full((B * L, D)),
        input_output_aliases={0: 0},
        compiler_params=pltpu.CompilerParams(
            dimension_semantics=("arbitrary",),
            vmem_limit_bytes=_vmem_limit(per_layer, resident)),
    )(x, causal, params["vecs"], params["w"], params["w2"], params["lnf"])
    return out.reshape(B, L, D)


# ---------------------------------------------------------------------------
# FrozenCLIPT5Encoder.forward: returns (clip_z, t5_z)
# ---------------------------------------------------------------------------
@jax.jit
def frozen_clip_t5_forward(clip_params, t5_params, tokens):
    clip_z = clip_text_forward(clip_params, tokens)
    t5_z = t5_encoder_forward(t5_params, tokens)
    return clip_z, t5_z


# ---------------------------------------------------------------------------
# Synthetic parameter init (deterministic PRNG; stands in for checkpoints).
# Frozen weight matrices are stored bf16; LN scales / biases stay f32.
# ---------------------------------------------------------------------------
def init_t5_params(key):
    s = 0.02
    NL, D, H, F = T5_LAYERS, T5_D, T5_H, T5_FF
    k = jax.random.split(key, 4)
    return {
        "embed": s * jax.random.normal(k[0], (VOCAB, D), jnp.float32),
        "rel_bias": s * jax.random.normal(k[1], (T5_BUCKETS, H), jnp.float32),
        "vecs": jnp.ones((NL, 2, D), jnp.float32),                      # ln1, ln2
        "w": (s * jax.random.normal(k[2], (NL, D, 3 * D + D + 2 * F),
                                    jnp.float32)).astype(jnp.bfloat16),  # Wqkv|Wo|wi
        "wo_ff": (s * jax.random.normal(k[3], (NL, F, D),
                                        jnp.float32)).astype(jnp.bfloat16),
        "lnf": jnp.ones((1, D), jnp.float32),
    }


def init_clip_params(key):
    s = 0.02
    NL, D, F = CLIP_LAYERS, CLIP_D, CLIP_FF
    k = jax.random.split(key, 4)
    vecs = jnp.zeros((NL, CLIP_VEC_ROWS, CLIP_VEC_W), jnp.float32)
    vecs = vecs.at[:, 0, :D].set(1.0)    # ln1 weight (rows 1/3..7 stay zero biases)
    vecs = vecs.at[:, 2, :D].set(1.0)    # ln2 weight
    lnf = jnp.concatenate([jnp.ones((1, D), jnp.float32),
                           jnp.zeros((1, D), jnp.float32)], axis=0)      # (2, D)
    return {
        "tok_emb": s * jax.random.normal(k[0], (VOCAB, D), jnp.float32),
        "pos_emb": s * jax.random.normal(k[1], (MAX_LENGTH, D), jnp.float32),
        "vecs": vecs,
        "w": (s * jax.random.normal(k[2], (NL, D, 3 * D + D + F),
                                    jnp.float32)).astype(jnp.bfloat16),  # Wqkv|Wo|fc1
        "w2": (s * jax.random.normal(k[3], (NL, F, D),
                                     jnp.float32)).astype(jnp.bfloat16),
        "lnf": lnf,
    }


if __name__ == "__main__":
    root = jax.random.PRNGKey(0)
    k_tok, k_clip, k_t5 = jax.random.split(root, 3)

    # TODO(synk): synthetic "tokenizer" output (padded-to-max_length token ids)
    tokens = jax.random.randint(k_tok, (BATCH, MAX_LENGTH), 0, VOCAB, dtype=jnp.int32)
    clip_params = init_clip_params(k_clip)
    t5_params = init_t5_params(k_t5)

    clip_z, t5_z = frozen_clip_t5_forward(clip_params, t5_params, tokens)
    clip_z = jax.block_until_ready(clip_z)
    t5_z = jax.block_until_ready(t5_z)

    assert clip_z.shape == (BATCH, MAX_LENGTH, CLIP_D)
    assert t5_z.shape == (BATCH, MAX_LENGTH, T5_D)
    assert bool(jnp.all(jnp.isfinite(clip_z)))
    assert bool(jnp.all(jnp.isfinite(t5_z)))
    print("KERNEL_OK")
</pallas_src>

<mosaic_0001>
module attributes {stable_mosaic.version = 11 : i64} {
  func.func @_clip_encoder_kernel(%arg0: i32, %arg1: memref<16x128xf32, #tpu.memory_space<vmem>>, %arg2: memref<8x8xf32, #tpu.memory_space<vmem>>, %arg3: memref<1x8x512xf32, #tpu.memory_space<vmem>>, %arg4: memref<1x128x1024xbf16, #tpu.memory_space<vmem>>, %arg5: memref<1x512x128xbf16, #tpu.memory_space<vmem>>, %arg6: memref<2x128xf32, #tpu.memory_space<vmem>>, %arg7: memref<16x128xf32, #tpu.memory_space<vmem>>) attributes {dimension_semantics = [#tpu.dimension_semantics<arbitrary>], iteration_bounds = array<i64: 2>, scalar_prefetch = 0 : i64, scratch_operands = 0 : i64, tpu.core_type = #tpu.core_type<tc>, window_params = [{pipeline_mode = #tpu.pipeline_mode<synchronous>, transform_indices = @transform_0, window_bounds = array<i64: 16, 128>}, {pipeline_mode = #tpu.pipeline_mode<synchronous>, transform_indices = @transform_1, window_bounds = array<i64: 8, 8>}, {transform_indices = @transform_2, window_bounds = array<i64: 1, 8, 512>}, {transform_indices = @transform_3, window_bounds = array<i64: 1, 128, 1024>}, {transform_indices = @transform_4, window_bounds = array<i64: 1, 512, 128>}, {pipeline_mode = #tpu.pipeline_mode<synchronous>, transform_indices = @transform_5, window_bounds = array<i64: 2, 128>}, {pipeline_mode = #tpu.pipeline_mode<synchronous>, transform_indices = @transform_6, window_bounds = array<i64: 16, 128>}]} {
    %c0_i32 = arith.constant 0 : i32
    %0 = arith.cmpi eq, %arg0, %c0_i32 : i32
    %1 = arith.extui %0 : i1 to i32
    %c0_i32_0 = arith.constant 0 : i32
    %2 = arith.cmpi ne, %1, %c0_i32_0 : i32
    scf.if %2 {
      %c0_52 = arith.constant 0 : index
      %c0_53 = arith.constant 0 : index
      %189 = vector.load %arg1[%c0_52, %c0_53] : memref<16x128xf32, #tpu.memory_space<vmem>>, vector<16x128xf32>
      %c0_54 = arith.constant 0 : index
      %c0_55 = arith.constant 0 : index
      %190 = vector.load %arg7[%c0_54, %c0_55] : memref<16x128xf32, #tpu.memory_space<vmem>>, vector<16x128xf32>
      tpu.vector_store %arg7[%c0_54, %c0_55], %189 {strides = array<i32>} : memref<16x128xf32, #tpu.memory_space<vmem>>, vector<16x128xf32>,
    } else {
    }
    %c0 = arith.constant 0 : index
    %c0_1 = arith.constant 0 : index
    %3 = vector.load %arg7[%c0, %c0_1] : memref<16x128xf32, #tpu.memory_space<vmem>>, vector<16x128xf32>
    %c0_2 = arith.constant 0 : index
    %c0_3 = arith.constant 0 : index
    %c0_4 = arith.constant 0 : index
    %4 = vector.load %arg4[%c0_2, %c0_3, %c0_4] : memref<1x128x1024xbf16, #tpu.memory_space<vmem>>, vector<1x128x1024xbf16>
    %5 = vector.shape_cast %4 : vector<1x128x1024xbf16> to vector<128x1024xbf16>
    %c0_5 = arith.constant 0 : index
    %c0_6 = arith.constant 0 : index
    %c0_7 = arith.constant 0 : index
    %6 = vector.load %arg3[%c0_5, %c0_6, %c0_7] : memref<1x8x512xf32, #tpu.memory_space<vmem>>, vector<1x8x512xf32>
    %7 = vector.shape_cast %6 : vector<1x8x512xf32> to vector<8x512xf32>
    %8 = vector.extract_strided_slice %7 {offsets = [0, 0], sizes = [1, 128], strides = [1, 1]} : vector<8x512xf32> to vector<1x128xf32>
    %9 = vector.extract_strided_slice %7 {offsets = [1, 0], sizes = [1, 128], strides = [1, 1]} : vector<8x512xf32> to vector<1x128xf32>
    %10 = vector.extract_strided_slice %7 {offsets = [2, 0], sizes = [1, 128], strides = [1, 1]} : vector<8x512xf32> to vector<1x128xf32>
    %11 = vector.extract_strided_slice %7 {offsets = [3, 0], sizes = [1, 128], strides = [1, 1]} : vector<8x512xf32> to vector<1x128xf32>
    %12 = vector.extract_strided_slice %7 {offsets = [4, 0], sizes = [1, 128], strides = [1, 1]} : vector<8x512xf32> to vector<1x128xf32>
    %13 = vector.extract_strided_slice %7 {offsets = [5, 0], sizes = [1, 128], strides = [1, 1]} : vector<8x512xf32> to vector<1x128xf32>
    %14 = vector.extract_strided_slice %7 {offsets = [6, 0], sizes = [1, 384], strides = [1, 1]} : vector<8x512xf32> to vector<1x384xf32>
    %15 = vector.extract_strided_slice %7 {offsets = [7, 0], sizes = [1, 512], strides = [1, 1]} : vector<8x512xf32> to vector<1x512xf32>
    %cst = arith.constant dense<0.000000e+00> : vector<16xf32>
    %16 = vector.multi_reduction <add>, %3, %cst [1] : vector<16x128xf32> to vector<16xf32>
    %17 = vector.shape_cast %16 : vector<16xf32> to vector<16x1xf32>
    %cst_8 = arith.constant 1.280000e+02 : f32
    %18 = vector.broadcast %cst_8 : f32 to vector<16x1xf32>
    %19 = arith.divf %17, %18 : vector<16x1xf32>
    %20 = vector.broadcast %19 : vector<16x1xf32> to vector<16x128xf32>
    %21 = arith.subf %3, %20 : vector<16x128xf32>
    %22 = arith.mulf %21, %21 : vector<16x128xf32>
    %cst_9 = arith.constant dense<0.000000e+00> : vector<16xf32>
    %23 = vector.multi_reduction <add>, %22, %cst_9 [1] : vector<16x128xf32> to vector<16xf32>
    %24 = vector.shape_cast %23 : vector<16xf32> to vector<16x1xf32>
    %cst_10 = arith.constant 1.280000e+02 : f32
    %25 = vector.broadcast %cst_10 : f32 to vector<16x1xf32>
    %26 = arith.divf %24, %25 : vector<16x1xf32>
    %cst_11 = arith.constant 9.99999974E-6 : f32
    %27 = vector.broadcast %cst_11 : f32 to vector<16x1xf32>
    %28 = arith.addf %26, %27 : vector<16x1xf32>
    %29 = math.rsqrt %28 : vector<16x1xf32>
    %30 = vector.broadcast %29 : vector<16x1xf32> to vector<16x128xf32>
    %31 = arith.mulf %21, %30 : vector<16x128xf32>
    %32 = vector.broadcast %8 : vector<1x128xf32> to vector<16x128xf32>
    %33 = arith.mulf %31, %32 : vector<16x128xf32>
    %34 = vector.broadcast %9 : vector<1x128xf32> to vector<16x128xf32>
    %35 = arith.addf %33, %34 : vector<16x128xf32>
    %36 = arith.truncf %35 : vector<16x128xf32> to vector<16x128xbf16>
    %37 = vector.extract_strided_slice %5 {offsets = [0, 0], sizes = [128, 384], strides = [1, 1]} : vector<128x1024xbf16> to vector<128x384xbf16>
    %cst_12 = arith.constant dense<0.000000e+00> : vector<16x384xf32>
    %38 = tpu.matmul %36, %37, %cst_12 {dimension_numbers = #tpu.dot_dimension_numbers<[1], [0], [0], [1], [0, 0, 1, 1], [], []>} : vector<16x128xbf16>, vector<128x384xbf16>, vector<16x384xf32> -> vector<16x384xf32>
    %39 = vector.broadcast %14 : vector<1x384xf32> to vector<16x384xf32>
    %40 = arith.addf %38, %39 : vector<16x384xf32>
    %c0_13 = arith.constant 0 : index
    %c0_14 = arith.constant 0 : index
    %41 = vector.load %arg2[%c0_13, %c0_14] : memref<8x8xf32, #tpu.memory_space<vmem>>, vector<8x8xf32>
    %42 = vector.extract_strided_slice %5 {offsets = [0, 384], sizes = [128, 128], strides = [1, 1]} : vector<128x1024xbf16> to vector<128x128xbf16>
    %43 = vector.extract_strided_slice %40 {offsets = [0, 0], sizes = [16, 32], strides = [1, 1]} : vector<16x384xf32> to vector<16x32xf32>
    %44 = vector.shape_cast %43 : vector<16x32xf32> to vector<2x8x32xf32>
    %45 = vector.extract_strided_slice %40 {offsets = [0, 128], sizes = [16, 32], strides = [1, 1]} : vector<16x384xf32> to vector<16x32xf32>
    %46 = vector.shape_cast %45 : vector<16x32xf32> to vector<2x8x32xf32>
    %47 = vector.extract_strided_slice %40 {offsets = [0, 256], sizes = [16, 32], strides = [1, 1]} : vector<16x384xf32> to vector<16x32xf32>
    %48 = vector.shape_cast %47 : vector<16x32xf32> to vector<2x8x32xf32>
    %cst_15 = arith.constant 0.176776692 : f32
    %49 = vector.broadcast %cst_15 : f32 to vector<2x8x32xf32>
    %50 = arith.mulf %44, %49 : vector<2x8x32xf32>
    "tpu.trace_start"() <{level = 10 : i32, message = "bqd,bkd->bqk"}> : () -> ()
    %cst_16 = arith.constant dense<0.000000e+00> : vector<2x8x8xf32>
    %51 = tpu.matmul %50, %46, %cst_16 {dimension_numbers = #tpu.dot_dimension_numbers<[2], [2], [1], [1], [0, 0, 0, 1, 1, 1], [0], [0]>} : vector<2x8x32xf32>, vector<2x8x32xf32>, vector<2x8x8xf32> -> vector<2x8x8xf32>
    "tpu.trace_stop"() : () -> ()
    %52 = vector.shape_cast %41 : vector<8x8xf32> to vector<1x8x8xf32>
    %53 = vector.broadcast %52 : vector<1x8x8xf32> to vector<2x8x8xf32>
    %54 = arith.addf %51, %53 : vector<2x8x8xf32>
    %cst_17 = arith.constant dense<0xFF800000> : vector<2x8xf32>
    %55 = vector.multi_reduction <maximumf>, %54, %cst_17 [2] : vector<2x8x8xf32> to vector<2x8xf32>
    %56 = vector.shape_cast %55 : vector<2x8xf32> to vector<2x8x1xf32>
    %57 = vector.broadcast %56 : vector<2x8x1xf32> to vector<2x8x8xf32>
    %58 = arith.subf %54, %57 : vector<2x8x8xf32>
    %59 = math.exp %58 : vector<2x8x8xf32>
    %cst_18 = arith.constant dense<0.000000e+00> : vector<2x8xf32>
    %60 = vector.multi_reduction <add>, %59, %cst_18 [2] : vector<2x8x8xf32> to vector<2x8xf32>
    %61 = vector.shape_cast %60 : vector<2x8xf32> to vector<2x8x1xf32>
    %62 = tpu.reciprocal %61 {approx = true} : vector<2x8x1xf32> -> vector<2x8x1xf32>
    %63 = vector.broadcast %62 : vector<2x8x1xf32> to vector<2x8x8xf32>
    %64 = arith.mulf %59, %63 : vector<2x8x8xf32>
    "tpu.trace_start"() <{level = 10 : i32, message = "bqk,bkd->bqd"}> : () -> ()
    %cst_19 = arith.constant dense<0.000000e+00> : vector<2x8x32xf32>
    %65 = tpu.matmul %64, %48, %cst_19 {dimension_numbers = #tpu.dot_dimension_numbers<[2], [1], [1], [2], [0, 0, 0, 1, 1, 2], [0], [0]>} : vector<2x8x8xf32>, vector<2x8x32xf32>, vector<2x8x32xf32> -> vector<2x8x32xf32>
    "tpu.trace_stop"() : () -> ()
    %66 = vector.shape_cast %65 : vector<2x8x32xf32> to vector<16x32xf32>
    %67 = vector.extract_strided_slice %40 {offsets = [0, 32], sizes = [16, 32], strides = [1, 1]} : vector<16x384xf32> to vector<16x32xf32>
    %68 = vector.shape_cast %67 : vector<16x32xf32> to vector<2x8x32xf32>
    %69 = vector.extract_strided_slice %40 {offsets = [0, 160], sizes = [16, 32], strides = [1, 1]} : vector<16x384xf32> to vector<16x32xf32>
    %70 = vector.shape_cast %69 : vector<16x32xf32> to vector<2x8x32xf32>
    %71 = vector.extract_strided_slice %40 {offsets = [0, 288], sizes = [16, 32], strides = [1, 1]} : vector<16x384xf32> to vector<16x32xf32>
    %72 = vector.shape_cast %71 : vector<16x32xf32> to vector<2x8x32xf32>
    %cst_20 = arith.constant 0.176776692 : f32
    %73 = vector.broadcast %cst_20 : f32 to vector<2x8x32xf32>
    %74 = arith.mulf %68, %73 : vector<2x8x32xf32>
    "tpu.trace_start"() <{level = 10 : i32, message = "bqd,bkd->bqk"}> : () -> ()
    %cst_21 = arith.constant dense<0.000000e+00> : vector<2x8x8xf32>
    %75 = tpu.matmul %74, %70, %cst_21 {dimension_numbers = #tpu.dot_dimension_numbers<[2], [2], [1], [1], [0, 0, 0, 1, 1, 1], [0], [0]>} : vector<2x8x32xf32>, vector<2x8x32xf32>, vector<2x8x8xf32> -> vector<2x8x8xf32>
    "tpu.trace_stop"() : () -> ()
    %76 = vector.shape_cast %41 : vector<8x8xf32> to vector<1x8x8xf32>
    %77 = vector.broadcast %76 : vector<1x8x8xf32> to vector<2x8x8xf32>
    %78 = arith.addf %75, %77 : vector<2x8x8xf32>
    %cst_22 = arith.constant dense<0xFF800000> : vector<2x8xf32>
    %79 = vector.multi_reduction <maximumf>, %78, %cst_22 [2] : vector<2x8x8xf32> to vector<2x8xf32>
    %80 = vector.shape_cast %79 : vector<2x8xf32> to vector<2x8x1xf32>
    %81 = vector.broadcast %80 : vector<2x8x1xf32> to vector<2x8x8xf32>
    %82 = arith.subf %78, %81 : vector<2x8x8xf32>
    %83 = math.exp %82 : vector<2x8x8xf32>
    %cst_23 = arith.constant dense<0.000000e+00> : vector<2x8xf32>
    %84 = vector.multi_reduction <add>, %83, %cst_23 [2] : vector<2x8x8xf32> to vector<2x8xf32>
    %85 = vector.shape_cast %84 : vector<2x8xf32> to vector<2x8x1xf32>
    %86 = tpu.reciprocal %85 {approx = true} : vector<2x8x1xf32> -> vector<2x8x1xf32>
    %87 = vector.broadcast %86 : vector<2x8x1xf32> to vector<2x8x8xf32>
    %88 = arith.mulf %83, %87 : vector<2x8x8xf32>
    "tpu.trace_start"() <{level = 10 : i32, message = "bqk,bkd->bqd"}> : () -> ()
    %cst_24 = arith.constant dense<0.000000e+00> : vector<2x8x32xf32>
    %89 = tpu.matmul %88, %72, %cst_24 {dimension_numbers = #tpu.dot_dimension_numbers<[2], [1], [1], [2], [0, 0, 0, 1, 1, 2], [0], [0]>} : vector<2x8x8xf32>, vector<2x8x32xf32>, vector<2x8x32xf32> -> vector<2x8x32xf32>
    "tpu.trace_stop"() : () -> ()
    %90 = vector.shape_cast %89 : vector<2x8x32xf32> to vector<16x32xf32>
    %91 = vector.extract_strided_slice %40 {offsets = [0, 64], sizes = [16, 32], strides = [1, 1]} : vector<16x384xf32> to vector<16x32xf32>
    %92 = vector.shape_cast %91 : vector<16x32xf32> to vector<2x8x32xf32>
    %93 = vector.extract_strided_slice %40 {offsets = [0, 192], sizes = [16, 32], strides = [1, 1]} : vector<16x384xf32> to vector<16x32xf32>
    %94 = vector.shape_cast %93 : vector<16x32xf32> to vector<2x8x32xf32>
    %95 = vector.extract_strided_slice %40 {offsets = [0, 320], sizes = [16, 32], strides = [1, 1]} : vector<16x384xf32> to vector<16x32xf32>
    %96 = vector.shape_cast %95 : vector<16x32xf32> to vector<2x8x32xf32>
    %cst_25 = arith.constant 0.176776692 : f32
    %97 = vector.broadcast %cst_25 : f32 to vector<2x8x32xf32>
    %98 = arith.mulf %92, %97 : vector<2x8x32xf32>
    "tpu.trace_start"() <{level = 10 : i32, message = "bqd,bkd->bqk"}> : () -> ()
    %cst_26 = arith.constant dense<0.000000e+00> : vector<2x8x8xf32>
    %99 = tpu.matmul %98, %94, %cst_26 {dimension_numbers = #tpu.dot_dimension_numbers<[2], [2], [1], [1], [0, 0, 0, 1, 1, 1], [0], [0]>} : vector<2x8x32xf32>, vector<2x8x32xf32>, vector<2x8x8xf32> -> vector<2x8x8xf32>
    "tpu.trace_stop"() : () -> ()
    %100 = vector.shape_cast %41 : vector<8x8xf32> to vector<1x8x8xf32>
    %101 = vector.broadcast %100 : vector<1x8x8xf32> to vector<2x8x8xf32>
    %102 = arith.addf %99, %101 : vector<2x8x8xf32>
    %cst_27 = arith.constant dense<0xFF800000> : vector<2x8xf32>
    %103 = vector.multi_reduction <maximumf>, %102, %cst_27 [2] : vector<2x8x8xf32> to vector<2x8xf32>
    %104 = vector.shape_cast %103 : vector<2x8xf32> to vector<2x8x1xf32>
    %105 = vector.broadcast %104 : vector<2x8x1xf32> to vector<2x8x8xf32>
    %106 = arith.subf %102, %105 : vector<2x8x8xf32>
    %107 = math.exp %106 : vector<2x8x8xf32>
    %cst_28 = arith.constant dense<0.000000e+00> : vector<2x8xf32>
    %108 = vector.multi_reduction <add>, %107, %cst_28 [2] : vector<2x8x8xf32> to vector<2x8xf32>
    %109 = vector.shape_cast %108 : vector<2x8xf32> to vector<2x8x1xf32>
    %110 = tpu.reciprocal %109 {approx = true} : vector<2x8x1xf32> -> vector<2x8x1xf32>
    %111 = vector.broadcast %110 : vector<2x8x1xf32> to vector<2x8x8xf32>
    %112 = arith.mulf %107, %111 : vector<2x8x8xf32>
    "tpu.trace_start"() <{level = 10 : i32, message = "bqk,bkd->bqd"}> : () -> ()
    %cst_29 = arith.constant dense<0.000000e+00> : vector<2x8x32xf32>
    %113 = tpu.matmul %112, %96, %cst_29 {dimension_numbers = #tpu.dot_dimension_numbers<[2], [1], [1], [2], [0, 0, 0, 1, 1, 2], [0], [0]>} : vector<2x8x8xf32>, vector<2x8x32xf32>, vector<2x8x32xf32> -> vector<2x8x32xf32>
    "tpu.trace_stop"() : () -> ()
    %114 = vector.shape_cast %113 : vector<2x8x32xf32> to vector<16x32xf32>
    %115 = vector.extract_strided_slice %40 {offsets = [0, 96], sizes = [16, 32], strides = [1, 1]} : vector<16x384xf32> to vector<16x32xf32>
    %116 = vector.shape_cast %115 : vector<16x32xf32> to vector<2x8x32xf32>
    %117 = vector.extract_strided_slice %40 {offsets = [0, 224], sizes = [16, 32], strides = [1, 1]} : vector<16x384xf32> to vector<16x32xf32>
    %118 = vector.shape_cast %117 : vector<16x32xf32> to vector<2x8x32xf32>
    %119 = vector.extract_strided_slice %40 {offsets = [0, 352], sizes = [16, 32], strides = [1, 1]} : vector<16x384xf32> to vector<16x32xf32>
    %120 = vector.shape_cast %119 : vector<16x32xf32> to vector<2x8x32xf32>
    %cst_30 = arith.constant 0.176776692 : f32
    %121 = vector.broadcast %cst_30 : f32 to vector<2x8x32xf32>
    %122 = arith.mulf %116, %121 : vector<2x8x32xf32>
    "tpu.trace_start"() <{level = 10 : i32, message = "bqd,bkd->bqk"}> : () -> ()
    %cst_31 = arith.constant dense<0.000000e+00> : vector<2x8x8xf32>
    %123 = tpu.matmul %122, %118, %cst_31 {dimension_numbers = #tpu.dot_dimension_numbers<[2], [2], [1], [1], [0, 0, 0, 1, 1, 1], [0], [0]>} : vector<2x8x32xf32>, vector<2x8x32xf32>, vector<2x8x8xf32> -> vector<2x8x8xf32>
    "tpu.trace_stop"() : () -> ()
    %124 = vector.shape_cast %41 : vector<8x8xf32> to vector<1x8x8xf32>
    %125 = vector.broadcast %124 : vector<1x8x8xf32> to vector<2x8x8xf32>
    %126 = arith.addf %123, %125 : vector<2x8x8xf32>
    %cst_32 = arith.constant dense<0xFF800000> : vector<2x8xf32>
    %127 = vector.multi_reduction <maximumf>, %126, %cst_32 [2] : vector<2x8x8xf32> to vector<2x8xf32>
    %128 = vector.shape_cast %127 : vector<2x8xf32> to vector<2x8x1xf32>
    %129 = vector.broadcast %128 : vector<2x8x1xf32> to vector<2x8x8xf32>
    %130 = arith.subf %126, %129 : vector<2x8x8xf32>
    %131 = math.exp %130 : vector<2x8x8xf32>
    %cst_33 = arith.constant dense<0.000000e+00> : vector<2x8xf32>
    %132 = vector.multi_reduction <add>, %131, %cst_33 [2] : vector<2x8x8xf32> to vector<2x8xf32>
    %133 = vector.shape_cast %132 : vector<2x8xf32> to vector<2x8x1xf32>
    %134 = tpu.reciprocal %133 {approx = true} : vector<2x8x1xf32> -> vector<2x8x1xf32>
    %135 = vector.broadcast %134 : vector<2x8x1xf32> to vector<2x8x8xf32>
    %136 = arith.mulf %131, %135 : vector<2x8x8xf32>
    "tpu.trace_start"() <{level = 10 : i32, message = "bqk,bkd->bqd"}> : () -> ()
    %cst_34 = arith.constant dense<0.000000e+00> : vector<2x8x32xf32>
    %137 = tpu.matmul %136, %120, %cst_34 {dimension_numbers = #tpu.dot_dimension_numbers<[2], [1], [1], [2], [0, 0, 0, 1, 1, 2], [0], [0]>} : vector<2x8x8xf32>, vector<2x8x32xf32>, vector<2x8x32xf32> -> vector<2x8x32xf32>
    "tpu.trace_stop"() : () -> ()
    %138 = vector.shape_cast %137 : vector<2x8x32xf32> to vector<16x32xf32>
    %139 = tpu.concatenate %66, %90, %114, %138 in 1 : vector<16x32xf32>, vector<16x32xf32>, vector<16x32xf32>, vector<16x32xf32> -> vector<16x128xf32>
    %140 = arith.truncf %139 : vector<16x128xf32> to vector<16x128xbf16>
    %cst_35 = arith.constant dense<0.000000e+00> : vector<16x128xf32>
    %141 = tpu.matmul %140, %42, %cst_35 {dimension_numbers = #tpu.dot_dimension_numbers<[1], [0], [0], [1], [0, 0, 1, 1], [], []>} : vector<16x128xbf16>, vector<128x128xbf16>, vector<16x128xf32> -> vector<16x128xf32>
    %142 = arith.addf %3, %141 : vector<16x128xf32>
    %143 = vector.broadcast %12 : vector<1x128xf32> to vector<16x128xf32>
    %144 = arith.addf %142, %143 : vector<16x128xf32>
    %cst_36 = arith.constant dense<0.000000e+00> : vector<16xf32>
    %145 = vector.multi_reduction <add>, %144, %cst_36 [1] : vector<16x128xf32> to vector<16xf32>
    %146 = vector.shape_cast %145 : vector<16xf32> to vector<16x1xf32>
    %cst_37 = arith.constant 1.280000e+02 : f32
    %147 = vector.broadcast %cst_37 : f32 to vector<16x1xf32>
    %148 = arith.divf %146, %147 : vector<16x1xf32>
    %149 = vector.broadcast %148 : vector<16x1xf32> to vector<16x128xf32>
    %150 = arith.subf %144, %149 : vector<16x128xf32>
    %151 = arith.mulf %150, %150 : vector<16x128xf32>
    %cst_38 = arith.constant dense<0.000000e+00> : vector<16xf32>
    %152 = vector.multi_reduction <add>, %151, %cst_38 [1] : vector<16x128xf32> to vector<16xf32>
    %153 = vector.shape_cast %152 : vector<16xf32> to vector<16x1xf32>
    %cst_39 = arith.constant 1.280000e+02 : f32
    %154 = vector.broadcast %cst_39 : f32 to vector<16x1xf32>
    %155 = arith.divf %153, %154 : vector<16x1xf32>
    %cst_40 = arith.constant 9.99999974E-6 : f32
    %156 = vector.broadcast %cst_40 : f32 to vector<16x1xf32>
    %157 = arith.addf %155, %156 : vector<16x1xf32>
    %158 = math.rsqrt %157 : vector<16x1xf32>
    %159 = vector.broadcast %158 : vector<16x1xf32> to vector<16x128xf32>
    %160 = arith.mulf %150, %159 : vector<16x128xf32>
    %161 = vector.broadcast %10 : vector<1x128xf32> to vector<16x128xf32>
    %162 = arith.mulf %160, %161 : vector<16x128xf32>
    %163 = vector.broadcast %11 : vector<1x128xf32> to vector<16x128xf32>
    %164 = arith.addf %162, %163 : vector<16x128xf32>
    %165 = arith.truncf %164 : vector<16x128xf32> to vector<16x128xbf16>
    %166 = vector.extract_strided_slice %5 {offsets = [0, 512], sizes = [128, 512], strides = [1, 1]} : vector<128x1024xbf16> to vector<128x512xbf16>
    %cst_41 = arith.constant dense<0.000000e+00> : vector<16x512xf32>
    %167 = tpu.matmul %165, %166, %cst_41 {dimension_numbers = #tpu.dot_dimension_numbers<[1], [0], [0], [1], [0, 0, 1, 1], [], []>} : vector<16x128xbf16>, vector<128x512xbf16>, vector<16x512xf32> -> vector<16x512xf32>
    %168 = vector.broadcast %15 : vector<1x512xf32> to vector<16x512xf32>
    %169 = arith.addf %167, %168 : vector<16x512xf32>
    %cst_42 = arith.constant -1.702000e+00 : f32
    %170 = vector.broadcast %cst_42 : f32 to vector<16x512xf32>
    %171 = arith.mulf %170, %169 : vector<16x512xf32>
    %172 = math.exp %171 : vector<16x512xf32>
    %cst_43 = arith.constant 1.000000e+00 : f32
    %173 = vector.broadcast %cst_43 : f32 to vector<16x512xf32>
    %174 = arith.addf %173, %172 : vector<16x512xf32>
    %cst_44 = arith.constant 1.000000e+00 : f32
    %175 = vector.broadcast %cst_44 : f32 to vector<16x512xf32>
    %176 = arith.divf %175, %174 : vector<16x512xf32>
    %177 = arith.mulf %169, %176 : vector<16x512xf32>
    %178 = arith.truncf %177 : vector<16x512xf32> to vector<16x512xbf16>
    %c0_45 = arith.constant 0 : index
    %c0_46 = arith.constant 0 : index
    %c0_47 = arith.constant 0 : index
    %179 = vector.load %arg5[%c0_45, %c0_46, %c0_47] : memref<1x512x128xbf16, #tpu.memory_space<vmem>>, vector<1x512x128xbf16>
    %180 = vector.shape_cast %179 : vector<1x512x128xbf16> to vector<512x128xbf16>
    %cst_48 = arith.constant dense<0.000000e+00> : vector<16x128xf32>
    %181 = tpu.matmul %178, %180, %cst_48 {dimension_numbers = #tpu.dot_dimension_numbers<[1], [0], [0], [1], [0, 0, 1, 1], [], []>} : vector<16x512xbf16>, vector<512x128xbf16>, vector<16x128xf32> -> vector<16x128xf32>
    %182 = arith.addf %144, %181 : vector<16x128xf32>
    %183 = vector.broadcast %13 : vector<1x128xf32> to vector<16x128xf32>
    %184 = arith.addf %182, %183 : vector<16x128xf32>
    %c0_49 = arith.constant 0 : index
    %c0_50 = arith.constant 0 : index
    %185 = vector.load %arg7[%c0_49, %c0_50] : memref<16x128xf32, #tpu.memory_space<vmem>>, vector<16x128xf32>
    tpu.vector_store %arg7[%c0_49, %c0_50], %184 {strides = array<i32>} : memref<16x128xf32, #tpu.memory_space<vmem>>, vector<16x128xf32>,
    %c1_i32 = arith.constant 1 : i32
    %186 = arith.cmpi eq, %arg0, %c1_i32 : i32
    %187 = arith.extui %186 : i1 to i32
    %c0_i32_51 = arith.constant 0 : i32
    %188 = arith.cmpi ne, %187, %c0_i32_51 : i32
    scf.if %188 {
      %c0_52 = arith.constant 0 : index
      %c0_53 = arith.constant 0 : index
      %189 = vector.load %arg6[%c0_52, %c0_53] : memref<2x128xf32, #tpu.memory_space<vmem>>, vector<1x128xf32>
      %c1 = arith.constant 1 : index
      %c0_54 = arith.constant 0 : index
      %190 = vector.load %arg6[%c1, %c0_54] : memref<2x128xf32, #tpu.memory_space<vmem>>, vector<1x128xf32>
      %cst_55 = arith.constant dense<0.000000e+00> : vector<16xf32>
      %191 = vector.multi_reduction <add>, %184, %cst_55 [1] : vector<16x128xf32> to vector<16xf32>
      %192 = vector.shape_cast %191 : vector<16xf32> to vector<16x1xf32>
      %cst_56 = arith.constant 1.280000e+02 : f32
      %193 = vector.broadcast %cst_56 : f32 to vector<16x1xf32>
      %194 = arith.divf %192, %193 : vector<16x1xf32>
      %195 = vector.broadcast %194 : vector<16x1xf32> to vector<16x128xf32>
      %196 = arith.subf %184, %195 : vector<16x128xf32>
      %197 = arith.mulf %196, %196 : vector<16x128xf32>
      %cst_57 = arith.constant dense<0.000000e+00> : vector<16xf32>
      %198 = vector.multi_reduction <add>, %197, %cst_57 [1] : vector<16x128xf32> to vector<16xf32>
      %199 = vector.shape_cast %198 : vector<16xf32> to vector<16x1xf32>
      %cst_58 = arith.constant 1.280000e+02 : f32
      %200 = vector.broadcast %cst_58 : f32 to vector<16x1xf32>
      %201 = arith.divf %199, %200 : vector<16x1xf32>
      %cst_59 = arith.constant 9.99999974E-6 : f32
      %202 = vector.broadcast %cst_59 : f32 to vector<16x1xf32>
      %203 = arith.addf %201, %202 : vector<16x1xf32>
      %204 = math.rsqrt %203 : vector<16x1xf32>
      %205 = vector.broadcast %204 : vector<16x1xf32> to vector<16x128xf32>
      %206 = arith.mulf %196, %205 : vector<16x128xf32>
      %207 = vector.broadcast %189 : vector<1x128xf32> to vector<16x128xf32>
      %208 = arith.mulf %206, %207 : vector<16x128xf32>
      %209 = vector.broadcast %190 : vector<1x128xf32> to vector<16x128xf32>
      %210 = arith.addf %208, %209 : vector<16x128xf32>
      %c0_60 = arith.constant 0 : index
      %c0_61 = arith.constant 0 : index
      %211 = vector.load %arg7[%c0_60, %c0_61] : memref<16x128xf32, #tpu.memory_space<vmem>>, vector<16x128xf32>
      tpu.vector_store %arg7[%c0_60, %c0_61], %210 {strides = array<i32>} : memref<16x128xf32, #tpu.memory_space<vmem>>, vector<16x128xf32>,
    } else {
    }
    return
  }
  func.func @transform_0(%arg0: i32) -> (i32, i32) {
    %c0_i32 = arith.constant 0 : i32
    %c0_i32_0 = arith.constant 0 : i32
    %c0_i32_1 = arith.constant 0 : i32
    return %c0_i32, %c0_i32_0 : i32, i32
  }
  func.func @transform_1(%arg0: i32) -> (i32, i32) {
    %c0_i32 = arith.constant 0 : i32
    %c0_i32_0 = arith.constant 0 : i32
    %c0_i32_1 = arith.constant 0 : i32
    return %c0_i32, %c0_i32_0 : i32, i32
  }
  func.func @transform_2(%arg0: i32) -> (i32, i32, i32) {
    %c0_i32 = arith.constant 0 : i32
    %c0_i32_0 = arith.constant 0 : i32
    %c0_i32_1 = arith.constant 0 : i32
    return %arg0, %c0_i32, %c0_i32_0 : i32, i32, i32
  }
  func.func @transform_3(%arg0: i32) -> (i32, i32, i32) {
    %c0_i32 = arith.constant 0 : i32
    %c0_i32_0 = arith.constant 0 : i32
    %c0_i32_1 = arith.constant 0 : i32
    return %arg0, %c0_i32, %c0_i32_0 : i32, i32, i32
  }
  func.func @transform_4(%arg0: i32) -> (i32, i32, i32) {
    %c0_i32 = arith.constant 0 : i32
    %c0_i32_0 = arith.constant 0 : i32
    %c0_i32_1 = arith.constant 0 : i32
    return %arg0, %c0_i32, %c0_i32_0 : i32, i32, i32
  }
  func.func @transform_5(%arg0: i32) -> (i32, i32) {
    %c0_i32 = arith.constant 0 : i32
    %c0_i32_0 = arith.constant 0 : i32
    %c0_i32_1 = arith.constant 0 : i32
    return %c0_i32, %c0_i32_0 : i32, i32
  }
  func.func @transform_6(%arg0: i32) -> (i32, i32) {
    %c0_i32 = arith.constant 0 : i32
    %c0_i32_0 = arith.constant 0 : i32
    %c0_i32_1 = arith.constant 0 : i32
    return %c0_i32, %c0_i32_0 : i32, i32
  }
}

module attributes {stable_mosaic.version = 11 : i64} {
  func.func @_t5_encoder_kernel(%arg0: i32, %arg1: memref<16x128xf32, #tpu.memory_space<vmem>>, %arg2: memref<4x8x8xf32, #tpu.memory_space<vmem>>, %arg3: memref<1x2x128xf32, #tpu.memory_space<vmem>>, %arg4: memref<1x128x1024xbf16, #tpu.memory_space<vmem>>, %arg5: memref<1x256x128xbf16, #tpu.memory_space<vmem>>, %arg6: memref<1x128xf32, #tpu.memory_space<vmem>>, %arg7: memref<16x128xf32, #tpu.memory_space<vmem>>) attributes {dimension_semantics = [#tpu.dimension_semantics<arbitrary>], iteration_bounds = array<i64: 2>, scalar_prefetch = 0 : i64, scratch_operands = 0 : i64, tpu.core_type = #tpu.core_type<tc>, window_params = [{pipeline_mode = #tpu.pipeline_mode<synchronous>, transform_indices = @transform_0, window_bounds = array<i64: 16, 128>}, {pipeline_mode = #tpu.pipeline_mode<synchronous>, transform_indices = @transform_1, window_bounds = array<i64: 4, 8, 8>}, {transform_indices = @transform_2, window_bounds = array<i64: 1, 2, 128>}, {transform_indices = @transform_3, window_bounds = array<i64: 1, 128, 1024>}, {transform_indices = @transform_4, window_bounds = array<i64: 1, 256, 128>}, {pipeline_mode = #tpu.pipeline_mode<synchronous>, transform_indices = @transform_5, window_bounds = array<i64: 1, 128>}, {pipeline_mode = #tpu.pipeline_mode<synchronous>, transform_indices = @transform_6, window_bounds = array<i64: 16, 128>}]} {
    %c0_i32 = arith.constant 0 : i32
    %0 = arith.cmpi eq, %arg0, %c0_i32 : i32
    %1 = arith.extui %0 : i1 to i32
    %c0_i32_0 = arith.constant 0 : i32
    %2 = arith.cmpi ne, %1, %c0_i32_0 : i32
    scf.if %2 {
      %c0_55 = arith.constant 0 : index
      %c0_56 = arith.constant 0 : index
      %166 = vector.load %arg1[%c0_55, %c0_56] : memref<16x128xf32, #tpu.memory_space<vmem>>, vector<16x128xf32>
      %c0_57 = arith.constant 0 : index
      %c0_58 = arith.constant 0 : index
      %167 = vector.load %arg7[%c0_57, %c0_58] : memref<16x128xf32, #tpu.memory_space<vmem>>, vector<16x128xf32>
      tpu.vector_store %arg7[%c0_57, %c0_58], %166 {strides = array<i32>} : memref<16x128xf32, #tpu.memory_space<vmem>>, vector<16x128xf32>,
    } else {
    }
    %c0 = arith.constant 0 : index
    %c0_1 = arith.constant 0 : index
    %3 = vector.load %arg7[%c0, %c0_1] : memref<16x128xf32, #tpu.memory_space<vmem>>, vector<16x128xf32>
    %c0_2 = arith.constant 0 : index
    %c0_3 = arith.constant 0 : index
    %c0_4 = arith.constant 0 : index
    %4 = vector.load %arg4[%c0_2, %c0_3, %c0_4] : memref<1x128x1024xbf16, #tpu.memory_space<vmem>>, vector<1x128x1024xbf16>
    %5 = vector.shape_cast %4 : vector<1x128x1024xbf16> to vector<128x1024xbf16>
    %c0_5 = arith.constant 0 : index
    %c0_6 = arith.constant 0 : index
    %c0_7 = arith.constant 0 : index
    %6 = vector.load %arg3[%c0_5, %c0_6, %c0_7] : memref<1x2x128xf32, #tpu.memory_space<vmem>>, vector<1x1x128xf32>
    %7 = vector.shape_cast %6 : vector<1x1x128xf32> to vector<1x128xf32>
    %c0_8 = arith.constant 0 : index
    %c1 = arith.constant 1 : index
    %c0_9 = arith.constant 0 : index
    %8 = vector.load %arg3[%c0_8, %c1, %c0_9] : memref<1x2x128xf32, #tpu.memory_space<vmem>>, vector<1x1x128xf32>
    %9 = vector.shape_cast %8 : vector<1x1x128xf32> to vector<1x128xf32>
    %10 = arith.mulf %3, %3 : vector<16x128xf32>
    %cst = arith.constant dense<0.000000e+00> : vector<16xf32>
    %11 = vector.multi_reduction <add>, %10, %cst [1] : vector<16x128xf32> to vector<16xf32>
    %12 = vector.shape_cast %11 : vector<16xf32> to vector<16x1xf32>
    %cst_10 = arith.constant 1.280000e+02 : f32
    %13 = vector.broadcast %cst_10 : f32 to vector<16x1xf32>
    %14 = arith.divf %12, %13 : vector<16x1xf32>
    %cst_11 = arith.constant 9.99999997E-7 : f32
    %15 = vector.broadcast %cst_11 : f32 to vector<16x1xf32>
    %16 = arith.addf %14, %15 : vector<16x1xf32>
    %17 = math.rsqrt %16 : vector<16x1xf32>
    %18 = vector.broadcast %17 : vector<16x1xf32> to vector<16x128xf32>
    %19 = arith.mulf %3, %18 : vector<16x128xf32>
    %20 = vector.broadcast %7 : vector<1x128xf32> to vector<16x128xf32>
    %21 = arith.mulf %19, %20 : vector<16x128xf32>
    %22 = arith.truncf %21 : vector<16x128xf32> to vector<16x128xbf16>
    %23 = vector.extract_strided_slice %5 {offsets = [0, 0], sizes = [128, 384], strides = [1, 1]} : vector<128x1024xbf16> to vector<128x384xbf16>
    %cst_12 = arith.constant dense<0.000000e+00> : vector<16x384xf32>
    %24 = tpu.matmul %22, %23, %cst_12 {dimension_numbers = #tpu.dot_dimension_numbers<[1], [0], [0], [1], [0, 0, 1, 1], [], []>} : vector<16x128xbf16>, vector<128x384xbf16>, vector<16x384xf32> -> vector<16x384xf32>
    %c0_13 = arith.constant 0 : index
    %c0_14 = arith.constant 0 : index
    %c0_15 = arith.constant 0 : index
    %25 = vector.load %arg2[%c0_13, %c0_14, %c0_15] : memref<4x8x8xf32, #tpu.memory_space<vmem>>, vector<1x8x8xf32>
    %26 = vector.shape_cast %25 : vector<1x8x8xf32> to vector<8x8xf32>
    %c1_16 = arith.constant 1 : index
    %c0_17 = arith.constant 0 : index
    %c0_18 = arith.constant 0 : index
    %27 = vector.load %arg2[%c1_16, %c0_17, %c0_18] : memref<4x8x8xf32, #tpu.memory_space<vmem>>, vector<1x8x8xf32>
    %28 = vector.shape_cast %27 : vector<1x8x8xf32> to vector<8x8xf32>
    %c2 = arith.constant 2 : index
    %c0_19 = arith.constant 0 : index
    %c0_20 = arith.constant 0 : index
    %29 = vector.load %arg2[%c2, %c0_19, %c0_20] : memref<4x8x8xf32, #tpu.memory_space<vmem>>, vector<1x8x8xf32>
    %30 = vector.shape_cast %29 : vector<1x8x8xf32> to vector<8x8xf32>
    %c3 = arith.constant 3 : index
    %c0_21 = arith.constant 0 : index
    %c0_22 = arith.constant 0 : index
    %31 = vector.load %arg2[%c3, %c0_21, %c0_22] : memref<4x8x8xf32, #tpu.memory_space<vmem>>, vector<1x8x8xf32>
    %32 = vector.shape_cast %31 : vector<1x8x8xf32> to vector<8x8xf32>
    %33 = vector.extract_strided_slice %5 {offsets = [0, 384], sizes = [128, 128], strides = [1, 1]} : vector<128x1024xbf16> to vector<128x128xbf16>
    %34 = vector.extract_strided_slice %24 {offsets = [0, 0], sizes = [16, 32], strides = [1, 1]} : vector<16x384xf32> to vector<16x32xf32>
    %35 = vector.shape_cast %34 : vector<16x32xf32> to vector<2x8x32xf32>
    %36 = vector.extract_strided_slice %24 {offsets = [0, 128], sizes = [16, 32], strides = [1, 1]} : vector<16x384xf32> to vector<16x32xf32>
    %37 = vector.shape_cast %36 : vector<16x32xf32> to vector<2x8x32xf32>
    %38 = vector.extract_strided_slice %24 {offsets = [0, 256], sizes = [16, 32], strides = [1, 1]} : vector<16x384xf32> to vector<16x32xf32>
    %39 = vector.shape_cast %38 : vector<16x32xf32> to vector<2x8x32xf32>
    "tpu.trace_start"() <{level = 10 : i32, message = "bqd,bkd->bqk"}> : () -> ()
    %cst_23 = arith.constant dense<0.000000e+00> : vector<2x8x8xf32>
    %40 = tpu.matmul %35, %37, %cst_23 {dimension_numbers = #tpu.dot_dimension_numbers<[2], [2], [1], [1], [0, 0, 0, 1, 1, 1], [0], [0]>} : vector<2x8x32xf32>, vector<2x8x32xf32>, vector<2x8x8xf32> -> vector<2x8x8xf32>
    "tpu.trace_stop"() : () -> ()
    %41 = vector.shape_cast %26 : vector<8x8xf32> to vector<1x8x8xf32>
    %42 = vector.broadcast %41 : vector<1x8x8xf32> to vector<2x8x8xf32>
    %43 = arith.addf %40, %42 : vector<2x8x8xf32>
    %cst_24 = arith.constant dense<0xFF800000> : vector<2x8xf32>
    %44 = vector.multi_reduction <maximumf>, %43, %cst_24 [2] : vector<2x8x8xf32> to vector<2x8xf32>
    %45 = vector.shape_cast %44 : vector<2x8xf32> to vector<2x8x1xf32>
    %46 = vector.broadcast %45 : vector<2x8x1xf32> to vector<2x8x8xf32>
    %47 = arith.subf %43, %46 : vector<2x8x8xf32>
    %48 = math.exp %47 : vector<2x8x8xf32>
    %cst_25 = arith.constant dense<0.000000e+00> : vector<2x8xf32>
    %49 = vector.multi_reduction <add>, %48, %cst_25 [2] : vector<2x8x8xf32> to vector<2x8xf32>
    %50 = vector.shape_cast %49 : vector<2x8xf32> to vector<2x8x1xf32>
    %51 = tpu.reciprocal %50 {approx = true} : vector<2x8x1xf32> -> vector<2x8x1xf32>
    %52 = vector.broadcast %51 : vector<2x8x1xf32> to vector<2x8x8xf32>
    %53 = arith.mulf %48, %52 : vector<2x8x8xf32>
    "tpu.trace_start"() <{level = 10 : i32, message = "bqk,bkd->bqd"}> : () -> ()
    %cst_26 = arith.constant dense<0.000000e+00> : vector<2x8x32xf32>
    %54 = tpu.matmul %53, %39, %cst_26 {dimension_numbers = #tpu.dot_dimension_numbers<[2], [1], [1], [2], [0, 0, 0, 1, 1, 2], [0], [0]>} : vector<2x8x8xf32>, vector<2x8x32xf32>, vector<2x8x32xf32> -> vector<2x8x32xf32>
    "tpu.trace_stop"() : () -> ()
    %55 = vector.shape_cast %54 : vector<2x8x32xf32> to vector<16x32xf32>
    %56 = vector.extract_strided_slice %24 {offsets = [0, 32], sizes = [16, 32], strides = [1, 1]} : vector<16x384xf32> to vector<16x32xf32>
    %57 = vector.shape_cast %56 : vector<16x32xf32> to vector<2x8x32xf32>
    %58 = vector.extract_strided_slice %24 {offsets = [0, 160], sizes = [16, 32], strides = [1, 1]} : vector<16x384xf32> to vector<16x32xf32>
    %59 = vector.shape_cast %58 : vector<16x32xf32> to vector<2x8x32xf32>
    %60 = vector.extract_strided_slice %24 {offsets = [0, 288], sizes = [16, 32], strides = [1, 1]} : vector<16x384xf32> to vector<16x32xf32>
    %61 = vector.shape_cast %60 : vector<16x32xf32> to vector<2x8x32xf32>
    "tpu.trace_start"() <{level = 10 : i32, message = "bqd,bkd->bqk"}> : () -> ()
    %cst_27 = arith.constant dense<0.000000e+00> : vector<2x8x8xf32>
    %62 = tpu.matmul %57, %59, %cst_27 {dimension_numbers = #tpu.dot_dimension_numbers<[2], [2], [1], [1], [0, 0, 0, 1, 1, 1], [0], [0]>} : vector<2x8x32xf32>, vector<2x8x32xf32>, vector<2x8x8xf32> -> vector<2x8x8xf32>
    "tpu.trace_stop"() : () -> ()
    %63 = vector.shape_cast %28 : vector<8x8xf32> to vector<1x8x8xf32>
    %64 = vector.broadcast %63 : vector<1x8x8xf32> to vector<2x8x8xf32>
    %65 = arith.addf %62, %64 : vector<2x8x8xf32>
    %cst_28 = arith.constant dense<0xFF800000> : vector<2x8xf32>
    %66 = vector.multi_reduction <maximumf>, %65, %cst_28 [2] : vector<2x8x8xf32> to vector<2x8xf32>
    %67 = vector.shape_cast %66 : vector<2x8xf32> to vector<2x8x1xf32>
    %68 = vector.broadcast %67 : vector<2x8x1xf32> to vector<2x8x8xf32>
    %69 = arith.subf %65, %68 : vector<2x8x8xf32>
    %70 = math.exp %69 : vector<2x8x8xf32>
    %cst_29 = arith.constant dense<0.000000e+00> : vector<2x8xf32>
    %71 = vector.multi_reduction <add>, %70, %cst_29 [2] : vector<2x8x8xf32> to vector<2x8xf32>
    %72 = vector.shape_cast %71 : vector<2x8xf32> to vector<2x8x1xf32>
    %73 = tpu.reciprocal %72 {approx = true} : vector<2x8x1xf32> -> vector<2x8x1xf32>
    %74 = vector.broadcast %73 : vector<2x8x1xf32> to vector<2x8x8xf32>
    %75 = arith.mulf %70, %74 : vector<2x8x8xf32>
    "tpu.trace_start"() <{level = 10 : i32, message = "bqk,bkd->bqd"}> : () -> ()
    %cst_30 = arith.constant dense<0.000000e+00> : vector<2x8x32xf32>
    %76 = tpu.matmul %75, %61, %cst_30 {dimension_numbers = #tpu.dot_dimension_numbers<[2], [1], [1], [2], [0, 0, 0, 1, 1, 2], [0], [0]>} : vector<2x8x8xf32>, vector<2x8x32xf32>, vector<2x8x32xf32> -> vector<2x8x32xf32>
    "tpu.trace_stop"() : () -> ()
    %77 = vector.shape_cast %76 : vector<2x8x32xf32> to vector<16x32xf32>
    %78 = vector.extract_strided_slice %24 {offsets = [0, 64], sizes = [16, 32], strides = [1, 1]} : vector<16x384xf32> to vector<16x32xf32>
    %79 = vector.shape_cast %78 : vector<16x32xf32> to vector<2x8x32xf32>
    %80 = vector.extract_strided_slice %24 {offsets = [0, 192], sizes = [16, 32], strides = [1, 1]} : vector<16x384xf32> to vector<16x32xf32>
    %81 = vector.shape_cast %80 : vector<16x32xf32> to vector<2x8x32xf32>
    %82 = vector.extract_strided_slice %24 {offsets = [0, 320], sizes = [16, 32], strides = [1, 1]} : vector<16x384xf32> to vector<16x32xf32>
    %83 = vector.shape_cast %82 : vector<16x32xf32> to vector<2x8x32xf32>
    "tpu.trace_start"() <{level = 10 : i32, message = "bqd,bkd->bqk"}> : () -> ()
    %cst_31 = arith.constant dense<0.000000e+00> : vector<2x8x8xf32>
    %84 = tpu.matmul %79, %81, %cst_31 {dimension_numbers = #tpu.dot_dimension_numbers<[2], [2], [1], [1], [0, 0, 0, 1, 1, 1], [0], [0]>} : vector<2x8x32xf32>, vector<2x8x32xf32>, vector<2x8x8xf32> -> vector<2x8x8xf32>
    "tpu.trace_stop"() : () -> ()
    %85 = vector.shape_cast %30 : vector<8x8xf32> to vector<1x8x8xf32>
    %86 = vector.broadcast %85 : vector<1x8x8xf32> to vector<2x8x8xf32>
    %87 = arith.addf %84, %86 : vector<2x8x8xf32>
    %cst_32 = arith.constant dense<0xFF800000> : vector<2x8xf32>
    %88 = vector.multi_reduction <maximumf>, %87, %cst_32 [2] : vector<2x8x8xf32> to vector<2x8xf32>
    %89 = vector.shape_cast %88 : vector<2x8xf32> to vector<2x8x1xf32>
    %90 = vector.broadcast %89 : vector<2x8x1xf32> to vector<2x8x8xf32>
    %91 = arith.subf %87, %90 : vector<2x8x8xf32>
    %92 = math.exp %91 : vector<2x8x8xf32>
    %cst_33 = arith.constant dense<0.000000e+00> : vector<2x8xf32>
    %93 = vector.multi_reduction <add>, %92, %cst_33 [2] : vector<2x8x8xf32> to vector<2x8xf32>
    %94 = vector.shape_cast %93 : vector<2x8xf32> to vector<2x8x1xf32>
    %95 = tpu.reciprocal %94 {approx = true} : vector<2x8x1xf32> -> vector<2x8x1xf32>
    %96 = vector.broadcast %95 : vector<2x8x1xf32> to vector<2x8x8xf32>
    %97 = arith.mulf %92, %96 : vector<2x8x8xf32>
    "tpu.trace_start"() <{level = 10 : i32, message = "bqk,bkd->bqd"}> : () -> ()
    %cst_34 = arith.constant dense<0.000000e+00> : vector<2x8x32xf32>
    %98 = tpu.matmul %97, %83, %cst_34 {dimension_numbers = #tpu.dot_dimension_numbers<[2], [1], [1], [2], [0, 0, 0, 1, 1, 2], [0], [0]>} : vector<2x8x8xf32>, vector<2x8x32xf32>, vector<2x8x32xf32> -> vector<2x8x32xf32>
    "tpu.trace_stop"() : () -> ()
    %99 = vector.shape_cast %98 : vector<2x8x32xf32> to vector<16x32xf32>
    %100 = vector.extract_strided_slice %24 {offsets = [0, 96], sizes = [16, 32], strides = [1, 1]} : vector<16x384xf32> to vector<16x32xf32>
    %101 = vector.shape_cast %100 : vector<16x32xf32> to vector<2x8x32xf32>
    %102 = vector.extract_strided_slice %24 {offsets = [0, 224], sizes = [16, 32], strides = [1, 1]} : vector<16x384xf32> to vector<16x32xf32>
    %103 = vector.shape_cast %102 : vector<16x32xf32> to vector<2x8x32xf32>
    %104 = vector.extract_strided_slice %24 {offsets = [0, 352], sizes = [16, 32], strides = [1, 1]} : vector<16x384xf32> to vector<16x32xf32>
    %105 = vector.shape_cast %104 : vector<16x32xf32> to vector<2x8x32xf32>
    "tpu.trace_start"() <{level = 10 : i32, message = "bqd,bkd->bqk"}> : () -> ()
    %cst_35 = arith.constant dense<0.000000e+00> : vector<2x8x8xf32>
    %106 = tpu.matmul %101, %103, %cst_35 {dimension_numbers = #tpu.dot_dimension_numbers<[2], [2], [1], [1], [0, 0, 0, 1, 1, 1], [0], [0]>} : vector<2x8x32xf32>, vector<2x8x32xf32>, vector<2x8x8xf32> -> vector<2x8x8xf32>
    "tpu.trace_stop"() : () -> ()
    %107 = vector.shape_cast %32 : vector<8x8xf32> to vector<1x8x8xf32>
    %108 = vector.broadcast %107 : vector<1x8x8xf32> to vector<2x8x8xf32>
    %109 = arith.addf %106, %108 : vector<2x8x8xf32>
    %cst_36 = arith.constant dense<0xFF800000> : vector<2x8xf32>
    %110 = vector.multi_reduction <maximumf>, %109, %cst_36 [2] : vector<2x8x8xf32> to vector<2x8xf32>
    %111 = vector.shape_cast %110 : vector<2x8xf32> to vector<2x8x1xf32>
    %112 = vector.broadcast %111 : vector<2x8x1xf32> to vector<2x8x8xf32>
    %113 = arith.subf %109, %112 : vector<2x8x8xf32>
    %114 = math.exp %113 : vector<2x8x8xf32>
    %cst_37 = arith.constant dense<0.000000e+00> : vector<2x8xf32>
    %115 = vector.multi_reduction <add>, %114, %cst_37 [2] : vector<2x8x8xf32> to vector<2x8xf32>
    %116 = vector.shape_cast %115 : vector<2x8xf32> to vector<2x8x1xf32>
    %117 = tpu.reciprocal %116 {approx = true} : vector<2x8x1xf32> -> vector<2x8x1xf32>
    %118 = vector.broadcast %117 : vector<2x8x1xf32> to vector<2x8x8xf32>
    %119 = arith.mulf %114, %118 : vector<2x8x8xf32>
    "tpu.trace_start"() <{level = 10 : i32, message = "bqk,bkd->bqd"}> : () -> ()
    %cst_38 = arith.constant dense<0.000000e+00> : vector<2x8x32xf32>
    %120 = tpu.matmul %119, %105, %cst_38 {dimension_numbers = #tpu.dot_dimension_numbers<[2], [1], [1], [2], [0, 0, 0, 1, 1, 2], [0], [0]>} : vector<2x8x8xf32>, vector<2x8x32xf32>, vector<2x8x32xf32> -> vector<2x8x32xf32>
    "tpu.trace_stop"() : () -> ()
    %121 = vector.shape_cast %120 : vector<2x8x32xf32> to vector<16x32xf32>
    %122 = tpu.concatenate %55, %77, %99, %121 in 1 : vector<16x32xf32>, vector<16x32xf32>, vector<16x32xf32>, vector<16x32xf32> -> vector<16x128xf32>
    %123 = arith.truncf %122 : vector<16x128xf32> to vector<16x128xbf16>
    %cst_39 = arith.constant dense<0.000000e+00> : vector<16x128xf32>
    %124 = tpu.matmul %123, %33, %cst_39 {dimension_numbers = #tpu.dot_dimension_numbers<[1], [0], [0], [1], [0, 0, 1, 1], [], []>} : vector<16x128xbf16>, vector<128x128xbf16>, vector<16x128xf32> -> vector<16x128xf32>
    %125 = arith.addf %3, %124 : vector<16x128xf32>
    %126 = arith.mulf %125, %125 : vector<16x128xf32>
    %cst_40 = arith.constant dense<0.000000e+00> : vector<16xf32>
    %127 = vector.multi_reduction <add>, %126, %cst_40 [1] : vector<16x128xf32> to vector<16xf32>
    %128 = vector.shape_cast %127 : vector<16xf32> to vector<16x1xf32>
    %cst_41 = arith.constant 1.280000e+02 : f32
    %129 = vector.broadcast %cst_41 : f32 to vector<16x1xf32>
    %130 = arith.divf %128, %129 : vector<16x1xf32>
    %cst_42 = arith.constant 9.99999997E-7 : f32
    %131 = vector.broadcast %cst_42 : f32 to vector<16x1xf32>
    %132 = arith.addf %130, %131 : vector<16x1xf32>
    %133 = math.rsqrt %132 : vector<16x1xf32>
    %134 = vector.broadcast %133 : vector<16x1xf32> to vector<16x128xf32>
    %135 = arith.mulf %125, %134 : vector<16x128xf32>
    %136 = vector.broadcast %9 : vector<1x128xf32> to vector<16x128xf32>
    %137 = arith.mulf %135, %136 : vector<16x128xf32>
    %138 = arith.truncf %137 : vector<16x128xf32> to vector<16x128xbf16>
    %139 = vector.extract_strided_slice %5 {offsets = [0, 512], sizes = [128, 512], strides = [1, 1]} : vector<128x1024xbf16> to vector<128x512xbf16>
    %cst_43 = arith.constant dense<0.000000e+00> : vector<16x512xf32>
    %140 = tpu.matmul %138, %139, %cst_43 {dimension_numbers = #tpu.dot_dimension_numbers<[1], [0], [0], [1], [0, 0, 1, 1], [], []>} : vector<16x128xbf16>, vector<128x512xbf16>, vector<16x512xf32> -> vector<16x512xf32>
    %141 = vector.extract_strided_slice %140 {offsets = [0, 0], sizes = [16, 256], strides = [1, 1]} : vector<16x512xf32> to vector<16x256xf32>
    %142 = vector.extract_strided_slice %140 {offsets = [0, 256], sizes = [16, 256], strides = [1, 1]} : vector<16x512xf32> to vector<16x256xf32>
    %cst_44 = arith.constant 5.000000e-01 : f32
    %143 = vector.broadcast %cst_44 : f32 to vector<16x256xf32>
    %144 = arith.mulf %143, %141 : vector<16x256xf32>
    %cst_45 = arith.constant 4.471500e-02 : f32
    %145 = vector.broadcast %cst_45 : f32 to vector<16x256xf32>
    %146 = arith.mulf %145, %141 : vector<16x256xf32>
    %147 = arith.mulf %146, %141 : vector<16x256xf32>
    %148 = arith.mulf %147, %141 : vector<16x256xf32>
    %149 = arith.addf %141, %148 : vector<16x256xf32>
    %cst_46 = arith.constant 0.797884583 : f32
    %150 = vector.broadcast %cst_46 : f32 to vector<16x256xf32>
    %151 = arith.mulf %150, %149 : vector<16x256xf32>
    %152 = math.tanh %151 : vector<16x256xf32>
    %cst_47 = arith.constant 1.000000e+00 : f32
    %153 = vector.broadcast %cst_47 : f32 to vector<16x256xf32>
    %154 = arith.addf %153, %152 : vector<16x256xf32>
    %155 = arith.mulf %144, %154 : vector<16x256xf32>
    %156 = arith.mulf %155, %142 : vector<16x256xf32>
    %157 = arith.truncf %156 : vector<16x256xf32> to vector<16x256xbf16>
    %c0_48 = arith.constant 0 : index
    %c0_49 = arith.constant 0 : index
    %c0_50 = arith.constant 0 : index
    %158 = vector.load %arg5[%c0_48, %c0_49, %c0_50] : memref<1x256x128xbf16, #tpu.memory_space<vmem>>, vector<1x256x128xbf16>
    %159 = vector.shape_cast %158 : vector<1x256x128xbf16> to vector<256x128xbf16>
    %cst_51 = arith.constant dense<0.000000e+00> : vector<16x128xf32>
    %160 = tpu.matmul %157, %159, %cst_51 {dimension_numbers = #tpu.dot_dimension_numbers<[1], [0], [0], [1], [0, 0, 1, 1], [], []>} : vector<16x256xbf16>, vector<256x128xbf16>, vector<16x128xf32> -> vector<16x128xf32>
    %161 = arith.addf %125, %160 : vector<16x128xf32>
    %c0_52 = arith.constant 0 : index
    %c0_53 = arith.constant 0 : index
    %162 = vector.load %arg7[%c0_52, %c0_53] : memref<16x128xf32, #tpu.memory_space<vmem>>, vector<16x128xf32>
    tpu.vector_store %arg7[%c0_52, %c0_53], %161 {strides = array<i32>} : memref<16x128xf32, #tpu.memory_space<vmem>>, vector<16x128xf32>,
    %c1_i32 = arith.constant 1 : i32
    %163 = arith.cmpi eq, %arg0, %c1_i32 : i32
    %164 = arith.extui %163 : i1 to i32
    %c0_i32_54 = arith.constant 0 : i32
    %165 = arith.cmpi ne, %164, %c0_i32_54 : i32
    scf.if %165 {
      %c0_55 = arith.constant 0 : index
      %c0_56 = arith.constant 0 : index
      %166 = vector.load %arg6[%c0_55, %c0_56] : memref<1x128xf32, #tpu.memory_space<vmem>>, vector<1x128xf32>
      %167 = arith.mulf %161, %161 : vector<16x128xf32>
      %cst_57 = arith.constant dense<0.000000e+00> : vector<16xf32>
      %168 = vector.multi_reduction <add>, %167, %cst_57 [1] : vector<16x128xf32> to vector<16xf32>
      %169 = vector.shape_cast %168 : vector<16xf32> to vector<16x1xf32>
      %cst_58 = arith.constant 1.280000e+02 : f32
      %170 = vector.broadcast %cst_58 : f32 to vector<16x1xf32>
      %171 = arith.divf %169, %170 : vector<16x1xf32>
      %cst_59 = arith.constant 9.99999997E-7 : f32
      %172 = vector.broadcast %cst_59 : f32 to vector<16x1xf32>
      %173 = arith.addf %171, %172 : vector<16x1xf32>
      %174 = math.rsqrt %173 : vector<16x1xf32>
      %175 = vector.broadcast %174 : vector<16x1xf32> to vector<16x128xf32>
      %176 = arith.mulf %161, %175 : vector<16x128xf32>
      %177 = vector.broadcast %166 : vector<1x128xf32> to vector<16x128xf32>
      %178 = arith.mulf %176, %177 : vector<16x128xf32>
      %c0_60 = arith.constant 0 : index
      %c0_61 = arith.constant 0 : index
      %179 = vector.load %arg7[%c0_60, %c0_61] : memref<16x128xf32, #tpu.memory_space<vmem>>, vector<16x128xf32>
      tpu.vector_store %arg7[%c0_60, %c0_61], %178 {strides = array<i32>} : memref<16x128xf32, #tpu.memory_space<vmem>>, vector<16x128xf32>,
    } else {
    }
    return
  }
  func.func @transform_0(%arg0: i32) -> (i32, i32) {
    %c0_i32 = arith.constant 0 : i32
    %c0_i32_0 = arith.constant 0 : i32
    %c0_i32_1 = arith.constant 0 : i32
    return %c0_i32, %c0_i32_0 : i32, i32
  }
  func.func @transform_1(%arg0: i32) -> (i32, i32, i32) {
    %c0_i32 = arith.constant 0 : i32
    %c0_i32_0 = arith.constant 0 : i32
    %c0_i32_1 = arith.constant 0 : i32
    %c0_i32_2 = arith.constant 0 : i32
    return %c0_i32, %c0_i32_0, %c0_i32_1 : i32, i32, i32
  }
  func.func @transform_2(%arg0: i32) -> (i32, i32, i32) {
    %c0_i32 = arith.constant 0 : i32
    %c0_i32_0 = arith.constant 0 : i32
    %c0_i32_1 = arith.constant 0 : i32
    return %arg0, %c0_i32, %c0_i32_0 : i32, i32, i32
  }
  func.func @transform_3(%arg0: i32) -> (i32, i32, i32) {
    %c0_i32 = arith.constant 0 : i32
    %c0_i32_0 = arith.constant 0 : i32
    %c0_i32_1 = arith.constant 0 : i32
    return %arg0, %c0_i32, %c0_i32_0 : i32, i32, i32
  }
  func.func @transform_4(%arg0: i32) -> (i32, i32, i32) {
    %c0_i32 = arith.constant 0 : i32
    %c0_i32_0 = arith.constant 0 : i32
    %c0_i32_1 = arith.constant 0 : i32
    return %arg0, %c0_i32, %c0_i32_0 : i32, i32, i32
  }
  func.func @transform_5(%arg0: i32) -> (i32, i32) {
    %c0_i32 = arith.constant 0 : i32
    %c0_i32_0 = arith.constant 0 : i32
    %c0_i32_1 = arith.constant 0 : i32
    return %c0_i32, %c0_i32_0 : i32, i32
  }
  func.func @transform_6(%arg0: i32) -> (i32, i32) {
    %c0_i32 = arith.constant 0 : i32
    %c0_i32_0 = arith.constant 0 : i32
    %c0_i32_1 = arith.constant 0 : i32
    return %c0_i32, %c0_i32_0 : i32, i32
  }
}

</mosaic_0001>

<llo_original>
// kernel: frozen_clip_t5_forward.2
$region0: #{frozen_clip_t5_forward.2}
  #allocation0 [shape = 'u32[]', space=smem, size = 0x4, offset = 0x4, fixed_abs, tag = 'smem constant byte address 0x4 - core index']
  #allocation1 [shape = 'u32[144,128]{1,0:T(1,128)}', space=vmem, size = 0x12000, scoped, tag = 'internal scratch']
  %s0 = inlined_call_operand.vmem [shape: f32[16,128], index: 0, kind: input, shape index: {}, may-alias: {0,6}]
  %s1 = inlined_call_operand.vmem [shape: f32[8,8], index: 1, kind: input, shape index: {}]
  %s2 = inlined_call_operand.vmem [shape: f32[2,8,512], index: 2, kind: input, shape index: {}]
  %s3 = inlined_call_operand.hbm [shape: bf16[2,128,1024], index: 3, kind: input, shape index: {}]
  %s4 = inlined_call_operand.hbm [shape: bf16[2,512,128], index: 4, kind: input, shape index: {}]
  %s5 = inlined_call_operand.vmem [shape: f32[2,128], index: 5, kind: input, shape index: {}]
  %s6 = inlined_call_operand.vmem [shape: f32[16,128], index: 6, kind: output, shape index: {}, may-alias: {0,6}]
  %s7 = sld [smem:[#allocation0]]
  $region73: #{frozen_clip_t5_forward.2} parent=0
    _
  %s9 = ssub.s32 1, %s7
  %s10 = scalar_select 0, %s9, %s7
  $region1: #{frozen_clip_t5_forward.2} parent=0
    #allocation2 [shape = 'u8[524288]{0}', space=vmem, size = 0x80000, scoped, tag = 'input window, operand 3']
    #allocation3 [shape = 's32[2]{0}', space=sflag, size = 0x8, scoped, tag = 'scoped memory for frozen_clip_t5_forward.2']
    #allocation4 [shape = 'u8[262144]{0}', space=vmem, size = 0x40000, scoped, tag = 'input window, operand 4']
    #allocation5 [shape = 's32[2]{0}', space=sflag, size = 0x8, scoped, tag = 'scoped memory for frozen_clip_t5_forward.2']
    %11 = vsyncpa [#allocation3], 0
    %s12 = scalar_lea.sflag [#allocation3], 1
    %13 = vsyncpa %s12, 0
    %14 = vsyncpa [#allocation5], 0
    %s15 = scalar_lea.sflag [#allocation5], 1
    %16 = vsyncpa %s15, 0
    loop: start=0, step=1, limit=4
    $region2: #{frozen_clip_t5_forward.2} parent=1 // loop_pre_header
      _
    $region3: #{frozen_clip_t5_forward.2} parent=1 // loop_header
      %s18 = sphi 0, %s22
      %p19 = scmp.ge.s32.totalorder %s18, 4
      %s26 = sphi 0, %s26
      %s28 = sphi 0, %s26
      %s29 = sphi 0, %s28
      %s43 = sphi 0, %s29
      %s47 = sphi 0, %s47
      %s49 = sphi 0, %s47
      %s50 = sphi 0, %s49
      %s64 = sphi 0, %s50
      %s70 = sphi 0, %s72
      %s73 = sphi 0, %s70
      %s74 = sphi 0, %s73
      %s90 = sphi 0, %s74
      %s96 = sphi 0, %s98
      %s99 = sphi 0, %s96
      %s100 = sphi 0, %s99
      %s116 = sphi 0, %s100
      %s122 = sphi 0, %s124
      %s125 = sphi 0, %s122
      %s126 = sphi 0, %s125
      %s142 = sphi 0, %s126
      %s146 = sphi 0, %s146
      %s148 = sphi 0, %s146
      %s149 = sphi 0, %s148
      %s163 = sphi 0, %s149
      %s167 = sphi 0, %s167
      %s169 = sphi 0, %s167
      %s170 = sphi 0, %s169
      %s184 = sphi 0, %s170
    $region4: #{frozen_clip_t5_forward.2} parent=1 // loop_header_branch
      %21 = sbr.rel (%p19) target = $region8
    $region5: #{frozen_clip_t5_forward.2} parent=1 // loop_body
      %s23 = ssub.s32 %s18, 1
      %s24 = ssub.s32 %s18, 2
      %s25 = sadd.s32 %s18, 1
      %s27 = sadd.s32 %s26, 1
      %p30 = scmp.eq.s32.totalorder %s18, 1
      %p31 = scmp.ne.s32.totalorder %s26, %s28
      %p32 = scmp.eq.s32.totalorder %s18, 0
      %p33 = por %p31, %p32
      %p34 = scmp.ne.s32.totalorder %s26, %s28
      %p35 = scmp.eq.s32.totalorder %s23, 1
      %p36 = por %p34, %p35
      %p37 = scmp.ne.s32.totalorder %s28, %s29
      %p38 = scmp.eq.s32.totalorder %s23, 0
      %p39 = por %p37, %p38
      %p40 = scmp.ne.s32.totalorder %s28, %s29
      %p41 = scmp.eq.s32.totalorder %s24, 1
      %p42 = por %p40, %p41
      %p44 = scmp.ne.s32.totalorder %s29, %s43
      %p45 = scmp.eq.s32.totalorder %s24, 0
      %p46 = por %p44, %p45
      %s48 = sadd.s32 %s47, 1
      %p51 = scmp.eq.s32.totalorder %s18, 1
      %p52 = scmp.ne.s32.totalorder %s47, %s49
      %p53 = scmp.eq.s32.totalorder %s18, 0
      %p54 = por %p52, %p53
      %p55 = scmp.ne.s32.totalorder %s47, %s49
      %p56 = scmp.eq.s32.totalorder %s23, 1
      %p57 = por %p55, %p56
      %p58 = scmp.ne.s32.totalorder %s49, %s50
      %p59 = scmp.eq.s32.totalorder %s23, 0
      %p60 = por %p58, %p59
      %p61 = scmp.ne.s32.totalorder %s49, %s50
      %p62 = scmp.eq.s32.totalorder %s24, 1
      %p63 = por %p61, %p62
      %p65 = scmp.ne.s32.totalorder %s50, %s64
      %p66 = scmp.eq.s32.totalorder %s24, 0
      %p67 = por %p65, %p66
      %s68 = ssub.s32 %s18, %s25
      %p69 = scmp.eq.s32.totalorder %s68, 0
      %s71 = sadd.s32 %s70, 1
      %s72 = scalar_select %p69, %s70, %s71
      %p75 = pneg %p69
      %p76 = scmp.eq.s32.totalorder %s18, 1
      %p77 = por %p75, %p76
      %p78 = scmp.ne.s32.totalorder %s70, %s73
      %p79 = scmp.eq.s32.totalorder %s18, 0
      %p80 = por %p78, %p79
      %p81 = scmp.ne.s32.totalorder %s70, %s73
      %p82 = scmp.eq.s32.totalorder %s23, 1
      %p83 = por %p81, %p82
      %p84 = scmp.ne.s32.totalorder %s73, %s74
      %p85 = scmp.eq.s32.totalorder %s23, 0
      %p86 = por %p84, %p85
      %p87 = scmp.ne.s32.totalorder %s73, %s74
      %p88 = scmp.eq.s32.totalorder %s24, 1
      %p89 = por %p87, %p88
      %p91 = scmp.ne.s32.totalorder %s74, %s90
      %p92 = scmp.eq.s32.totalorder %s24, 0
      %p93 = por %p91, %p92
      %s94 = ssub.s32 %s18, %s25
      %p95 = scmp.eq.s32.totalorder %s94, 0
      %s97 = sadd.s32 %s96, 1
      %s98 = scalar_select %p95, %s96, %s97
      %p101 = pneg %p95
      %p102 = scmp.eq.s32.totalorder %s18, 1
      %p103 = por %p101, %p102
      %p104 = scmp.ne.s32.totalorder %s96, %s99
      %p105 = scmp.eq.s32.totalorder %s18, 0
      %p106 = por %p104, %p105
      %p107 = scmp.ne.s32.totalorder %s96, %s99
      %p108 = scmp.eq.s32.totalorder %s23, 1
      %p109 = por %p107, %p108
      %p110 = scmp.ne.s32.totalorder %s99, %s100
      %p111 = scmp.eq.s32.totalorder %s23, 0
      %p112 = por %p110, %p111
      %p113 = scmp.ne.s32.totalorder %s99, %s100
      %p114 = scmp.eq.s32.totalorder %s24, 1
      %p115 = por %p113, %p114
      %p117 = scmp.ne.s32.totalorder %s100, %s116
      %p118 = scmp.eq.s32.totalorder %s24, 0
      %p119 = por %p117, %p118
      %s120 = ssub.s32 %s18, %s25
      %p121 = scmp.eq.s32.totalorder %s120, 0
      %s123 = sadd.s32 %s122, 1
      %s124 = scalar_select %p121, %s122, %s123
      %p127 = pneg %p121
      %p128 = scmp.eq.s32.totalorder %s18, 1
      %p129 = por %p127, %p128
      %p130 = scmp.ne.s32.totalorder %s122, %s125
      %p131 = scmp.eq.s32.totalorder %s18, 0
      %p132 = por %p130, %p131
      %p133 = scmp.ne.s32.totalorder %s122, %s125
      %p134 = scmp.eq.s32.totalorder %s23, 1
      %p135 = por %p133, %p134
      %p136 = scmp.ne.s32.totalorder %s125, %s126
      %p137 = scmp.eq.s32.totalorder %s23, 0
      %p138 = por %p136, %p137
      %p139 = scmp.ne.s32.totalorder %s125, %s126
      %p140 = scmp.eq.s32.totalorder %s24, 1
      %p141 = por %p139, %p140
      %p143 = scmp.ne.s32.totalorder %s126, %s142
      %p144 = scmp.eq.s32.totalorder %s24, 0
      %p145 = por %p143, %p144
      %s147 = sadd.s32 %s146, 1
      %p150 = scmp.eq.s32.totalorder %s18, 1
      %p151 = scmp.ne.s32.totalorder %s146, %s148
      %p152 = scmp.eq.s32.totalorder %s18, 0
      %p153 = por %p151, %p152
      %p154 = scmp.ne.s32.totalorder %s146, %s148
      %p155 = scmp.eq.s32.totalorder %s23, 1
      %p156 = por %p154, %p155
      %p157 = scmp.ne.s32.totalorder %s148, %s149
      %p158 = scmp.eq.s32.totalorder %s23, 0
      %p159 = por %p157, %p158
      %p160 = scmp.ne.s32.totalorder %s148, %s149
      %p161 = scmp.eq.s32.totalorder %s24, 1
      %p162 = por %p160, %p161
      %p164 = scmp.ne.s32.totalorder %s149, %s163
      %p165 = scmp.eq.s32.totalorder %s24, 0
      %p166 = por %p164, %p165
      %s168 = sadd.s32 %s167, 1
      %p171 = scmp.eq.s32.totalorder %s18, 1
      %p172 = scmp.ne.s32.totalorder %s167, %s169
      %p173 = scmp.eq.s32.totalorder %s18, 0
      %p174 = por %p172, %p173
      %p175 = scmp.ne.s32.totalorder %s167, %s169
      %p176 = scmp.eq.s32.totalorder %s23, 1
      %p177 = por %p175, %p176
      %p178 = scmp.ne.s32.totalorder %s169, %s170
      %p179 = scmp.eq.s32.totalorder %s23, 0
      %p180 = por %p178, %p179
      %p181 = scmp.ne.s32.totalorder %s169, %s170
      %p182 = scmp.eq.s32.totalorder %s24, 1
      %p183 = por %p181, %p182
      %p185 = scmp.ne.s32.totalorder %s170, %s184
      %p186 = scmp.eq.s32.totalorder %s24, 0
      %p187 = por %p185, %p186
      %p188 = scmp.le.s32.totalorder 1, %s18
      %p189 = scmp.lt.s32.totalorder %s18, 3
      %p190 = pnand %p188, %p189
      %p191 = pneg %p190
      // Predicated region
      $region9: #{frozen_clip_t5_forward.2} parent=5 // pred_check
        _
      $region10: #{frozen_clip_t5_forward.2} parent=5 // pred_check_branch
        %193 = sbr.rel (%p190) target = $region12
      $region11: #{frozen_clip_t5_forward.2} parent=5 // pred_region
        %s194 = ssub.s32 %s18, 1
        // Predicated region
        $region13: #{frozen_clip_t5_forward.2} parent=11 // pred_check
          %p195 = pneg %p39
        $region14: #{frozen_clip_t5_forward.2} parent=11 // pred_check_branch
          %197 = sbr.rel (%p195) target = $region16
        $region15: #{frozen_clip_t5_forward.2} parent=11 // pred_region
          _
        $region16: #{frozen_clip_t5_forward.2} parent=11 // pred_fallthru
          _
        // Predicated region
        $region17: #{frozen_clip_t5_forward.2} parent=11 // pred_check
          %p198 = pneg %p60
        $region18: #{frozen_clip_t5_forward.2} parent=11 // pred_check_branch
          %200 = sbr.rel (%p198) target = $region20
        $region19: #{frozen_clip_t5_forward.2} parent=11 // pred_region
          _
        $region20: #{frozen_clip_t5_forward.2} parent=11 // pred_fallthru
          _
        // Predicated region
        $region21: #{frozen_clip_t5_forward.2} parent=11 // pred_check
          %p201 = pneg %p159
        $region22: #{frozen_clip_t5_forward.2} parent=11 // pred_check_branch
          %203 = sbr.rel (%p201) target = $region24
        $region23: #{frozen_clip_t5_forward.2} parent=11 // pred_region
          _
        $region24: #{frozen_clip_t5_forward.2} parent=11 // pred_fallthru
          _
      $region12: #{frozen_clip_t5_forward.2} parent=5 // pred_fallthru
        _
      %p204 = scmp.lt.s32.totalorder %s18, 2
      // Predicated region
      $region25: #{frozen_clip_t5_forward.2} parent=5 // pred_check
        %p205 = pneg %p204
      $region26: #{frozen_clip_t5_forward.2} parent=5 // pred_check_branch
        %207 = sbr.rel (%p205) target = $region28
      $region27: #{frozen_clip_t5_forward.2} parent=5 // pred_region
        // Predicated region
        $region29: #{frozen_clip_t5_forward.2} parent=27 // pred_check
          %p208 = pneg %p80
        $region30: #{frozen_clip_t5_forward.2} parent=27 // pred_check_branch
          %210 = sbr.rel (%p208) target = $region32
        $region31: #{frozen_clip_t5_forward.2} parent=27 // pred_region
          %p211 = scmp.lt.s32.totalorder %s18, 1
          %s212 = scalar_select %p211, %s18, 1
          %s213 = smul.addr %s212, 4
          %s214 = smul.addr %s213, 8
          %s215 = scalar_lea.vmem %s2, %s214
        $region32: #{frozen_clip_t5_forward.2} parent=27 // pred_fallthru
          _
        // Predicated region
        $region33: #{frozen_clip_t5_forward.2} parent=27 // pred_check
          %p216 = pneg %p106
        $region34: #{frozen_clip_t5_forward.2} parent=27 // pred_check_branch
          %218 = sbr.rel (%p216) target = $region36
        $region35: #{frozen_clip_t5_forward.2} parent=27 // pred_region
          %s219 = sand.u32 %s96, 1
          %s220 = scalar_lea.sflag [#allocation3], %s219
          %s221 = sand.u32 %s96, 1
          %s222 = smul.addr %s221, 512
          %s223 = scalar_lea.vmem [#allocation2], %s222
          %s225 = ssub.s32 8192, 8192
          %226 = vsyncadd %s220, %s225
          %s227 = smul.addr %s18, 128
          %s228 = smul.addr %s227, 64
          %s229 = scalar_lea.hbm %s3, %s228
          %s230 = sshll.u32 %s223, 4
          %s231 = int_to_ptr.vmem [resolvable:$true] %s230
          %236 = dma.hbm_to_vmem [thread:$0]  %s229, 8192, %s231, %s220, 512, 512, 32
        $region36: #{frozen_clip_t5_forward.2} parent=27 // pred_fallthru
          _
        // Predicated region
        $region37: #{frozen_clip_t5_forward.2} parent=27 // pred_check
          %p237 = pneg %p132
        $region38: #{frozen_clip_t5_forward.2} parent=27 // pred_check_branch
          %239 = sbr.rel (%p237) target = $region40
        $region39: #{frozen_clip_t5_forward.2} parent=27 // pred_region
          %s240 = sand.u32 %s122, 1
          %s241 = scalar_lea.sflag [#allocation5], %s240
          %s242 = sand.u32 %s122, 1
          %s243 = smul.addr %s242, 256
          %s244 = scalar_lea.vmem [#allocation4], %s243
          %s246 = ssub.s32 4096, 4096
          %247 = vsyncadd %s241, %s246
          %s248 = smul.addr %s18, 64
          %s249 = smul.addr %s248, 64
          %s250 = scalar_lea.hbm %s4, %s249
          %s251 = sshll.u32 %s244, 4
          %s252 = int_to_ptr.vmem [resolvable:$true] %s251
          %257 = dma.hbm_to_vmem [thread:$0]  %s250, 4096, %s252, %s241, 64, 64, 4
        $region40: #{frozen_clip_t5_forward.2} parent=27 // pred_fallthru
          _
      $region28: #{frozen_clip_t5_forward.2} parent=5 // pred_fallthru
        _
      %p258 = scmp.le.s32.totalorder 1, %s18
      %p259 = scmp.lt.s32.totalorder %s18, 3
      %p260 = pnand %p258, %p259
      %p261 = pneg %p260
      // Predicated region
      $region41: #{frozen_clip_t5_forward.2} parent=5 // pred_check
        _
      $region42: #{frozen_clip_t5_forward.2} parent=5 // pred_check_branch
        %263 = sbr.rel (%p260) target = $region44
      $region43: #{frozen_clip_t5_forward.2} parent=5 // pred_region
        %s264 = ssub.s32 %s18, 1
        %s265 = sand.u32 %s99, 1
        %s266 = scalar_lea.sflag [#allocation3], %s265
        %s267 = sand.u32 %s99, 1
        %s268 = smul.addr %s267, 512
        %s269 = scalar_lea.vmem [#allocation2], %s268
        // Predicated region
        $region45: #{frozen_clip_t5_forward.2} parent=43 // pred_check
          %p270 = pneg %p112
        $region46: #{frozen_clip_t5_forward.2} parent=43 // pred_check_branch
          %272 = sbr.rel (%p270) target = $region48
        $region47: #{frozen_clip_t5_forward.2} parent=43 // pred_region
          %273 = dma.done %s266, 8192
        $region48: #{frozen_clip_t5_forward.2} parent=43 // pred_fallthru
          _
        %s274 = sand.u32 %s125, 1
        %s275 = scalar_lea.sflag [#allocation5], %s274
        %s276 = sand.u32 %s125, 1
        %s277 = smul.addr %s276, 256
        %s278 = scalar_lea.vmem [#allocation4], %s277
        // Predicated region
        $region49: #{frozen_clip_t5_forward.2} parent=43 // pred_check
          %p279 = pneg %p138
        $region50: #{frozen_clip_t5_forward.2} parent=43 // pred_check_branch
          %281 = sbr.rel (%p279) target = $region52
        $region51: #{frozen_clip_t5_forward.2} parent=43 // pred_region
          %282 = dma.done %s275, 4096
        $region52: #{frozen_clip_t5_forward.2} parent=43 // pred_fallthru
          _
        %p283 = pneg %p39
        %p284 = pneg %p36
        %p285 = pneg %p60
        %p286 = pneg %p57
        %p287 = scmp.lt.s32.totalorder %s23, 1
        %s288 = scalar_select %p287, %s23, 1
        %s289 = smul.addr %s288, 4
        %s290 = smul.addr %s289, 8
        %s291 = scalar_lea.vmem %s2, %s290
        %p292 = pneg %p86
        %p293 = pneg %p83
        %s294 = sand.u32 %s99, 1
        %s295 = scalar_lea.sflag [#allocation3], %s294
        %s296 = sand.u32 %s99, 1
        %s297 = smul.addr %s296, 512
        %s298 = scalar_lea.vmem [#allocation2], %s297
        %p299 = pneg %p112
        %p300 = pneg %p109
        %s301 = sand.u32 %s125, 1
        %s302 = scalar_lea.sflag [#allocation5], %s301
        %s303 = sand.u32 %s125, 1
        %s304 = smul.addr %s303, 256
        %s305 = scalar_lea.vmem [#allocation4], %s304
        %p306 = pneg %p138
        %p307 = pneg %p135
        %p308 = pneg %p159
        %p309 = pneg %p156
        %p310 = pneg %p180
        %p311 = pneg %p177
        %p312 = scmp.lt.s32.totalorder %s23, 1
        %s313 = scalar_select %p312, %s23, 1
        %s314 = smul.addr %s313, 4
        %s315 = smul.addr %s314, 8
        %s316 = scalar_lea.vmem %s2, %s315
        %p318 = scmp.eq.s32.totalorder %s23, 0
        // Predicated region
        $region53: #{frozen_clip_t5_forward.2} parent=43 // pred_check
          %p319 = pneg %p318
        $region54: #{frozen_clip_t5_forward.2} parent=43 // pred_check_branch
          %321 = sbr.rel (%p319) target = $region56
        $region55: #{frozen_clip_t5_forward.2} parent=43 // pred_region
          %v322 = vld [vmem:[%s0] sm:$0xff]
          %v323 = vld [vmem:[%s0 + $0x8] sm:$0xff]
          %324 = vst [vmem:[%s6] sm:$0xff] %v322
          %325 = vst [vmem:[%s6 + $0x8] sm:$0xff] %v323
        $region56: #{frozen_clip_t5_forward.2} parent=43 // pred_fallthru
          _
        %v326 = vld [vmem:[%s6] sm:$0xff]
        %v327 = vld [vmem:[%s6 + $0x8] sm:$0xff]
        %v328 = vld [vmem:[%s269] sm:$0xff]
        %v329 = vld [vmem:[%s269 + $0x8] sm:$0xff]
        %v330 = vld [vmem:[%s269 + $0x10] sm:$0xff]
        %v331 = vld [vmem:[%s269 + $0x18] sm:$0xff]
        %v332 = vld [vmem:[%s269 + $0x20] sm:$0xff]
        %v333 = vld [vmem:[%s269 + $0x28] sm:$0xff]
        %v334 = vld [vmem:[%s269 + $0x30] sm:$0xff]
        %v335 = vld [vmem:[%s269 + $0x38] sm:$0xff]
        %v336 = vld [vmem:[%s269 + $0x40] sm:$0xff]
        %v337 = vld [vmem:[%s269 + $0x48] sm:$0xff]
        %v338 = vld [vmem:[%s269 + $0x50] sm:$0xff]
        %v339 = vld [vmem:[%s269 + $0x58] sm:$0xff]
        %v340 = vld [vmem:[%s269 + $0x60] sm:$0xff]
        %v341 = vld [vmem:[%s269 + $0x68] sm:$0xff]
        %v342 = vld [vmem:[%s269 + $0x70] sm:$0xff]
        %v343 = vld [vmem:[%s269 + $0x78] sm:$0xff]
        %v344 = vld [vmem:[%s269 + $0x80] sm:$0xff]
        %v345 = vld [vmem:[%s269 + $0x88] sm:$0xff]
        %v346 = vld [vmem:[%s269 + $0x90] sm:$0xff]
        %v347 = vld [vmem:[%s269 + $0x98] sm:$0xff]
        %v348 = vld [vmem:[%s269 + $0xa0] sm:$0xff]
        %v349 = vld [vmem:[%s269 + $0xa8] sm:$0xff]
        %v350 = vld [vmem:[%s269 + $0xb0] sm:$0xff]
        %v351 = vld [vmem:[%s269 + $0xb8] sm:$0xff]
        %v352 = vld [vmem:[%s269 + $0xc0] sm:$0xff]
        %v353 = vld [vmem:[%s269 + $0xc8] sm:$0xff]
        %v354 = vld [vmem:[%s269 + $0xd0] sm:$0xff]
        %v355 = vld [vmem:[%s269 + $0xd8] sm:$0xff]
        %v356 = vld [vmem:[%s269 + $0xe0] sm:$0xff]
        %v357 = vld [vmem:[%s269 + $0xe8] sm:$0xff]
        %v358 = vld [vmem:[%s269 + $0xf0] sm:$0xff]
        %v359 = vld [vmem:[%s269 + $0xf8] sm:$0xff]
        %v360 = vld [vmem:[%s269 + $0x100] sm:$0xff]
        %v361 = vld [vmem:[%s269 + $0x108] sm:$0xff]
        %v362 = vld [vmem:[%s269 + $0x110] sm:$0xff]
        %v363 = vld [vmem:[%s269 + $0x118] sm:$0xff]
        %v364 = vld [vmem:[%s269 + $0x120] sm:$0xff]
        %v365 = vld [vmem:[%s269 + $0x128] sm:$0xff]
        %v366 = vld [vmem:[%s269 + $0x130] sm:$0xff]
        %v367 = vld [vmem:[%s269 + $0x138] sm:$0xff]
        %v368 = vld [vmem:[%s269 + $0x140] sm:$0xff]
        %v369 = vld [vmem:[%s269 + $0x148] sm:$0xff]
        %v370 = vld [vmem:[%s269 + $0x150] sm:$0xff]
        %v371 = vld [vmem:[%s269 + $0x158] sm:$0xff]
        %v372 = vld [vmem:[%s269 + $0x160] sm:$0xff]
        %v373 = vld [vmem:[%s269 + $0x168] sm:$0xff]
        %v374 = vld [vmem:[%s269 + $0x170] sm:$0xff]
        %v375 = vld [vmem:[%s269 + $0x178] sm:$0xff]
        %v376 = vld [vmem:[%s269 + $0x180] sm:$0xff]
        %v377 = vld [vmem:[%s269 + $0x188] sm:$0xff]
        %v378 = vld [vmem:[%s269 + $0x190] sm:$0xff]
        %v379 = vld [vmem:[%s269 + $0x198] sm:$0xff]
        %v380 = vld [vmem:[%s269 + $0x1a0] sm:$0xff]
        %v381 = vld [vmem:[%s269 + $0x1a8] sm:$0xff]
        %v382 = vld [vmem:[%s269 + $0x1b0] sm:$0xff]
        %v383 = vld [vmem:[%s269 + $0x1b8] sm:$0xff]
        %v384 = vld [vmem:[%s269 + $0x1c0] sm:$0xff]
        %v385 = vld [vmem:[%s269 + $0x1c8] sm:$0xff]
        %v386 = vld [vmem:[%s269 + $0x1d0] sm:$0xff]
        %v387 = vld [vmem:[%s269 + $0x1d8] sm:$0xff]
        %v388 = vld [vmem:[%s269 + $0x1e0] sm:$0xff]
        %v389 = vld [vmem:[%s269 + $0x1e8] sm:$0xff]
        %v390 = vld [vmem:[%s269 + $0x1f0] sm:$0xff]
        %v391 = vld [vmem:[%s269 + $0x1f8] sm:$0xff]
        %v392 = vld [vmem:[%s316] sm:$0xff]
        %v393 = vld [vmem:[%s316 + $0x8] sm:$0xff]
        %v394 = vld [vmem:[%s316 + $0x10] sm:$0xff]
        %v395 = vld [vmem:[%s316 + $0x18] sm:$0xff]
        %396 = vadd.xlane.f32.xlu0 %v326
        %v397 = vpop.xlane.xlu0 %396
        %398 = vadd.xlane.f32.xlu0 %v327
        %v399 = vpop.xlane.xlu0 %398
        %v400 = vrcp.pop 128.0
        %v401 = vmul.f32 %v397, %v400
        %v402 = vmul.f32 %v399, %v400
        %v403 = vsub.f32 %v326, %v401
        %v404 = vsub.f32 %v327, %v402
        %v405 = vmul.f32 %v403, %v403
        %v406 = vmul.f32 %v404, %v404
        %407 = vadd.xlane.f32.xlu0 %v405
        %v408 = vpop.xlane.xlu0 %407
        %409 = vadd.xlane.f32.xlu0 %v406
        %v410 = vpop.xlane.xlu0 %409
        %v411 = vmul.f32 %v408, %v400
        %v412 = vmul.f32 %v410, %v400
        %v413 = vadd.f32 %v411, 1e-05
        %v414 = vadd.f32 %v412, 1e-05
        %v415 = vrsqrt.pop %v413
        %v416 = vrsqrt.pop %v414
        %v417 = vmul.f32 %v403, %v415
        %v418 = vmul.f32 %v404, %v416
        %v419 = vlaneseq
        %v420 = vshrl.u32 %v419, 7
        %v421 = vsub.s32 0, %v420
        %v422 = vrot.slane %v392, %v421
        %v423 = vmul.f32 %v417, %v422
        %v424 = vmul.f32 %v418, %v422
        %v425 = vlaneseq
        %v426 = vshrl.u32 %v425, 7
        %v427 = vsub.s32 1, %v426
        %v428 = vrot.slane %v392, %v427
        %v429 = vadd.f32 %v423, %v428
        %v430 = vadd.f32 %v424, %v428
        %v431 = vpack.c.bf16 %v430, %v429
        %v432 = vlaneseq
        %v433 = vshrl.u32 %v432, 7
        %v434 = vsub.s32 6, %v433
        %v435 = vrot.slane %v392, %v434
        %v436 = vlaneseq
        %v437 = vshrl.u32 %v436, 7
        %v438 = vsub.s32 6, %v437
        %v439 = vrot.slane %v393, %v438
        %v440 = vlaneseq
        %v441 = vshrl.u32 %v440, 7
        %v442 = vsub.s32 6, %v441
        %v443 = vrot.slane %v394, %v442
        %v476 = vunpack.c.l.b16 %v328
        %v477 = vunpack.c.h.b16 %v328
        %v478 = vunpack.c.l.b16 %v329
        %v479 = vunpack.c.l.b16 %v332
        %v480 = vunpack.c.h.b16 %v332
        %v481 = vunpack.c.l.b16 %v333
        %v482 = vunpack.c.l.b16 %v336
        %v483 = vunpack.c.h.b16 %v336
        %v484 = vunpack.c.l.b16 %v337
        %v485 = vunpack.c.l.b16 %v340
        %v486 = vunpack.c.h.b16 %v340
        %v487 = vunpack.c.l.b16 %v341
        %v488 = vunpack.c.l.b16 %v344
        %v489 = vunpack.c.h.b16 %v344
        %v490 = vunpack.c.l.b16 %v345
        %v491 = vunpack.c.l.b16 %v348
        %v492 = vunpack.c.h.b16 %v348
        %v493 = vunpack.c.l.b16 %v349
        %v494 = vunpack.c.l.b16 %v352
        %v495 = vunpack.c.h.b16 %v352
        %v496 = vunpack.c.l.b16 %v353
        %v497 = vunpack.c.l.b16 %v356
        %v498 = vunpack.c.h.b16 %v356
        %v499 = vunpack.c.l.b16 %v357
        %v500 = vunpack.c.l.b16 %v360
        %v501 = vunpack.c.h.b16 %v360
        %v502 = vunpack.c.l.b16 %v361
        %v503 = vunpack.c.l.b16 %v364
        %v504 = vunpack.c.h.b16 %v364
        %v505 = vunpack.c.l.b16 %v365
        %v506 = vunpack.c.l.b16 %v368
        %v507 = vunpack.c.h.b16 %v368
        %v508 = vunpack.c.l.b16 %v369
        %v509 = vunpack.c.l.b16 %v372
        %v510 = vunpack.c.h.b16 %v372
        %v511 = vunpack.c.l.b16 %v373
        %v512 = vunpack.c.l.b16 %v376
        %v513 = vunpack.c.h.b16 %v376
        %v514 = vunpack.c.l.b16 %v377
        %v515 = vunpack.c.l.b16 %v380
        %v516 = vunpack.c.h.b16 %v380
        %v517 = vunpack.c.l.b16 %v381
        %v518 = vunpack.c.l.b16 %v384
        %v519 = vunpack.c.h.b16 %v384
        %v520 = vunpack.c.l.b16 %v385
        %v521 = vunpack.c.l.b16 %v388
        %v522 = vunpack.c.h.b16 %v388
        %v523 = vunpack.c.l.b16 %v389
        %v524 = vpack.c.b16 %v479, %v476
        %v525 = vpack.c.b16 %v480, %v477
        %v526 = vpack.c.b16 %v481, %v478
        %v527 = vpack.c.b16 %v485, %v482
        %v528 = vpack.c.b16 %v486, %v483
        %v529 = vpack.c.b16 %v487, %v484
        %v530 = vpack.c.b16 %v491, %v488
        %v531 = vpack.c.b16 %v492, %v489
        %v532 = vpack.c.b16 %v493, %v490
        %v533 = vpack.c.b16 %v497, %v494
        %v534 = vpack.c.b16 %v498, %v495
        %v535 = vpack.c.b16 %v499, %v496
        %v536 = vpack.c.b16 %v503, %v500
        %v537 = vpack.c.b16 %v504, %v501
        %v538 = vpack.c.b16 %v505, %v502
        %v539 = vpack.c.b16 %v509, %v506
        %v540 = vpack.c.b16 %v510, %v507
        %v541 = vpack.c.b16 %v511, %v508
        %v542 = vpack.c.b16 %v515, %v512
        %v543 = vpack.c.b16 %v516, %v513
        %v544 = vpack.c.b16 %v517, %v514
        %v545 = vpack.c.b16 %v521, %v518
        %v546 = vpack.c.b16 %v522, %v519
        %v547 = vpack.c.b16 %v523, %v520
        %572 = vmatprep.subr.bf16.mxu0 %v525
        %573 = vmatpush1.bf16.msra.mxu0 %v524
        %574 = vmatprep.subr.bf16.mxu0 %v528
        %575 = vmatpush1.bf16.msra.mxu0 %v527
        %576 = vmatprep.subr.bf16.mxu0 %v531
        %577 = vmatpush1.bf16.msra.mxu0 %v530
        %578 = vmatprep.subr.bf16.mxu0 %v534
        %579 = vmatpush1.bf16.msra.mxu0 %v533
        %580 = vmatprep.subr.bf16.mxu0 %v537
        %581 = vmatpush1.bf16.msra.mxu0 %v536
        %582 = vmatprep.subr.bf16.mxu0 %v540
        %583 = vmatpush1.bf16.msra.mxu0 %v539
        %584 = vmatprep.subr.bf16.mxu0 %v543
        %585 = vmatpush1.bf16.msra.mxu0 %v542
        %586 = vmatprep.subr.bf16.mxu0 %v546
        %587 = vmatpush1.bf16.msra.mxu0 %v545
        %588 = vmatprep.subr.bf16.mxu0 0
        %589 = vmatpush1.bf16.msra.mxu0 0
        %590 = vmatprep.subr.bf16.mxu0 0
        %591 = vmatpush1.bf16.msra.mxu0 0
        %592 = vmatprep.subr.bf16.mxu0 0
        %593 = vmatpush1.bf16.msra.mxu0 0
        %594 = vmatprep.subr.bf16.mxu0 0
        %595 = vmatpush1.bf16.msra.mxu0 0
        %596 = vmatprep.subr.bf16.mxu0 0
        %597 = vmatpush1.bf16.msra.mxu0 0
        %598 = vmatprep.subr.bf16.mxu0 0
        %599 = vmatpush1.bf16.msra.mxu0 0
        %600 = vmatprep.subr.bf16.mxu0 0
        %601 = vmatpush1.bf16.msra.mxu0 0
        %602 = vmatprep.subr.bf16.mxu0 0
        %603 = vmatpush1.bf16.msra.mxu0 0
        %604 = vmatprep.mubr.bf16.mxu0 0
        %605 = vmatmul.mubr.bf16.gmra.mrb[0].mxu0 %v431
        %v606 = vpop.f32.mrb[0].mxu0
        %v607 = vadd.f32 %v435, %v606
        %v608 = vpop.f32.mrb[0].mxu0
        %v609 = vadd.f32 %v439, %v608
        %v610 = vpop.f32.mrb[0].mxu0
        %v611 = vadd.f32 %v435, %v610
        %v612 = vpop.f32.mrb[0].mxu0
        %v613 = vadd.f32 %v439, %v612
        %614 = vdwg.mxu0
        %615 = vmatprep.subr.bf16.mxu0 0
        %616 = vmatpush1.bf16.msra.mxu0 %v526
        %617 = vmatprep.subr.bf16.mxu0 0
        %618 = vmatpush1.bf16.msra.mxu0 %v529
        %619 = vmatprep.subr.bf16.mxu0 0
        %620 = vmatpush1.bf16.msra.mxu0 %v532
        %621 = vmatprep.subr.bf16.mxu0 0
        %622 = vmatpush1.bf16.msra.mxu0 %v535
        %623 = vmatprep.subr.bf16.mxu0 0
        %624 = vmatpush1.bf16.msra.mxu0 %v538
        %625 = vmatprep.subr.bf16.mxu0 0
        %626 = vmatpush1.bf16.msra.mxu0 %v541
        %627 = vmatprep.subr.bf16.mxu0 0
        %628 = vmatpush1.bf16.msra.mxu0 %v544
        %629 = vmatprep.subr.bf16.mxu0 0
        %630 = vmatpush1.bf16.msra.mxu0 %v547
        %631 = vmatprep.subr.bf16.mxu0 0
        %632 = vmatpush1.bf16.msra.mxu0 0
        %633 = vmatprep.subr.bf16.mxu0 0
        %634 = vmatpush1.bf16.msra.mxu0 0
        %635 = vmatprep.subr.bf16.mxu0 0
        %636 = vmatpush1.bf16.msra.mxu0 0
        %637 = vmatprep.subr.bf16.mxu0 0
        %638 = vmatpush1.bf16.msra.mxu0 0
        %639 = vmatprep.subr.bf16.mxu0 0
        %640 = vmatpush1.bf16.msra.mxu0 0
        %641 = vmatprep.subr.bf16.mxu0 0
        %642 = vmatpush1.bf16.msra.mxu0 0
        %643 = vmatprep.subr.bf16.mxu0 0
        %644 = vmatpush1.bf16.msra.mxu0 0
        %645 = vmatprep.subr.bf16.mxu0 0
        %646 = vmatpush1.bf16.msra.mxu0 0
        %647 = vmatprep.mubr.bf16.mxu0 0
        %648 = vmatmul.mubr.bf16.gmra.mrb[0].mxu0 %v431
        %v649 = vpop.f32.mrb[0].mxu0
        %v650 = vadd.f32 %v443, %v649
        %v651 = vpop.f32.mrb[0].mxu0
        %v652 = vpop.f32.mrb[0].mxu0
        %v653 = vadd.f32 %v443, %v652
        %v654 = vpop.f32.mrb[0].mxu0
        %655 = vdwg.mxu0
        %v656 = vld [vmem:[%s1] sm:$0xff]
        %v657 = vmul.f32 %v607, 0.17677669
        %v658 = vmul.f32 %v611, 0.17677669
        %vm659 = vcmask 261120
        %v661 = vsel %vm659, %v657, 0
        %v664 = vsel %vm659, %v609, 0
        %666 = vmatprep.subr.mxu0 0.0
        %667 = vmatpush1.xpose.msra.mxu0 %v664
        %668 = vmatprep.subr.mxu0 0.0
        %669 = vmatpush1.xpose.msra.mxu0 0.0
        %670 = vmatprep.subr.mxu0 0.0
        %671 = vmatpush1.xpose.msra.mxu0 0.0
        %672 = vmatprep.subr.mxu0 0.0
        %673 = vmatpush1.xpose.msra.mxu0 0.0
        %674 = vmatprep.subr.mxu0 0.0
        %675 = vmatpush1.xpose.msra.mxu0 0.0
        %676 = vmatprep.subr.mxu0 0.0
        %677 = vmatpush1.xpose.msra.mxu0 0.0
        %678 = vmatprep.subr.mxu0 0.0
        %679 = vmatpush1.xpose.msra.mxu0 0.0
        %680 = vmatprep.subr.mxu0 0.0
        %681 = vmatpush1.xpose.msra.mxu0 0.0
        %682 = vmatprep.subr.mxu0 0.0
        %683 = vmatpush1.xpose.msra.mxu0 0.0
        %684 = vmatprep.subr.mxu0 0.0
        %685 = vmatpush1.xpose.msra.mxu0 0.0
        %686 = vmatprep.subr.mxu0 0.0
        %687 = vmatpush1.xpose.msra.mxu0 0.0
        %688 = vmatprep.subr.mxu0 0.0
        %689 = vmatpush1.xpose.msra.mxu0 0.0
        %690 = vmatprep.subr.mxu0 0.0
        %691 = vmatpush1.xpose.msra.mxu0 0.0
        %692 = vmatprep.subr.mxu0 0.0
        %693 = vmatpush1.xpose.msra.mxu0 0.0
        %694 = vmatprep.subr.mxu0 0.0
        %695 = vmatpush1.xpose.msra.mxu0 0.0
        %696 = vmatprep.subr.mxu0 0.0
        %697 = vmatpush1.xpose.msra.mxu0 0.0
        %698 = vmatprep.subr.mxu0 0.0
        %699 = vmatpush1.xpose.msra.mxu0 0.0
        %700 = vmatprep.subr.mxu0 0.0
        %701 = vmatpush1.xpose.msra.mxu0 0.0
        %702 = vmatprep.subr.mxu0 0.0
        %703 = vmatpush1.xpose.msra.mxu0 0.0
        %704 = vmatprep.subr.mxu0 0.0
        %705 = vmatpush1.xpose.msra.mxu0 0.0
        %706 = vmatprep.subr.mxu0 0.0
        %707 = vmatpush1.xpose.msra.mxu0 0.0
        %708 = vmatprep.subr.mxu0 0.0
        %709 = vmatpush1.xpose.msra.mxu0 0.0
        %710 = vmatprep.subr.mxu0 0.0
        %711 = vmatpush1.xpose.msra.mxu0 0.0
        %712 = vmatprep.subr.mxu0 0.0
        %713 = vmatpush1.xpose.msra.mxu0 0.0
        %714 = vmatprep.subr.mxu0 0.0
        %715 = vmatpush1.xpose.msra.mxu0 0.0
        %716 = vmatprep.subr.mxu0 0.0
        %717 = vmatpush1.xpose.msra.mxu0 0.0
        %718 = vmatprep.subr.mxu0 0.0
        %719 = vmatpush1.xpose.msra.mxu0 0.0
        %720 = vmatprep.subr.mxu0 0.0
        %721 = vmatpush1.xpose.msra.mxu0 0.0
        %722 = vmatprep.subr.mxu0 0.0
        %723 = vmatpush1.xpose.msra.mxu0 0.0
        %724 = vmatprep.subr.mxu0 0.0
        %725 = vmatpush1.xpose.msra.mxu0 0.0
        %726 = vmatprep.subr.mxu0 0.0
        %727 = vmatpush1.xpose.msra.mxu0 0.0
        %728 = vmatprep.subr.mxu0 0.0
        %729 = vmatpush1.xpose.msra.mxu0 0.0
        %730 = vmatprep.mubr.f32.mxu0 0.0
        %731 = vmatmul.mubr.f32.gmra.mrb[0].mxu0 %v661
        %v732 = vpop.f32.mrb[0].mxu0
        %v733 = vadd.f32 %v656, %v732
        %v734 = vpop.f32.mrb[0].mxu0
        %735 = vdwg.mxu0
        %v737 = vsel %vm659, %v658, 0
        %v740 = vsel %vm659, %v613, 0
        %742 = vmatprep.subr.mxu0 0.0
        %743 = vmatpush1.xpose.msra.mxu0 %v740
        %744 = vmatprep.subr.mxu0 0.0
        %745 = vmatpush1.xpose.msra.mxu0 0.0
        %746 = vmatprep.subr.mxu0 0.0
        %747 = vmatpush1.xpose.msra.mxu0 0.0
        %748 = vmatprep.subr.mxu0 0.0
        %749 = vmatpush1.xpose.msra.mxu0 0.0
        %750 = vmatprep.subr.mxu0 0.0
        %751 = vmatpush1.xpose.msra.mxu0 0.0
        %752 = vmatprep.subr.mxu0 0.0
        %753 = vmatpush1.xpose.msra.mxu0 0.0
        %754 = vmatprep.subr.mxu0 0.0
        %755 = vmatpush1.xpose.msra.mxu0 0.0
        %756 = vmatprep.subr.mxu0 0.0
        %757 = vmatpush1.xpose.msra.mxu0 0.0
        %758 = vmatprep.subr.mxu0 0.0
        %759 = vmatpush1.xpose.msra.mxu0 0.0
        %760 = vmatprep.subr.mxu0 0.0
        %761 = vmatpush1.xpose.msra.mxu0 0.0
        %762 = vmatprep.subr.mxu0 0.0
        %763 = vmatpush1.xpose.msra.mxu0 0.0
        %764 = vmatprep.subr.mxu0 0.0
        %765 = vmatpush1.xpose.msra.mxu0 0.0
        %766 = vmatprep.subr.mxu0 0.0
        %767 = vmatpush1.xpose.msra.mxu0 0.0
        %768 = vmatprep.subr.mxu0 0.0
        %769 = vmatpush1.xpose.msra.mxu0 0.0
        %770 = vmatprep.subr.mxu0 0.0
        %771 = vmatpush1.xpose.msra.mxu0 0.0
        %772 = vmatprep.subr.mxu0 0.0
        %773 = vmatpush1.xpose.msra.mxu0 0.0
        %774 = vmatprep.subr.mxu0 0.0
        %775 = vmatpush1.xpose.msra.mxu0 0.0
        %776 = vmatprep.subr.mxu0 0.0
        %777 = vmatpush1.xpose.msra.mxu0 0.0
        %778 = vmatprep.subr.mxu0 0.0
        %779 = vmatpush1.xpose.msra.mxu0 0.0
        %780 = vmatprep.subr.mxu0 0.0
        %781 = vmatpush1.xpose.msra.mxu0 0.0
        %782 = vmatprep.subr.mxu0 0.0
        %783 = vmatpush1.xpose.msra.mxu0 0.0
        %784 = vmatprep.subr.mxu0 0.0
        %785 = vmatpush1.xpose.msra.mxu0 0.0
        %786 = vmatprep.subr.mxu0 0.0
        %787 = vmatpush1.xpose.msra.mxu0 0.0
        %788 = vmatprep.subr.mxu0 0.0
        %789 = vmatpush1.xpose.msra.mxu0 0.0
        %790 = vmatprep.subr.mxu0 0.0
        %791 = vmatpush1.xpose.msra.mxu0 0.0
        %792 = vmatprep.subr.mxu0 0.0
        %793 = vmatpush1.xpose.msra.mxu0 0.0
        %794 = vmatprep.subr.mxu0 0.0
        %795 = vmatpush1.xpose.msra.mxu0 0.0
        %796 = vmatprep.subr.mxu0 0.0
        %797 = vmatpush1.xpose.msra.mxu0 0.0
        %798 = vmatprep.subr.mxu0 0.0
        %799 = vmatpush1.xpose.msra.mxu0 0.0
        %800 = vmatprep.subr.mxu0 0.0
        %801 = vmatpush1.xpose.msra.mxu0 0.0
        %802 = vmatprep.subr.mxu0 0.0
        %803 = vmatpush1.xpose.msra.mxu0 0.0
        %804 = vmatprep.subr.mxu0 0.0
        %805 = vmatpush1.xpose.msra.mxu0 0.0
        %806 = vmatprep.mubr.f32.mxu0 0.0
        %807 = vmatmul.mubr.f32.gmra.mrb[0].mxu0 %v737
        %v808 = vpop.f32.mrb[0].mxu0
        %v809 = vadd.f32 %v656, %v808
        %v810 = vpop.f32.mrb[0].mxu0
        %811 = vdwg.mxu0
        %vm812 = vcmask 64512
        %v813 = vsel %vm812, %v733, -inf
        %814 = vmax.xlane.f32.xlu0 %v813
        %v815 = vpop.xlane.xlu0 %814
        %v816 = vsel %vm812, %v809, -inf
        %817 = vmax.xlane.f32.xlu0 %v816
        %v818 = vpop.xlane.xlu0 %817
        %v819 = vsub.f32 %v733, %v815
        %v820 = vsub.f32 %v809, %v818
        %v821 = vmul.f32 %v819, 1.442695
        %v822 = vpow.pop %v821
        %v823 = vmul.f32 %v820, 1.442695
        %v824 = vpow.pop %v823
        %v825 = vsel %vm812, %v822, 0.0
        %826 = vadd.xlane.f32.xlu0 %v825
        %v827 = vpop.xlane.xlu0 %826
        %v828 = vsel %vm812, %v824, 0.0
        %829 = vadd.xlane.f32.xlu0 %v828
        %v830 = vpop.xlane.xlu0 %829
        %v831 = vrcp.pop %v827
        %v832 = vrcp.pop %v830
        %v833 = vmul.f32 %v822, %v831
        %v834 = vmul.f32 %v824, %v832
        %v836 = vsel %vm812, %v833, 0
        %838 = vmatprep.subr.mxu0 0.0
        %839 = vmatpush1.msra.mxu0 %v650
        %840 = vmatprep.subr.mxu0 0.0
        %841 = vmatpush1.msra.mxu0 0.0
        %842 = vmatprep.subr.mxu0 0.0
        %843 = vmatpush1.msra.mxu0 0.0
        %844 = vmatprep.subr.mxu0 0.0
        %845 = vmatpush1.msra.mxu0 0.0
        %846 = vmatprep.subr.mxu0 0.0
        %847 = vmatpush1.msra.mxu0 0.0
        %848 = vmatprep.subr.mxu0 0.0
        %849 = vmatpush1.msra.mxu0 0.0
        %850 = vmatprep.subr.mxu0 0.0
        %851 = vmatpush1.msra.mxu0 0.0
        %852 = vmatprep.subr.mxu0 0.0
        %853 = vmatpush1.msra.mxu0 0.0
        %854 = vmatprep.subr.mxu0 0.0
        %855 = vmatpush1.msra.mxu0 0.0
        %856 = vmatprep.subr.mxu0 0.0
        %857 = vmatpush1.msra.mxu0 0.0
        %858 = vmatprep.subr.mxu0 0.0
        %859 = vmatpush1.msra.mxu0 0.0
        %860 = vmatprep.subr.mxu0 0.0
        %861 = vmatpush1.msra.mxu0 0.0
        %862 = vmatprep.subr.mxu0 0.0
        %863 = vmatpush1.msra.mxu0 0.0
        %864 = vmatprep.subr.mxu0 0.0
        %865 = vmatpush1.msra.mxu0 0.0
        %866 = vmatprep.subr.mxu0 0.0
        %867 = vmatpush1.msra.mxu0 0.0
        %868 = vmatprep.subr.mxu0 0.0
        %869 = vmatpush1.msra.mxu0 0.0
        %870 = vmatprep.subr.mxu0 0.0
        %871 = vmatpush1.msra.mxu0 0.0
        %872 = vmatprep.subr.mxu0 0.0
        %873 = vmatpush1.msra.mxu0 0.0
        %874 = vmatprep.subr.mxu0 0.0
        %875 = vmatpush1.msra.mxu0 0.0
        %876 = vmatprep.subr.mxu0 0.0
        %877 = vmatpush1.msra.mxu0 0.0
        %878 = vmatprep.subr.mxu0 0.0
        %879 = vmatpush1.msra.mxu0 0.0
        %880 = vmatprep.subr.mxu0 0.0
        %881 = vmatpush1.msra.mxu0 0.0
        %882 = vmatprep.subr.mxu0 0.0
        %883 = vmatpush1.msra.mxu0 0.0
        %884 = vmatprep.subr.mxu0 0.0
        %885 = vmatpush1.msra.mxu0 0.0
        %886 = vmatprep.subr.mxu0 0.0
        %887 = vmatpush1.msra.mxu0 0.0
        %888 = vmatprep.subr.mxu0 0.0
        %889 = vmatpush1.msra.mxu0 0.0
        %890 = vmatprep.subr.mxu0 0.0
        %891 = vmatpush1.msra.mxu0 0.0
        %892 = vmatprep.subr.mxu0 0.0
        %893 = vmatpush1.msra.mxu0 0.0
        %894 = vmatprep.subr.mxu0 0.0
        %895 = vmatpush1.msra.mxu0 0.0
        %896 = vmatprep.subr.mxu0 0.0
        %897 = vmatpush1.msra.mxu0 0.0
        %898 = vmatprep.subr.mxu0 0.0
        %899 = vmatpush1.msra.mxu0 0.0
        %900 = vmatprep.subr.mxu0 0.0
        %901 = vmatpush1.msra.mxu0 0.0
        %902 = vmatprep.mubr.f32.mxu0 0.0
        %903 = vmatmul.mubr.f32.gmra.mrb[0].mxu0 %v836
        %v904 = vpop.f32.mrb[0].mxu0
        %v905 = vadd.f32 0.0, %v904
        %v906 = vpop.f32.mrb[0].mxu0
        %907 = vdwg.mxu0
        %v909 = vsel %vm812, %v834, 0
        %911 = vmatprep.subr.mxu0 0.0
        %912 = vmatpush1.msra.mxu0 %v653
        %913 = vmatprep.subr.mxu0 0.0
        %914 = vmatpush1.msra.mxu0 0.0
        %915 = vmatprep.subr.mxu0 0.0
        %916 = vmatpush1.msra.mxu0 0.0
        %917 = vmatprep.subr.mxu0 0.0
        %918 = vmatpush1.msra.mxu0 0.0
        %919 = vmatprep.subr.mxu0 0.0
        %920 = vmatpush1.msra.mxu0 0.0
        %921 = vmatprep.subr.mxu0 0.0
        %922 = vmatpush1.msra.mxu0 0.0
        %923 = vmatprep.subr.mxu0 0.0
        %924 = vmatpush1.msra.mxu0 0.0
        %925 = vmatprep.subr.mxu0 0.0
        %926 = vmatpush1.msra.mxu0 0.0
        %927 = vmatprep.subr.mxu0 0.0
        %928 = vmatpush1.msra.mxu0 0.0
        %929 = vmatprep.subr.mxu0 0.0
        %930 = vmatpush1.msra.mxu0 0.0
        %931 = vmatprep.subr.mxu0 0.0
        %932 = vmatpush1.msra.mxu0 0.0
        %933 = vmatprep.subr.mxu0 0.0
        %934 = vmatpush1.msra.mxu0 0.0
        %935 = vmatprep.subr.mxu0 0.0
        %936 = vmatpush1.msra.mxu0 0.0
        %937 = vmatprep.subr.mxu0 0.0
        %938 = vmatpush1.msra.mxu0 0.0
        %939 = vmatprep.subr.mxu0 0.0
        %940 = vmatpush1.msra.mxu0 0.0
        %941 = vmatprep.subr.mxu0 0.0
        %942 = vmatpush1.msra.mxu0 0.0
        %943 = vmatprep.subr.mxu0 0.0
        %944 = vmatpush1.msra.mxu0 0.0
        %945 = vmatprep.subr.mxu0 0.0
        %946 = vmatpush1.msra.mxu0 0.0
        %947 = vmatprep.subr.mxu0 0.0
        %948 = vmatpush1.msra.mxu0 0.0
        %949 = vmatprep.subr.mxu0 0.0
        %950 = vmatpush1.msra.mxu0 0.0
        %951 = vmatprep.subr.mxu0 0.0
        %952 = vmatpush1.msra.mxu0 0.0
        %953 = vmatprep.subr.mxu0 0.0
        %954 = vmatpush1.msra.mxu0 0.0
        %955 = vmatprep.subr.mxu0 0.0
        %956 = vmatpush1.msra.mxu0 0.0
        %957 = vmatprep.subr.mxu0 0.0
        %958 = vmatpush1.msra.mxu0 0.0
        %959 = vmatprep.subr.mxu0 0.0
        %960 = vmatpush1.msra.mxu0 0.0
        %961 = vmatprep.subr.mxu0 0.0
        %962 = vmatpush1.msra.mxu0 0.0
        %963 = vmatprep.subr.mxu0 0.0
        %964 = vmatpush1.msra.mxu0 0.0
        %965 = vmatprep.subr.mxu0 0.0
        %966 = vmatpush1.msra.mxu0 0.0
        %967 = vmatprep.subr.mxu0 0.0
        %968 = vmatpush1.msra.mxu0 0.0
        %969 = vmatprep.subr.mxu0 0.0
        %970 = vmatpush1.msra.mxu0 0.0
        %971 = vmatprep.subr.mxu0 0.0
        %972 = vmatpush1.msra.mxu0 0.0
        %973 = vmatprep.subr.mxu0 0.0
        %974 = vmatpush1.msra.mxu0 0.0
        %975 = vmatprep.mubr.f32.mxu0 0.0
        %976 = vmatmul.mubr.f32.gmra.mrb[0].mxu0 %v909
        %v977 = vpop.f32.mrb[0].mxu0
        %v978 = vadd.f32 0.0, %v977
        %v979 = vpop.f32.mrb[0].mxu0
        %980 = vdwg.mxu0
        %981 = vrot.lane.b32.xlu0 %v657, 96
        %v982 = vpop.permute.xlu0 %981
        %983 = vrot.lane.b32.xlu0 %v609, 96
        %v984 = vpop.permute.xlu0 %983
        %v985 = vsel %vm659, %v982, 0
        %v987 = vsel %vm659, %v984, 0
        %989 = vmatprep.subr.mxu0 0.0
        %990 = vmatpush1.xpose.msra.mxu0 %v987
        %991 = vmatprep.subr.mxu0 0.0
        %992 = vmatpush1.xpose.msra.mxu0 0.0
        %993 = vmatprep.subr.mxu0 0.0
        %994 = vmatpush1.xpose.msra.mxu0 0.0
        %995 = vmatprep.subr.mxu0 0.0
        %996 = vmatpush1.xpose.msra.mxu0 0.0
        %997 = vmatprep.subr.mxu0 0.0
        %998 = vmatpush1.xpose.msra.mxu0 0.0
        %999 = vmatprep.subr.mxu0 0.0
        %1000 = vmatpush1.xpose.msra.mxu0 0.0
        %1001 = vmatprep.subr.mxu0 0.0
        %1002 = vmatpush1.xpose.msra.mxu0 0.0
        %1003 = vmatprep.subr.mxu0 0.0
        %1004 = vmatpush1.xpose.msra.mxu0 0.0
        %1005 = vmatprep.subr.mxu0 0.0
        %1006 = vmatpush1.xpose.msra.mxu0 0.0
        %1007 = vmatprep.subr.mxu0 0.0
        %1008 = vmatpush1.xpose.msra.mxu0 0.0
        %1009 = vmatprep.subr.mxu0 0.0
        %1010 = vmatpush1.xpose.msra.mxu0 0.0
        %1011 = vmatprep.subr.mxu0 0.0
        %1012 = vmatpush1.xpose.msra.mxu0 0.0
        %1013 = vmatprep.subr.mxu0 0.0
        %1014 = vmatpush1.xpose.msra.mxu0 0.0
        %1015 = vmatprep.subr.mxu0 0.0
        %1016 = vmatpush1.xpose.msra.mxu0 0.0
        %1017 = vmatprep.subr.mxu0 0.0
        %1018 = vmatpush1.xpose.msra.mxu0 0.0
        %1019 = vmatprep.subr.mxu0 0.0
        %1020 = vmatpush1.xpose.msra.mxu0 0.0
        %1021 = vmatprep.subr.mxu0 0.0
        %1022 = vmatpush1.xpose.msra.mxu0 0.0
        %1023 = vmatprep.subr.mxu0 0.0
        %1024 = vmatpush1.xpose.msra.mxu0 0.0
        %1025 = vmatprep.subr.mxu0 0.0
        %1026 = vmatpush1.xpose.msra.mxu0 0.0
        %1027 = vmatprep.subr.mxu0 0.0
        %1028 = vmatpush1.xpose.msra.mxu0 0.0
        %1029 = vmatprep.subr.mxu0 0.0
        %1030 = vmatpush1.xpose.msra.mxu0 0.0
        %1031 = vmatprep.subr.mxu0 0.0
        %1032 = vmatpush1.xpose.msra.mxu0 0.0
        %1033 = vmatprep.subr.mxu0 0.0
        %1034 = vmatpush1.xpose.msra.mxu0 0.0
        %1035 = vmatprep.subr.mxu0 0.0
        %1036 = vmatpush1.xpose.msra.mxu0 0.0
        %1037 = vmatprep.subr.mxu0 0.0
        %1038 = vmatpush1.xpose.msra.mxu0 0.0
        %1039 = vmatprep.subr.mxu0 0.0
        %1040 = vmatpush1.xpose.msra.mxu0 0.0
        %1041 = vmatprep.subr.mxu0 0.0
        %1042 = vmatpush1.xpose.msra.mxu0 0.0
        %1043 = vmatprep.subr.mxu0 0.0
        %1044 = vmatpush1.xpose.msra.mxu0 0.0
        %1045 = vmatprep.subr.mxu0 0.0
        %1046 = vmatpush1.xpose.msra.mxu0 0.0
        %1047 = vmatprep.subr.mxu0 0.0
        %1048 = vmatpush1.xpose.msra.mxu0 0.0
        %1049 = vmatprep.subr.mxu0 0.0
        %1050 = vmatpush1.xpose.msra.mxu0 0.0
        %1051 = vmatprep.subr.mxu0 0.0
        %1052 = vmatpush1.xpose.msra.mxu0 0.0
        %1053 = vmatprep.mubr.f32.mxu0 0.0
        %1054 = vmatmul.mubr.f32.gmra.mrb[0].mxu0 %v985
        %v1055 = vpop.f32.mrb[0].mxu0
        %v1056 = vadd.f32 %v656, %v1055
        %v1057 = vpop.f32.mrb[0].mxu0
        %1058 = vdwg.mxu0
        %1059 = vrot.lane.b32.xlu0 %v658, 96
        %v1060 = vpop.permute.xlu0 %1059
        %1061 = vrot.lane.b32.xlu0 %v613, 96
        %v1062 = vpop.permute.xlu0 %1061
        %v1063 = vsel %vm659, %v1060, 0
        %v1065 = vsel %vm659, %v1062, 0
        %1067 = vmatprep.subr.mxu0 0.0
        %1068 = vmatpush1.xpose.msra.mxu0 %v1065
        %1069 = vmatprep.subr.mxu0 0.0
        %1070 = vmatpush1.xpose.msra.mxu0 0.0
        %1071 = vmatprep.subr.mxu0 0.0
        %1072 = vmatpush1.xpose.msra.mxu0 0.0
        %1073 = vmatprep.subr.mxu0 0.0
        %1074 = vmatpush1.xpose.msra.mxu0 0.0
        %1075 = vmatprep.subr.mxu0 0.0
        %1076 = vmatpush1.xpose.msra.mxu0 0.0
        %1077 = vmatprep.subr.mxu0 0.0
        %1078 = vmatpush1.xpose.msra.mxu0 0.0
        %1079 = vmatprep.subr.mxu0 0.0
        %1080 = vmatpush1.xpose.msra.mxu0 0.0
        %1081 = vmatprep.subr.mxu0 0.0
        %1082 = vmatpush1.xpose.msra.mxu0 0.0
        %1083 = vmatprep.subr.mxu0 0.0
        %1084 = vmatpush1.xpose.msra.mxu0 0.0
        %1085 = vmatprep.subr.mxu0 0.0
        %1086 = vmatpush1.xpose.msra.mxu0 0.0
        %1087 = vmatprep.subr.mxu0 0.0
        %1088 = vmatpush1.xpose.msra.mxu0 0.0
        %1089 = vmatprep.subr.mxu0 0.0
        %1090 = vmatpush1.xpose.msra.mxu0 0.0
        %1091 = vmatprep.subr.mxu0 0.0
        %1092 = vmatpush1.xpose.msra.mxu0 0.0
        %1093 = vmatprep.subr.mxu0 0.0
        %1094 = vmatpush1.xpose.msra.mxu0 0.0
        %1095 = vmatprep.subr.mxu0 0.0
        %1096 = vmatpush1.xpose.msra.mxu0 0.0
        %1097 = vmatprep.subr.mxu0 0.0
        %1098 = vmatpush1.xpose.msra.mxu0 0.0
        %1099 = vmatprep.subr.mxu0 0.0
        %1100 = vmatpush1.xpose.msra.mxu0 0.0
        %1101 = vmatprep.subr.mxu0 0.0
        %1102 = vmatpush1.xpose.msra.mxu0 0.0
        %1103 = vmatprep.subr.mxu0 0.0
        %1104 = vmatpush1.xpose.msra.mxu0 0.0
        %1105 = vmatprep.subr.mxu0 0.0
        %1106 = vmatpush1.xpose.msra.mxu0 0.0
        %1107 = vmatprep.subr.mxu0 0.0
        %1108 = vmatpush1.xpose.msra.mxu0 0.0
        %1109 = vmatprep.subr.mxu0 0.0
        %1110 = vmatpush1.xpose.msra.mxu0 0.0
        %1111 = vmatprep.subr.mxu0 0.0
        %1112 = vmatpush1.xpose.msra.mxu0 0.0
        %1113 = vmatprep.subr.mxu0 0.0
        %1114 = vmatpush1.xpose.msra.mxu0 0.0
        %1115 = vmatprep.subr.mxu0 0.0
        %1116 = vmatpush1.xpose.msra.mxu0 0.0
        %1117 = vmatprep.subr.mxu0 0.0
        %1118 = vmatpush1.xpose.msra.mxu0 0.0
        %1119 = vmatprep.subr.mxu0 0.0
        %1120 = vmatpush1.xpose.msra.mxu0 0.0
        %1121 = vmatprep.subr.mxu0 0.0
        %1122 = vmatpush1.xpose.msra.mxu0 0.0
        %1123 = vmatprep.subr.mxu0 0.0
        %1124 = vmatpush1.xpose.msra.mxu0 0.0
        %1125 = vmatprep.subr.mxu0 0.0
        %1126 = vmatpush1.xpose.msra.mxu0 0.0
        %1127 = vmatprep.subr.mxu0 0.0
        %1128 = vmatpush1.xpose.msra.mxu0 0.0
        %1129 = vmatprep.subr.mxu0 0.0
        %1130 = vmatpush1.xpose.msra.mxu0 0.0
        %1131 = vmatprep.mubr.f32.mxu0 0.0
        %1132 = vmatmul.mubr.f32.gmra.mrb[0].mxu0 %v1063
        %v1133 = vpop.f32.mrb[0].mxu0
        %v1134 = vadd.f32 %v656, %v1133
        %v1135 = vpop.f32.mrb[0].mxu0
        %1136 = vdwg.mxu0
        %v1137 = vsel %vm812, %v1056, -inf
        %1138 = vmax.xlane.f32.xlu0 %v1137
        %v1139 = vpop.xlane.xlu0 %1138
        %v1140 = vsel %vm812, %v1134, -inf
        %1141 = vmax.xlane.f32.xlu0 %v1140
        %v1142 = vpop.xlane.xlu0 %1141
        %v1143 = vsub.f32 %v1056, %v1139
        %v1144 = vsub.f32 %v1134, %v1142
        %v1145 = vmul.f32 %v1143, 1.442695
        %v1146 = vpow.pop %v1145
        %v1147 = vmul.f32 %v1144, 1.442695
        %v1148 = vpow.pop %v1147
        %v1149 = vsel %vm812, %v1146, 0.0
        %1150 = vadd.xlane.f32.xlu0 %v1149
        %v1151 = vpop.xlane.xlu0 %1150
        %v1152 = vsel %vm812, %v1148, 0.0
        %1153 = vadd.xlane.f32.xlu0 %v1152
        %v1154 = vpop.xlane.xlu0 %1153
        %v1155 = vrcp.pop %v1151
        %v1156 = vrcp.pop %v1154
        %v1157 = vmul.f32 %v1146, %v1155
        %v1158 = vmul.f32 %v1148, %v1156
        %1160 = vrot.lane.b32.xlu0 %v650, 96
        %v1161 = vpop.permute.xlu0 %1160
        %v1164 = vsel %vm812, %v1157, 0
        %1166 = vmatprep.subr.mxu0 0.0
        %1167 = vmatpush1.msra.mxu0 %v1161
        %1168 = vmatprep.subr.mxu0 0.0
        %1169 = vmatpush1.msra.mxu0 0.0
        %1170 = vmatprep.subr.mxu0 0.0
        %1171 = vmatpush1.msra.mxu0 0.0
        %1172 = vmatprep.subr.mxu0 0.0
        %1173 = vmatpush1.msra.mxu0 0.0
        %1174 = vmatprep.subr.mxu0 0.0
        %1175 = vmatpush1.msra.mxu0 0.0
        %1176 = vmatprep.subr.mxu0 0.0
        %1177 = vmatpush1.msra.mxu0 0.0
        %1178 = vmatprep.subr.mxu0 0.0
        %1179 = vmatpush1.msra.mxu0 0.0
        %1180 = vmatprep.subr.mxu0 0.0
        %1181 = vmatpush1.msra.mxu0 0.0
        %1182 = vmatprep.subr.mxu0 0.0
        %1183 = vmatpush1.msra.mxu0 0.0
        %1184 = vmatprep.subr.mxu0 0.0
        %1185 = vmatpush1.msra.mxu0 0.0
        %1186 = vmatprep.subr.mxu0 0.0
        %1187 = vmatpush1.msra.mxu0 0.0
        %1188 = vmatprep.subr.mxu0 0.0
        %1189 = vmatpush1.msra.mxu0 0.0
        %1190 = vmatprep.subr.mxu0 0.0
        %1191 = vmatpush1.msra.mxu0 0.0
        %1192 = vmatprep.subr.mxu0 0.0
        %1193 = vmatpush1.msra.mxu0 0.0
        %1194 = vmatprep.subr.mxu0 0.0
        %1195 = vmatpush1.msra.mxu0 0.0
        %1196 = vmatprep.subr.mxu0 0.0
        %1197 = vmatpush1.msra.mxu0 0.0
        %1198 = vmatprep.subr.mxu0 0.0
        %1199 = vmatpush1.msra.mxu0 0.0
        %1200 = vmatprep.subr.mxu0 0.0
        %1201 = vmatpush1.msra.mxu0 0.0
        %1202 = vmatprep.subr.mxu0 0.0
        %1203 = vmatpush1.msra.mxu0 0.0
        %1204 = vmatprep.subr.mxu0 0.0
        %1205 = vmatpush1.msra.mxu0 0.0
        %1206 = vmatprep.subr.mxu0 0.0
        %1207 = vmatpush1.msra.mxu0 0.0
        %1208 = vmatprep.subr.mxu0 0.0
        %1209 = vmatpush1.msra.mxu0 0.0
        %1210 = vmatprep.subr.mxu0 0.0
        %1211 = vmatpush1.msra.mxu0 0.0
        %1212 = vmatprep.subr.mxu0 0.0
        %1213 = vmatpush1.msra.mxu0 0.0
        %1214 = vmatprep.subr.mxu0 0.0
        %1215 = vmatpush1.msra.mxu0 0.0
        %1216 = vmatprep.subr.mxu0 0.0
        %1217 = vmatpush1.msra.mxu0 0.0
        %1218 = vmatprep.subr.mxu0 0.0
        %1219 = vmatpush1.msra.mxu0 0.0
        %1220 = vmatprep.subr.mxu0 0.0
        %1221 = vmatpush1.msra.mxu0 0.0
        %1222 = vmatprep.subr.mxu0 0.0
        %1223 = vmatpush1.msra.mxu0 0.0
        %1224 = vmatprep.subr.mxu0 0.0
        %1225 = vmatpush1.msra.mxu0 0.0
        %1226 = vmatprep.subr.mxu0 0.0
        %1227 = vmatpush1.msra.mxu0 0.0
        %1228 = vmatprep.subr.mxu0 0.0
        %1229 = vmatpush1.msra.mxu0 0.0
        %1230 = vmatprep.mubr.f32.mxu0 0.0
        %1231 = vmatmul.mubr.f32.gmra.mrb[0].mxu0 %v1164
        %v1232 = vpop.f32.mrb[0].mxu0
        %v1233 = vadd.f32 0.0, %v1232
        %v1234 = vpop.f32.mrb[0].mxu0
        %1235 = vdwg.mxu0
        %1237 = vrot.lane.b32.xlu0 %v653, 96
        %v1238 = vpop.permute.xlu0 %1237
        %v1241 = vsel %vm812, %v1158, 0
        %1243 = vmatprep.subr.mxu0 0.0
        %1244 = vmatpush1.msra.mxu0 %v1238
        %1245 = vmatprep.subr.mxu0 0.0
        %1246 = vmatpush1.msra.mxu0 0.0
        %1247 = vmatprep.subr.mxu0 0.0
        %1248 = vmatpush1.msra.mxu0 0.0
        %1249 = vmatprep.subr.mxu0 0.0
        %1250 = vmatpush1.msra.mxu0 0.0
        %1251 = vmatprep.subr.mxu0 0.0
        %1252 = vmatpush1.msra.mxu0 0.0
        %1253 = vmatprep.subr.mxu0 0.0
        %1254 = vmatpush1.msra.mxu0 0.0
        %1255 = vmatprep.subr.mxu0 0.0
        %1256 = vmatpush1.msra.mxu0 0.0
        %1257 = vmatprep.subr.mxu0 0.0
        %1258 = vmatpush1.msra.mxu0 0.0
        %1259 = vmatprep.subr.mxu0 0.0
        %1260 = vmatpush1.msra.mxu0 0.0
        %1261 = vmatprep.subr.mxu0 0.0
        %1262 = vmatpush1.msra.mxu0 0.0
        %1263 = vmatprep.subr.mxu0 0.0
        %1264 = vmatpush1.msra.mxu0 0.0
        %1265 = vmatprep.subr.mxu0 0.0
        %1266 = vmatpush1.msra.mxu0 0.0
        %1267 = vmatprep.subr.mxu0 0.0
        %1268 = vmatpush1.msra.mxu0 0.0
        %1269 = vmatprep.subr.mxu0 0.0
        %1270 = vmatpush1.msra.mxu0 0.0
        %1271 = vmatprep.subr.mxu0 0.0
        %1272 = vmatpush1.msra.mxu0 0.0
        %1273 = vmatprep.subr.mxu0 0.0
        %1274 = vmatpush1.msra.mxu0 0.0
        %1275 = vmatprep.subr.mxu0 0.0
        %1276 = vmatpush1.msra.mxu0 0.0
        %1277 = vmatprep.subr.mxu0 0.0
        %1278 = vmatpush1.msra.mxu0 0.0
        %1279 = vmatprep.subr.mxu0 0.0
        %1280 = vmatpush1.msra.mxu0 0.0
        %1281 = vmatprep.subr.mxu0 0.0
        %1282 = vmatpush1.msra.mxu0 0.0
        %1283 = vmatprep.subr.mxu0 0.0
        %1284 = vmatpush1.msra.mxu0 0.0
        %1285 = vmatprep.subr.mxu0 0.0
        %1286 = vmatpush1.msra.mxu0 0.0
        %1287 = vmatprep.subr.mxu0 0.0
        %1288 = vmatpush1.msra.mxu0 0.0
        %1289 = vmatprep.subr.mxu0 0.0
        %1290 = vmatpush1.msra.mxu0 0.0
        %1291 = vmatprep.subr.mxu0 0.0
        %1292 = vmatpush1.msra.mxu0 0.0
        %1293 = vmatprep.subr.mxu0 0.0
        %1294 = vmatpush1.msra.mxu0 0.0
        %1295 = vmatprep.subr.mxu0 0.0
        %1296 = vmatpush1.msra.mxu0 0.0
        %1297 = vmatprep.subr.mxu0 0.0
        %1298 = vmatpush1.msra.mxu0 0.0
        %1299 = vmatprep.subr.mxu0 0.0
        %1300 = vmatpush1.msra.mxu0 0.0
        %1301 = vmatprep.subr.mxu0 0.0
        %1302 = vmatpush1.msra.mxu0 0.0
        %1303 = vmatprep.subr.mxu0 0.0
        %1304 = vmatpush1.msra.mxu0 0.0
        %1305 = vmatprep.subr.mxu0 0.0
        %1306 = vmatpush1.msra.mxu0 0.0
        %1307 = vmatprep.mubr.f32.mxu0 0.0
        %1308 = vmatmul.mubr.f32.gmra.mrb[0].mxu0 %v1241
        %v1309 = vpop.f32.mrb[0].mxu0
        %v1310 = vadd.f32 0.0, %v1309
        %v1311 = vpop.f32.mrb[0].mxu0
        %1312 = vdwg.mxu0
        %1313 = vrot.lane.b32.xlu0 %v657, 64
        %v1314 = vpop.permute.xlu0 %1313
        %1315 = vrot.lane.b32.xlu0 %v609, 64
        %v1316 = vpop.permute.xlu0 %1315
        %v1317 = vsel %vm659, %v1314, 0
        %v1319 = vsel %vm659, %v1316, 0
        %1321 = vmatprep.subr.mxu0 0.0
        %1322 = vmatpush1.xpose.msra.mxu0 %v1319
        %1323 = vmatprep.subr.mxu0 0.0
        %1324 = vmatpush1.xpose.msra.mxu0 0.0
        %1325 = vmatprep.subr.mxu0 0.0
        %1326 = vmatpush1.xpose.msra.mxu0 0.0
        %1327 = vmatprep.subr.mxu0 0.0
        %1328 = vmatpush1.xpose.msra.mxu0 0.0
        %1329 = vmatprep.subr.mxu0 0.0
        %1330 = vmatpush1.xpose.msra.mxu0 0.0
        %1331 = vmatprep.subr.mxu0 0.0
        %1332 = vmatpush1.xpose.msra.mxu0 0.0
        %1333 = vmatprep.subr.mxu0 0.0
        %1334 = vmatpush1.xpose.msra.mxu0 0.0
        %1335 = vmatprep.subr.mxu0 0.0
        %1336 = vmatpush1.xpose.msra.mxu0 0.0
        %1337 = vmatprep.subr.mxu0 0.0
        %1338 = vmatpush1.xpose.msra.mxu0 0.0
        %1339 = vmatprep.subr.mxu0 0.0
        %1340 = vmatpush1.xpose.msra.mxu0 0.0
        %1341 = vmatprep.subr.mxu0 0.0
        %1342 = vmatpush1.xpose.msra.mxu0 0.0
        %1343 = vmatprep.subr.mxu0 0.0
        %1344 = vmatpush1.xpose.msra.mxu0 0.0
        %1345 = vmatprep.subr.mxu0 0.0
        %1346 = vmatpush1.xpose.msra.mxu0 0.0
        %1347 = vmatprep.subr.mxu0 0.0
        %1348 = vmatpush1.xpose.msra.mxu0 0.0
        %1349 = vmatprep.subr.mxu0 0.0
        %1350 = vmatpush1.xpose.msra.mxu0 0.0
        %1351 = vmatprep.subr.mxu0 0.0
        %1352 = vmatpush1.xpose.msra.mxu0 0.0
        %1353 = vmatprep.subr.mxu0 0.0
        %1354 = vmatpush1.xpose.msra.mxu0 0.0
        %1355 = vmatprep.subr.mxu0 0.0
        %1356 = vmatpush1.xpose.msra.mxu0 0.0
        %1357 = vmatprep.subr.mxu0 0.0
        %1358 = vmatpush1.xpose.msra.mxu0 0.0
        %1359 = vmatprep.subr.mxu0 0.0
        %1360 = vmatpush1.xpose.msra.mxu0 0.0
        %1361 = vmatprep.subr.mxu0 0.0
        %1362 = vmatpush1.xpose.msra.mxu0 0.0
        %1363 = vmatprep.subr.mxu0 0.0
        %1364 = vmatpush1.xpose.msra.mxu0 0.0
        %1365 = vmatprep.subr.mxu0 0.0
        %1366 = vmatpush1.xpose.msra.mxu0 0.0
        %1367 = vmatprep.subr.mxu0 0.0
        %1368 = vmatpush1.xpose.msra.mxu0 0.0
        %1369 = vmatprep.subr.mxu0 0.0
        %1370 = vmatpush1.xpose.msra.mxu0 0.0
        %1371 = vmatprep.subr.mxu0 0.0
        %1372 = vmatpush1.xpose.msra.mxu0 0.0
        %1373 = vmatprep.subr.mxu0 0.0
        %1374 = vmatpush1.xpose.msra.mxu0 0.0
        %1375 = vmatprep.subr.mxu0 0.0
        %1376 = vmatpush1.xpose.msra.mxu0 0.0
        %1377 = vmatprep.subr.mxu0 0.0
        %1378 = vmatpush1.xpose.msra.mxu0 0.0
        %1379 = vmatprep.subr.mxu0 0.0
        %1380 = vmatpush1.xpose.msra.mxu0 0.0
        %1381 = vmatprep.subr.mxu0 0.0
        %1382 = vmatpush1.xpose.msra.mxu0 0.0
        %1383 = vmatprep.subr.mxu0 0.0
        %1384 = vmatpush1.xpose.msra.mxu0 0.0
        %1385 = vmatprep.mubr.f32.mxu0 0.0
        %1386 = vmatmul.mubr.f32.gmra.mrb[0].mxu0 %v1317
        %v1387 = vpop.f32.mrb[0].mxu0
        %v1388 = vadd.f32 %v656, %v1387
        %v1389 = vpop.f32.mrb[0].mxu0
        %1390 = vdwg.mxu0
        %1391 = vrot.lane.b32.xlu0 %v658, 64
        %v1392 = vpop.permute.xlu0 %1391
        %1393 = vrot.lane.b32.xlu0 %v613, 64
        %v1394 = vpop.permute.xlu0 %1393
        %v1395 = vsel %vm659, %v1392, 0
        %v1397 = vsel %vm659, %v1394, 0
        %1399 = vmatprep.subr.mxu0 0.0
        %1400 = vmatpush1.xpose.msra.mxu0 %v1397
        %1401 = vmatprep.subr.mxu0 0.0
        %1402 = vmatpush1.xpose.msra.mxu0 0.0
        %1403 = vmatprep.subr.mxu0 0.0
        %1404 = vmatpush1.xpose.msra.mxu0 0.0
        %1405 = vmatprep.subr.mxu0 0.0
        %1406 = vmatpush1.xpose.msra.mxu0 0.0
        %1407 = vmatprep.subr.mxu0 0.0
        %1408 = vmatpush1.xpose.msra.mxu0 0.0
        %1409 = vmatprep.subr.mxu0 0.0
        %1410 = vmatpush1.xpose.msra.mxu0 0.0
        %1411 = vmatprep.subr.mxu0 0.0
        %1412 = vmatpush1.xpose.msra.mxu0 0.0
        %1413 = vmatprep.subr.mxu0 0.0
        %1414 = vmatpush1.xpose.msra.mxu0 0.0
        %1415 = vmatprep.subr.mxu0 0.0
        %1416 = vmatpush1.xpose.msra.mxu0 0.0
        %1417 = vmatprep.subr.mxu0 0.0
        %1418 = vmatpush1.xpose.msra.mxu0 0.0
        %1419 = vmatprep.subr.mxu0 0.0
        %1420 = vmatpush1.xpose.msra.mxu0 0.0
        %1421 = vmatprep.subr.mxu0 0.0
        %1422 = vmatpush1.xpose.msra.mxu0 0.0
        %1423 = vmatprep.subr.mxu0 0.0
        %1424 = vmatpush1.xpose.msra.mxu0 0.0
        %1425 = vmatprep.subr.mxu0 0.0
        %1426 = vmatpush1.xpose.msra.mxu0 0.0
        %1427 = vmatprep.subr.mxu0 0.0
        %1428 = vmatpush1.xpose.msra.mxu0 0.0
        %1429 = vmatprep.subr.mxu0 0.0
        %1430 = vmatpush1.xpose.msra.mxu0 0.0
        %1431 = vmatprep.subr.mxu0 0.0
        %1432 = vmatpush1.xpose.msra.mxu0 0.0
        %1433 = vmatprep.subr.mxu0 0.0
        %1434 = vmatpush1.xpose.msra.mxu0 0.0
        %1435 = vmatprep.subr.mxu0 0.0
        %1436 = vmatpush1.xpose.msra.mxu0 0.0
        %1437 = vmatprep.subr.mxu0 0.0
        %1438 = vmatpush1.xpose.msra.mxu0 0.0
        %1439 = vmatprep.subr.mxu0 0.0
        %1440 = vmatpush1.xpose.msra.mxu0 0.0
        %1441 = vmatprep.subr.mxu0 0.0
        %1442 = vmatpush1.xpose.msra.mxu0 0.0
        %1443 = vmatprep.subr.mxu0 0.0
        %1444 = vmatpush1.xpose.msra.mxu0 0.0
        %1445 = vmatprep.subr.mxu0 0.0
        %1446 = vmatpush1.xpose.msra.mxu0 0.0
        %1447 = vmatprep.subr.mxu0 0.0
        %1448 = vmatpush1.xpose.msra.mxu0 0.0
        %1449 = vmatprep.subr.mxu0 0.0
        %1450 = vmatpush1.xpose.msra.mxu0 0.0
        %1451 = vmatprep.subr.mxu0 0.0
        %1452 = vmatpush1.xpose.msra.mxu0 0.0
        %1453 = vmatprep.subr.mxu0 0.0
        %1454 = vmatpush1.xpose.msra.mxu0 0.0
        %1455 = vmatprep.subr.mxu0 0.0
        %1456 = vmatpush1.xpose.msra.mxu0 0.0
        %1457 = vmatprep.subr.mxu0 0.0
        %1458 = vmatpush1.xpose.msra.mxu0 0.0
        %1459 = vmatprep.subr.mxu0 0.0
        %1460 = vmatpush1.xpose.msra.mxu0 0.0
        %1461 = vmatprep.subr.mxu0 0.0
        %1462 = vmatpush1.xpose.msra.mxu0 0.0
        %1463 = vmatprep.mubr.f32.mxu0 0.0
        %1464 = vmatmul.mubr.f32.gmra.mrb[0].mxu0 %v1395
        %v1465 = vpop.f32.mrb[0].mxu0
        %v1466 = vadd.f32 %v656, %v1465
        %v1467 = vpop.f32.mrb[0].mxu0
        %1468 = vdwg.mxu0
        %v1469 = vsel %vm812, %v1388, -inf
        %1470 = vmax.xlane.f32.xlu0 %v1469
        %v1471 = vpop.xlane.xlu0 %1470
        %v1472 = vsel %vm812, %v1466, -inf
        %1473 = vmax.xlane.f32.xlu0 %v1472
        %v1474 = vpop.xlane.xlu0 %1473
        %v1475 = vsub.f32 %v1388, %v1471
        %v1476 = vsub.f32 %v1466, %v1474
        %v1477 = vmul.f32 %v1475, 1.442695
        %v1478 = vpow.pop %v1477
        %v1479 = vmul.f32 %v1476, 1.442695
        %v1480 = vpow.pop %v1479
        %v1481 = vsel %vm812, %v1478, 0.0
        %1482 = vadd.xlane.f32.xlu0 %v1481
        %v1483 = vpop.xlane.xlu0 %1482
        %v1484 = vsel %vm812, %v1480, 0.0
        %1485 = vadd.xlane.f32.xlu0 %v1484
        %v1486 = vpop.xlane.xlu0 %1485
        %v1487 = vrcp.pop %v1483
        %v1488 = vrcp.pop %v1486
        %v1489 = vmul.f32 %v1478, %v1487
        %v1490 = vmul.f32 %v1480, %v1488
        %1491 = vrot.lane.b32.xlu0 %v650, 64
        %v1492 = vpop.permute.xlu0 %1491
        %v1495 = vsel %vm812, %v1489, 0
        %1497 = vmatprep.subr.mxu0 0.0
        %1498 = vmatpush1.msra.mxu0 %v1492
        %1499 = vmatprep.subr.mxu0 0.0
        %1500 = vmatpush1.msra.mxu0 0.0
        %1501 = vmatprep.subr.mxu0 0.0
        %1502 = vmatpush1.msra.mxu0 0.0
        %1503 = vmatprep.subr.mxu0 0.0
        %1504 = vmatpush1.msra.mxu0 0.0
        %1505 = vmatprep.subr.mxu0 0.0
        %1506 = vmatpush1.msra.mxu0 0.0
        %1507 = vmatprep.subr.mxu0 0.0
        %1508 = vmatpush1.msra.mxu0 0.0
        %1509 = vmatprep.subr.mxu0 0.0
        %1510 = vmatpush1.msra.mxu0 0.0
        %1511 = vmatprep.subr.mxu0 0.0
        %1512 = vmatpush1.msra.mxu0 0.0
        %1513 = vmatprep.subr.mxu0 0.0
        %1514 = vmatpush1.msra.mxu0 0.0
        %1515 = vmatprep.subr.mxu0 0.0
        %1516 = vmatpush1.msra.mxu0 0.0
        %1517 = vmatprep.subr.mxu0 0.0
        %1518 = vmatpush1.msra.mxu0 0.0
        %1519 = vmatprep.subr.mxu0 0.0
        %1520 = vmatpush1.msra.mxu0 0.0
        %1521 = vmatprep.subr.mxu0 0.0
        %1522 = vmatpush1.msra.mxu0 0.0
        %1523 = vmatprep.subr.mxu0 0.0
        %1524 = vmatpush1.msra.mxu0 0.0
        %1525 = vmatprep.subr.mxu0 0.0
        %1526 = vmatpush1.msra.mxu0 0.0
        %1527 = vmatprep.subr.mxu0 0.0
        %1528 = vmatpush1.msra.mxu0 0.0
        %1529 = vmatprep.subr.mxu0 0.0
        %1530 = vmatpush1.msra.mxu0 0.0
        %1531 = vmatprep.subr.mxu0 0.0
        %1532 = vmatpush1.msra.mxu0 0.0
        %1533 = vmatprep.subr.mxu0 0.0
        %1534 = vmatpush1.msra.mxu0 0.0
        %1535 = vmatprep.subr.mxu0 0.0
        %1536 = vmatpush1.msra.mxu0 0.0
        %1537 = vmatprep.subr.mxu0 0.0
        %1538 = vmatpush1.msra.mxu0 0.0
        %1539 = vmatprep.subr.mxu0 0.0
        %1540 = vmatpush1.msra.mxu0 0.0
        %1541 = vmatprep.subr.mxu0 0.0
        %1542 = vmatpush1.msra.mxu0 0.0
        %1543 = vmatprep.subr.mxu0 0.0
        %1544 = vmatpush1.msra.mxu0 0.0
        %1545 = vmatprep.subr.mxu0 0.0
        %1546 = vmatpush1.msra.mxu0 0.0
        %1547 = vmatprep.subr.mxu0 0.0
        %1548 = vmatpush1.msra.mxu0 0.0
        %1549 = vmatprep.subr.mxu0 0.0
        %1550 = vmatpush1.msra.mxu0 0.0
        %1551 = vmatprep.subr.mxu0 0.0
        %1552 = vmatpush1.msra.mxu0 0.0
        %1553 = vmatprep.subr.mxu0 0.0
        %1554 = vmatpush1.msra.mxu0 0.0
        %1555 = vmatprep.subr.mxu0 0.0
        %1556 = vmatpush1.msra.mxu0 0.0
        %1557 = vmatprep.subr.mxu0 0.0
        %1558 = vmatpush1.msra.mxu0 0.0
        %1559 = vmatprep.subr.mxu0 0.0
        %1560 = vmatpush1.msra.mxu0 0.0
        %1561 = vmatprep.mubr.f32.mxu0 0.0
        %1562 = vmatmul.mubr.f32.gmra.mrb[0].mxu0 %v1495
        %v1563 = vpop.f32.mrb[0].mxu0
        %v1564 = vadd.f32 0.0, %v1563
        %v1565 = vpop.f32.mrb[0].mxu0
        %1566 = vdwg.mxu0
        %1567 = vrot.lane.b32.xlu0 %v653, 64
        %v1568 = vpop.permute.xlu0 %1567
        %v1571 = vsel %vm812, %v1490, 0
        %1573 = vmatprep.subr.mxu0 0.0
        %1574 = vmatpush1.msra.mxu0 %v1568
        %1575 = vmatprep.subr.mxu0 0.0
        %1576 = vmatpush1.msra.mxu0 0.0
        %1577 = vmatprep.subr.mxu0 0.0
        %1578 = vmatpush1.msra.mxu0 0.0
        %1579 = vmatprep.subr.mxu0 0.0
        %1580 = vmatpush1.msra.mxu0 0.0
        %1581 = vmatprep.subr.mxu0 0.0
        %1582 = vmatpush1.msra.mxu0 0.0
        %1583 = vmatprep.subr.mxu0 0.0
        %1584 = vmatpush1.msra.mxu0 0.0
        %1585 = vmatprep.subr.mxu0 0.0
        %1586 = vmatpush1.msra.mxu0 0.0
        %1587 = vmatprep.subr.mxu0 0.0
        %1588 = vmatpush1.msra.mxu0 0.0
        %1589 = vmatprep.subr.mxu0 0.0
        %1590 = vmatpush1.msra.mxu0 0.0
        %1591 = vmatprep.subr.mxu0 0.0
        %1592 = vmatpush1.msra.mxu0 0.0
        %1593 = vmatprep.subr.mxu0 0.0
        %1594 = vmatpush1.msra.mxu0 0.0
        %1595 = vmatprep.subr.mxu0 0.0
        %1596 = vmatpush1.msra.mxu0 0.0
        %1597 = vmatprep.subr.mxu0 0.0
        %1598 = vmatpush1.msra.mxu0 0.0
        %1599 = vmatprep.subr.mxu0 0.0
        %1600 = vmatpush1.msra.mxu0 0.0
        %1601 = vmatprep.subr.mxu0 0.0
        %1602 = vmatpush1.msra.mxu0 0.0
        %1603 = vmatprep.subr.mxu0 0.0
        %1604 = vmatpush1.msra.mxu0 0.0
        %1605 = vmatprep.subr.mxu0 0.0
        %1606 = vmatpush1.msra.mxu0 0.0
        %1607 = vmatprep.subr.mxu0 0.0
        %1608 = vmatpush1.msra.mxu0 0.0
        %1609 = vmatprep.subr.mxu0 0.0
        %1610 = vmatpush1.msra.mxu0 0.0
        %1611 = vmatprep.subr.mxu0 0.0
        %1612 = vmatpush1.msra.mxu0 0.0
        %1613 = vmatprep.subr.mxu0 0.0
        %1614 = vmatpush1.msra.mxu0 0.0
        %1615 = vmatprep.subr.mxu0 0.0
        %1616 = vmatpush1.msra.mxu0 0.0
        %1617 = vmatprep.subr.mxu0 0.0
        %1618 = vmatpush1.msra.mxu0 0.0
        %1619 = vmatprep.subr.mxu0 0.0
        %1620 = vmatpush1.msra.mxu0 0.0
        %1621 = vmatprep.subr.mxu0 0.0
        %1622 = vmatpush1.msra.mxu0 0.0
        %1623 = vmatprep.subr.mxu0 0.0
        %1624 = vmatpush1.msra.mxu0 0.0
        %1625 = vmatprep.subr.mxu0 0.0
        %1626 = vmatpush1.msra.mxu0 0.0
        %1627 = vmatprep.subr.mxu0 0.0
        %1628 = vmatpush1.msra.mxu0 0.0
        %1629 = vmatprep.subr.mxu0 0.0
        %1630 = vmatpush1.msra.mxu0 0.0
        %1631 = vmatprep.subr.mxu0 0.0
        %1632 = vmatpush1.msra.mxu0 0.0
        %1633 = vmatprep.subr.mxu0 0.0
        %1634 = vmatpush1.msra.mxu0 0.0
        %1635 = vmatprep.subr.mxu0 0.0
        %1636 = vmatpush1.msra.mxu0 0.0
        %1637 = vmatprep.mubr.f32.mxu0 0.0
        %1638 = vmatmul.mubr.f32.gmra.mrb[0].mxu0 %v1571
        %v1639 = vpop.f32.mrb[0].mxu0
        %v1640 = vadd.f32 0.0, %v1639
        %v1641 = vpop.f32.mrb[0].mxu0
        %1642 = vdwg.mxu0
        %1643 = vrot.lane.b32.xlu0 %v657, 32
        %v1644 = vpop.permute.xlu0 %1643
        %1645 = vrot.lane.b32.xlu0 %v609, 32
        %v1646 = vpop.permute.xlu0 %1645
        %v1647 = vsel %vm659, %v1644, 0
        %v1649 = vsel %vm659, %v1646, 0
        %1651 = vmatprep.subr.mxu0 0.0
        %1652 = vmatpush1.xpose.msra.mxu0 %v1649
        %1653 = vmatprep.subr.mxu0 0.0
        %1654 = vmatpush1.xpose.msra.mxu0 0.0
        %1655 = vmatprep.subr.mxu0 0.0
        %1656 = vmatpush1.xpose.msra.mxu0 0.0
        %1657 = vmatprep.subr.mxu0 0.0
        %1658 = vmatpush1.xpose.msra.mxu0 0.0
        %1659 = vmatprep.subr.mxu0 0.0
        %1660 = vmatpush1.xpose.msra.mxu0 0.0
        %1661 = vmatprep.subr.mxu0 0.0
        %1662 = vmatpush1.xpose.msra.mxu0 0.0
        %1663 = vmatprep.subr.mxu0 0.0
        %1664 = vmatpush1.xpose.msra.mxu0 0.0
        %1665 = vmatprep.subr.mxu0 0.0
        %1666 = vmatpush1.xpose.msra.mxu0 0.0
        %1667 = vmatprep.subr.mxu0 0.0
        %1668 = vmatpush1.xpose.msra.mxu0 0.0
        %1669 = vmatprep.subr.mxu0 0.0
        %1670 = vmatpush1.xpose.msra.mxu0 0.0
        %1671 = vmatprep.subr.mxu0 0.0
        %1672 = vmatpush1.xpose.msra.mxu0 0.0
        %1673 = vmatprep.subr.mxu0 0.0
        %1674 = vmatpush1.xpose.msra.mxu0 0.0
        %1675 = vmatprep.subr.mxu0 0.0
        %1676 = vmatpush1.xpose.msra.mxu0 0.0
        %1677 = vmatprep.subr.mxu0 0.0
        %1678 = vmatpush1.xpose.msra.mxu0 0.0
        %1679 = vmatprep.subr.mxu0 0.0
        %1680 = vmatpush1.xpose.msra.mxu0 0.0
        %1681 = vmatprep.subr.mxu0 0.0
        %1682 = vmatpush1.xpose.msra.mxu0 0.0
        %1683 = vmatprep.subr.mxu0 0.0
        %1684 = vmatpush1.xpose.msra.mxu0 0.0
        %1685 = vmatprep.subr.mxu0 0.0
        %1686 = vmatpush1.xpose.msra.mxu0 0.0
        %1687 = vmatprep.subr.mxu0 0.0
        %1688 = vmatpush1.xpose.msra.mxu0 0.0
        %1689 = vmatprep.subr.mxu0 0.0
        %1690 = vmatpush1.xpose.msra.mxu0 0.0
        %1691 = vmatprep.subr.mxu0 0.0
        %1692 = vmatpush1.xpose.msra.mxu0 0.0
        %1693 = vmatprep.subr.mxu0 0.0
        %1694 = vmatpush1.xpose.msra.mxu0 0.0
        %1695 = vmatprep.subr.mxu0 0.0
        %1696 = vmatpush1.xpose.msra.mxu0 0.0
        %1697 = vmatprep.subr.mxu0 0.0
        %1698 = vmatpush1.xpose.msra.mxu0 0.0
        %1699 = vmatprep.subr.mxu0 0.0
        %1700 = vmatpush1.xpose.msra.mxu0 0.0
        %1701 = vmatprep.subr.mxu0 0.0
        %1702 = vmatpush1.xpose.msra.mxu0 0.0
        %1703 = vmatprep.subr.mxu0 0.0
        %1704 = vmatpush1.xpose.msra.mxu0 0.0
        %1705 = vmatprep.subr.mxu0 0.0
        %1706 = vmatpush1.xpose.msra.mxu0 0.0
        %1707 = vmatprep.subr.mxu0 0.0
        %1708 = vmatpush1.xpose.msra.mxu0 0.0
        %1709 = vmatprep.subr.mxu0 0.0
        %1710 = vmatpush1.xpose.msra.mxu0 0.0
        %1711 = vmatprep.subr.mxu0 0.0
        %1712 = vmatpush1.xpose.msra.mxu0 0.0
        %1713 = vmatprep.subr.mxu0 0.0
        %1714 = vmatpush1.xpose.msra.mxu0 0.0
        %1715 = vmatprep.mubr.f32.mxu0 0.0
        %1716 = vmatmul.mubr.f32.gmra.mrb[0].mxu0 %v1647
        %v1717 = vpop.f32.mrb[0].mxu0
        %v1718 = vadd.f32 %v656, %v1717
        %v1719 = vpop.f32.mrb[0].mxu0
        %1720 = vdwg.mxu0
        %1721 = vrot.lane.b32.xlu0 %v658, 32
        %v1722 = vpop.permute.xlu0 %1721
        %1723 = vrot.lane.b32.xlu0 %v613, 32
        %v1724 = vpop.permute.xlu0 %1723
        %v1725 = vsel %vm659, %v1722, 0
        %v1727 = vsel %vm659, %v1724, 0
        %1729 = vmatprep.subr.mxu0 0.0
        %1730 = vmatpush1.xpose.msra.mxu0 %v1727
        %1731 = vmatprep.subr.mxu0 0.0
        %1732 = vmatpush1.xpose.msra.mxu0 0.0
        %1733 = vmatprep.subr.mxu0 0.0
        %1734 = vmatpush1.xpose.msra.mxu0 0.0
        %1735 = vmatprep.subr.mxu0 0.0
        %1736 = vmatpush1.xpose.msra.mxu0 0.0
        %1737 = vmatprep.subr.mxu0 0.0
        %1738 = vmatpush1.xpose.msra.mxu0 0.0
        %1739 = vmatprep.subr.mxu0 0.0
        %1740 = vmatpush1.xpose.msra.mxu0 0.0
        %1741 = vmatprep.subr.mxu0 0.0
        %1742 = vmatpush1.xpose.msra.mxu0 0.0
        %1743 = vmatprep.subr.mxu0 0.0
        %1744 = vmatpush1.xpose.msra.mxu0 0.0
        %1745 = vmatprep.subr.mxu0 0.0
        %1746 = vmatpush1.xpose.msra.mxu0 0.0
        %1747 = vmatprep.subr.mxu0 0.0
        %1748 = vmatpush1.xpose.msra.mxu0 0.0
        %1749 = vmatprep.subr.mxu0 0.0
        %1750 = vmatpush1.xpose.msra.mxu0 0.0
        %1751 = vmatprep.subr.mxu0 0.0
        %1752 = vmatpush1.xpose.msra.mxu0 0.0
        %1753 = vmatprep.subr.mxu0 0.0
        %1754 = vmatpush1.xpose.msra.mxu0 0.0
        %1755 = vmatprep.subr.mxu0 0.0
        %1756 = vmatpush1.xpose.msra.mxu0 0.0
        %1757 = vmatprep.subr.mxu0 0.0
        %1758 = vmatpush1.xpose.msra.mxu0 0.0
        %1759 = vmatprep.subr.mxu0 0.0
        %1760 = vmatpush1.xpose.msra.mxu0 0.0
        %1761 = vmatprep.subr.mxu0 0.0
        %1762 = vmatpush1.xpose.msra.mxu0 0.0
        %1763 = vmatprep.subr.mxu0 0.0
        %1764 = vmatpush1.xpose.msra.mxu0 0.0
        %1765 = vmatprep.subr.mxu0 0.0
        %1766 = vmatpush1.xpose.msra.mxu0 0.0
        %1767 = vmatprep.subr.mxu0 0.0
        %1768 = vmatpush1.xpose.msra.mxu0 0.0
        %1769 = vmatprep.subr.mxu0 0.0
        %1770 = vmatpush1.xpose.msra.mxu0 0.0
        %1771 = vmatprep.subr.mxu0 0.0
        %1772 = vmatpush1.xpose.msra.mxu0 0.0
        %1773 = vmatprep.subr.mxu0 0.0
        %1774 = vmatpush1.xpose.msra.mxu0 0.0
        %1775 = vmatprep.subr.mxu0 0.0
        %1776 = vmatpush1.xpose.msra.mxu0 0.0
        %1777 = vmatprep.subr.mxu0 0.0
        %1778 = vmatpush1.xpose.msra.mxu0 0.0
        %1779 = vmatprep.subr.mxu0 0.0
        %1780 = vmatpush1.xpose.msra.mxu0 0.0
        %1781 = vmatprep.subr.mxu0 0.0
        %1782 = vmatpush1.xpose.msra.mxu0 0.0
        %1783 = vmatprep.subr.mxu0 0.0
        %1784 = vmatpush1.xpose.msra.mxu0 0.0
        %1785 = vmatprep.subr.mxu0 0.0
        %1786 = vmatpush1.xpose.msra.mxu0 0.0
        %1787 = vmatprep.subr.mxu0 0.0
        %1788 = vmatpush1.xpose.msra.mxu0 0.0
        %1789 = vmatprep.subr.mxu0 0.0
        %1790 = vmatpush1.xpose.msra.mxu0 0.0
        %1791 = vmatprep.subr.mxu0 0.0
        %1792 = vmatpush1.xpose.msra.mxu0 0.0
        %1793 = vmatprep.mubr.f32.mxu0 0.0
        %1794 = vmatmul.mubr.f32.gmra.mrb[0].mxu0 %v1725
        %v1795 = vpop.f32.mrb[0].mxu0
        %v1796 = vadd.f32 %v656, %v1795
        %v1797 = vpop.f32.mrb[0].mxu0
        %1798 = vdwg.mxu0
        %v1799 = vsel %vm812, %v1718, -inf
        %1800 = vmax.xlane.f32.xlu0 %v1799
        %v1801 = vpop.xlane.xlu0 %1800
        %v1802 = vsel %vm812, %v1796, -inf
        %1803 = vmax.xlane.f32.xlu0 %v1802
        %v1804 = vpop.xlane.xlu0 %1803
        %v1805 = vsub.f32 %v1718, %v1801
        %v1806 = vsub.f32 %v1796, %v1804
        %v1807 = vmul.f32 %v1805, 1.442695
        %v1808 = vpow.pop %v1807
        %v1809 = vmul.f32 %v1806, 1.442695
        %v1810 = vpow.pop %v1809
        %v1811 = vsel %vm812, %v1808, 0.0
        %1812 = vadd.xlane.f32.xlu0 %v1811
        %v1813 = vpop.xlane.xlu0 %1812
        %v1814 = vsel %vm812, %v1810, 0.0
        %1815 = vadd.xlane.f32.xlu0 %v1814
        %v1816 = vpop.xlane.xlu0 %1815
        %v1817 = vrcp.pop %v1813
        %v1818 = vrcp.pop %v1816
        %v1819 = vmul.f32 %v1808, %v1817
        %v1820 = vmul.f32 %v1810, %v1818
        %1821 = vrot.lane.b32.xlu0 %v650, 32
        %v1822 = vpop.permute.xlu0 %1821
        %v1825 = vsel %vm812, %v1819, 0
        %1827 = vmatprep.subr.mxu0 0.0
        %1828 = vmatpush1.msra.mxu0 %v1822
        %1829 = vmatprep.subr.mxu0 0.0
        %1830 = vmatpush1.msra.mxu0 0.0
        %1831 = vmatprep.subr.mxu0 0.0
        %1832 = vmatpush1.msra.mxu0 0.0
        %1833 = vmatprep.subr.mxu0 0.0
        %1834 = vmatpush1.msra.mxu0 0.0
        %1835 = vmatprep.subr.mxu0 0.0
        %1836 = vmatpush1.msra.mxu0 0.0
        %1837 = vmatprep.subr.mxu0 0.0
        %1838 = vmatpush1.msra.mxu0 0.0
        %1839 = vmatprep.subr.mxu0 0.0
        %1840 = vmatpush1.msra.mxu0 0.0
        %1841 = vmatprep.subr.mxu0 0.0
        %1842 = vmatpush1.msra.mxu0 0.0
        %1843 = vmatprep.subr.mxu0 0.0
        %1844 = vmatpush1.msra.mxu0 0.0
        %1845 = vmatprep.subr.mxu0 0.0
        %1846 = vmatpush1.msra.mxu0 0.0
        %1847 = vmatprep.subr.mxu0 0.0
        %1848 = vmatpush1.msra.mxu0 0.0
        %1849 = vmatprep.subr.mxu0 0.0
        %1850 = vmatpush1.msra.mxu0 0.0
        %1851 = vmatprep.subr.mxu0 0.0
        %1852 = vmatpush1.msra.mxu0 0.0
        %1853 = vmatprep.subr.mxu0 0.0
        %1854 = vmatpush1.msra.mxu0 0.0
        %1855 = vmatprep.subr.mxu0 0.0
        %1856 = vmatpush1.msra.mxu0 0.0
        %1857 = vmatprep.subr.mxu0 0.0
        %1858 = vmatpush1.msra.mxu0 0.0
        %1859 = vmatprep.subr.mxu0 0.0
        %1860 = vmatpush1.msra.mxu0 0.0
        %1861 = vmatprep.subr.mxu0 0.0
        %1862 = vmatpush1.msra.mxu0 0.0
        %1863 = vmatprep.subr.mxu0 0.0
        %1864 = vmatpush1.msra.mxu0 0.0
        %1865 = vmatprep.subr.mxu0 0.0
        %1866 = vmatpush1.msra.mxu0 0.0
        %1867 = vmatprep.subr.mxu0 0.0
        %1868 = vmatpush1.msra.mxu0 0.0
        %1869 = vmatprep.subr.mxu0 0.0
        %1870 = vmatpush1.msra.mxu0 0.0
        %1871 = vmatprep.subr.mxu0 0.0
        %1872 = vmatpush1.msra.mxu0 0.0
        %1873 = vmatprep.subr.mxu0 0.0
        %1874 = vmatpush1.msra.mxu0 0.0
        %1875 = vmatprep.subr.mxu0 0.0
        %1876 = vmatpush1.msra.mxu0 0.0
        %1877 = vmatprep.subr.mxu0 0.0
        %1878 = vmatpush1.msra.mxu0 0.0
        %1879 = vmatprep.subr.mxu0 0.0
        %1880 = vmatpush1.msra.mxu0 0.0
        %1881 = vmatprep.subr.mxu0 0.0
        %1882 = vmatpush1.msra.mxu0 0.0
        %1883 = vmatprep.subr.mxu0 0.0
        %1884 = vmatpush1.msra.mxu0 0.0
        %1885 = vmatprep.subr.mxu0 0.0
        %1886 = vmatpush1.msra.mxu0 0.0
        %1887 = vmatprep.subr.mxu0 0.0
        %1888 = vmatpush1.msra.mxu0 0.0
        %1889 = vmatprep.subr.mxu0 0.0
        %1890 = vmatpush1.msra.mxu0 0.0
        %1891 = vmatprep.mubr.f32.mxu0 0.0
        %1892 = vmatmul.mubr.f32.gmra.mrb[0].mxu0 %v1825
        %v1893 = vpop.f32.mrb[0].mxu0
        %v1894 = vadd.f32 0.0, %v1893
        %v1895 = vpop.f32.mrb[0].mxu0
        %1896 = vdwg.mxu0
        %1897 = vrot.lane.b32.xlu0 %v653, 32
        %v1898 = vpop.permute.xlu0 %1897
        %v1901 = vsel %vm812, %v1820, 0
        %1903 = vmatprep.subr.mxu0 0.0
        %1904 = vmatpush1.msra.mxu0 %v1898
        %1905 = vmatprep.subr.mxu0 0.0
        %1906 = vmatpush1.msra.mxu0 0.0
        %1907 = vmatprep.subr.mxu0 0.0
        %1908 = vmatpush1.msra.mxu0 0.0
        %1909 = vmatprep.subr.mxu0 0.0
        %1910 = vmatpush1.msra.mxu0 0.0
        %1911 = vmatprep.subr.mxu0 0.0
        %1912 = vmatpush1.msra.mxu0 0.0
        %1913 = vmatprep.subr.mxu0 0.0
        %1914 = vmatpush1.msra.mxu0 0.0
        %1915 = vmatprep.subr.mxu0 0.0
        %1916 = vmatpush1.msra.mxu0 0.0
        %1917 = vmatprep.subr.mxu0 0.0
        %1918 = vmatpush1.msra.mxu0 0.0
        %1919 = vmatprep.subr.mxu0 0.0
        %1920 = vmatpush1.msra.mxu0 0.0
        %1921 = vmatprep.subr.mxu0 0.0
        %1922 = vmatpush1.msra.mxu0 0.0
        %1923 = vmatprep.subr.mxu0 0.0
        %1924 = vmatpush1.msra.mxu0 0.0
        %1925 = vmatprep.subr.mxu0 0.0
        %1926 = vmatpush1.msra.mxu0 0.0
        %1927 = vmatprep.subr.mxu0 0.0
        %1928 = vmatpush1.msra.mxu0 0.0
        %1929 = vmatprep.subr.mxu0 0.0
        %1930 = vmatpush1.msra.mxu0 0.0
        %1931 = vmatprep.subr.mxu0 0.0
        %1932 = vmatpush1.msra.mxu0 0.0
        %1933 = vmatprep.subr.mxu0 0.0
        %1934 = vmatpush1.msra.mxu0 0.0
        %1935 = vmatprep.subr.mxu0 0.0
        %1936 = vmatpush1.msra.mxu0 0.0
        %1937 = vmatprep.subr.mxu0 0.0
        %1938 = vmatpush1.msra.mxu0 0.0
        %1939 = vmatprep.subr.mxu0 0.0
        %1940 = vmatpush1.msra.mxu0 0.0
        %1941 = vmatprep.subr.mxu0 0.0
        %1942 = vmatpush1.msra.mxu0 0.0
        %1943 = vmatprep.subr.mxu0 0.0
        %1944 = vmatpush1.msra.mxu0 0.0
        %1945 = vmatprep.subr.mxu0 0.0
        %1946 = vmatpush1.msra.mxu0 0.0
        %1947 = vmatprep.subr.mxu0 0.0
        %1948 = vmatpush1.msra.mxu0 0.0
        %1949 = vmatprep.subr.mxu0 0.0
        %1950 = vmatpush1.msra.mxu0 0.0
        %1951 = vmatprep.subr.mxu0 0.0
        %1952 = vmatpush1.msra.mxu0 0.0
        %1953 = vmatprep.subr.mxu0 0.0
        %1954 = vmatpush1.msra.mxu0 0.0
        %1955 = vmatprep.subr.mxu0 0.0
        %1956 = vmatpush1.msra.mxu0 0.0
        %1957 = vmatprep.subr.mxu0 0.0
        %1958 = vmatpush1.msra.mxu0 0.0
        %1959 = vmatprep.subr.mxu0 0.0
        %1960 = vmatpush1.msra.mxu0 0.0
        %1961 = vmatprep.subr.mxu0 0.0
        %1962 = vmatpush1.msra.mxu0 0.0
        %1963 = vmatprep.subr.mxu0 0.0
        %1964 = vmatpush1.msra.mxu0 0.0
        %1965 = vmatprep.subr.mxu0 0.0
        %1966 = vmatpush1.msra.mxu0 0.0
        %1967 = vmatprep.mubr.f32.mxu0 0.0
        %1968 = vmatmul.mubr.f32.gmra.mrb[0].mxu0 %v1901
        %v1969 = vpop.f32.mrb[0].mxu0
        %v1970 = vadd.f32 0.0, %v1969
        %v1971 = vpop.f32.mrb[0].mxu0
        %1972 = vdwg.mxu0
        %1975 = vrot.lane.b32.xlu0 %v1233, 32
        %v1976 = vpop.permute.xlu0 %1975
        %1977 = vrot.lane.b32.xlu0 %v1310, 32
        %v1978 = vpop.permute.xlu0 %1977
        %1983 = vrot.lane.b32.xlu0 %v1564, 64
        %v1984 = vpop.permute.xlu0 %1983
        %1985 = vrot.lane.b32.xlu0 %v1640, 64
        %v1986 = vpop.permute.xlu0 %1985
        %1991 = vrot.lane.b32.xlu0 %v1894, 96
        %v1992 = vpop.permute.xlu0 %1991
        %1993 = vrot.lane.b32.xlu0 %v1970, 96
        %v1994 = vpop.permute.xlu0 %1993
        %v1997 = vsel %vm659, %v905, %v1976
        %v1998 = vsel %vm659, %v978, %v1978
        %vm1999 = vcmask 523264
        %v2000 = vsel %vm1999, %v1997, %v1984
        %v2001 = vsel %vm1999, %v1998, %v1986
        %vm2002 = vcmask 785408
        %v2003 = vsel %vm2002, %v2000, %v1992
        %v2004 = vsel %vm2002, %v2001, %v1994
        %v2005 = vpack.c.bf16 %v2004, %v2003
        %v2006 = vunpack.c.h.b16 %v329
        %v2007 = vunpack.c.h.b16 %v333
        %v2008 = vunpack.c.h.b16 %v337
        %v2009 = vunpack.c.h.b16 %v341
        %v2010 = vunpack.c.h.b16 %v345
        %v2011 = vunpack.c.h.b16 %v349
        %v2012 = vunpack.c.h.b16 %v353
        %v2013 = vunpack.c.h.b16 %v357
        %v2014 = vunpack.c.h.b16 %v361
        %v2015 = vunpack.c.h.b16 %v365
        %v2016 = vunpack.c.h.b16 %v369
        %v2017 = vunpack.c.h.b16 %v373
        %v2018 = vunpack.c.h.b16 %v377
        %v2019 = vunpack.c.h.b16 %v381
        %v2020 = vunpack.c.h.b16 %v385
        %v2021 = vunpack.c.h.b16 %v389
        %v2022 = vpack.c.b16 %v2007, %v2006
        %v2023 = vpack.c.b16 %v2009, %v2008
        %v2024 = vpack.c.b16 %v2011, %v2010
        %v2025 = vpack.c.b16 %v2013, %v2012
        %v2026 = vpack.c.b16 %v2015, %v2014
        %v2027 = vpack.c.b16 %v2017, %v2016
        %v2028 = vpack.c.b16 %v2019, %v2018
        %v2029 = vpack.c.b16 %v2021, %v2020
        %2038 = vmatprep.subr.bf16.mxu0 0
        %2039 = vmatpush1.bf16.msra.mxu0 %v2022
        %2040 = vmatprep.subr.bf16.mxu0 0
        %2041 = vmatpush1.bf16.msra.mxu0 %v2023
        %2042 = vmatprep.subr.bf16.mxu0 0
        %2043 = vmatpush1.bf16.msra.mxu0 %v2024
        %2044 = vmatprep.subr.bf16.mxu0 0
        %2045 = vmatpush1.bf16.msra.mxu0 %v2025
        %2046 = vmatprep.subr.bf16.mxu0 0
        %2047 = vmatpush1.bf16.msra.mxu0 %v2026
        %2048 = vmatprep.subr.bf16.mxu0 0
        %2049 = vmatpush1.bf16.msra.mxu0 %v2027
        %2050 = vmatprep.subr.bf16.mxu0 0
        %2051 = vmatpush1.bf16.msra.mxu0 %v2028
        %2052 = vmatprep.subr.bf16.mxu0 0
        %2053 = vmatpush1.bf16.msra.mxu0 %v2029
        %2054 = vmatprep.subr.bf16.mxu0 0
        %2055 = vmatpush1.bf16.msra.mxu0 0
        %2056 = vmatprep.subr.bf16.mxu0 0
        %2057 = vmatpush1.bf16.msra.mxu0 0
        %2058 = vmatprep.subr.bf16.mxu0 0
        %2059 = vmatpush1.bf16.msra.mxu0 0
        %2060 = vmatprep.subr.bf16.mxu0 0
        %2061 = vmatpush1.bf16.msra.mxu0 0
        %2062 = vmatprep.subr.bf16.mxu0 0
        %2063 = vmatpush1.bf16.msra.mxu0 0
        %2064 = vmatprep.subr.bf16.mxu0 0
        %2065 = vmatpush1.bf16.msra.mxu0 0
        %2066 = vmatprep.subr.bf16.mxu0 0
        %2067 = vmatpush1.bf16.msra.mxu0 0
        %2068 = vmatprep.subr.bf16.mxu0 0
        %2069 = vmatpush1.bf16.msra.mxu0 0
        %2070 = vmatprep.mubr.bf16.mxu0 0
        %2071 = vmatmul.mubr.bf16.gmra.mrb[0].mxu0 %v2005
        %v2072 = vpop.f32.mrb[0].mxu0
        %v2073 = vadd.f32 0.0, %v2072
        %v2074 = vpop.f32.mrb[0].mxu0
        %v2075 = vpop.f32.mrb[0].mxu0
        %v2076 = vadd.f32 0.0, %v2075
        %v2077 = vpop.f32.mrb[0].mxu0
        %2078 = vdwg.mxu0
        %v2079 = vadd.f32 %v326, %v2073
        %v2080 = vadd.f32 %v327, %v2076
        %v2081 = vlaneseq
        %v2082 = vshrl.u32 %v2081, 7
        %v2083 = vsub.s32 4, %v2082
        %v2084 = vrot.slane %v392, %v2083
        %v2085 = vadd.f32 %v2079, %v2084
        %v2086 = vadd.f32 %v2080, %v2084
        %2087 = vadd.xlane.f32.xlu0 %v2085
        %v2088 = vpop.xlane.xlu0 %2087
        %2089 = vadd.xlane.f32.xlu0 %v2086
        %v2090 = vpop.xlane.xlu0 %2089
        %v2091 = vmul.f32 %v2088, %v400
        %v2092 = vmul.f32 %v2090, %v400
        %v2093 = vsub.f32 %v2085, %v2091
        %v2094 = vsub.f32 %v2086, %v2092
        %v2095 = vmul.f32 %v2093, %v2093
        %v2096 = vmul.f32 %v2094, %v2094
        %2097 = vadd.xlane.f32.xlu0 %v2095
        %v2098 = vpop.xlane.xlu0 %2097
        %2099 = vadd.xlane.f32.xlu0 %v2096
        %v2100 = vpop.xlane.xlu0 %2099
        %v2101 = vmul.f32 %v2098, %v400
        %v2102 = vmul.f32 %v2100, %v400
        %v2103 = vadd.f32 %v2101, 1e-05
        %v2104 = vadd.f32 %v2102, 1e-05
        %v2105 = vrsqrt.pop %v2103
        %v2106 = vrsqrt.pop %v2104
        %v2107 = vmul.f32 %v2093, %v2105
        %v2108 = vmul.f32 %v2094, %v2106
        %v2109 = vlaneseq
        %v2110 = vshrl.u32 %v2109, 7
        %v2111 = vsub.s32 2, %v2110
        %v2112 = vrot.slane %v392, %v2111
        %v2113 = vmul.f32 %v2107, %v2112
        %v2114 = vmul.f32 %v2108, %v2112
        %v2115 = vlaneseq
        %v2116 = vshrl.u32 %v2115, 7
        %v2117 = vsub.s32 3, %v2116
        %v2118 = vrot.slane %v392, %v2117
        %v2119 = vadd.f32 %v2113, %v2118
        %v2120 = vadd.f32 %v2114, %v2118
        %v2121 = vpack.c.bf16 %v2120, %v2119
        %v2122 = vlaneseq
        %v2123 = vshrl.u32 %v2122, 7
        %v2124 = vsub.s32 7, %v2123
        %v2125 = vrot.slane %v392, %v2124
        %v2126 = vlaneseq
        %v2127 = vshrl.u32 %v2126, 7
        %v2128 = vsub.s32 7, %v2127
        %v2129 = vrot.slane %v393, %v2128
        %v2130 = vlaneseq
        %v2131 = vshrl.u32 %v2130, 7
        %v2132 = vsub.s32 7, %v2131
        %v2133 = vrot.slane %v394, %v2132
        %v2134 = vlaneseq
        %v2135 = vshrl.u32 %v2134, 7
        %v2136 = vsub.s32 7, %v2135
        %v2137 = vrot.slane %v395, %v2136
        %v2170 = vunpack.c.l.b16 %v330
        %v2171 = vunpack.c.h.b16 %v330
        %v2172 = vunpack.c.l.b16 %v331
        %v2173 = vunpack.c.h.b16 %v331
        %v2174 = vunpack.c.l.b16 %v334
        %v2175 = vunpack.c.h.b16 %v334
        %v2176 = vunpack.c.l.b16 %v335
        %v2177 = vunpack.c.h.b16 %v335
        %v2178 = vunpack.c.l.b16 %v338
        %v2179 = vunpack.c.h.b16 %v338
        %v2180 = vunpack.c.l.b16 %v339
        %v2181 = vunpack.c.h.b16 %v339
        %v2182 = vunpack.c.l.b16 %v342
        %v2183 = vunpack.c.h.b16 %v342
        %v2184 = vunpack.c.l.b16 %v343
        %v2185 = vunpack.c.h.b16 %v343
        %v2186 = vunpack.c.l.b16 %v346
        %v2187 = vunpack.c.h.b16 %v346
        %v2188 = vunpack.c.l.b16 %v347
        %v2189 = vunpack.c.h.b16 %v347
        %v2190 = vunpack.c.l.b16 %v350
        %v2191 = vunpack.c.h.b16 %v350
        %v2192 = vunpack.c.l.b16 %v351
        %v2193 = vunpack.c.h.b16 %v351
        %v2194 = vunpack.c.l.b16 %v354
        %v2195 = vunpack.c.h.b16 %v354
        %v2196 = vunpack.c.l.b16 %v355
        %v2197 = vunpack.c.h.b16 %v355
        %v2198 = vunpack.c.l.b16 %v358
        %v2199 = vunpack.c.h.b16 %v358
        %v2200 = vunpack.c.l.b16 %v359
        %v2201 = vunpack.c.h.b16 %v359
        %v2202 = vunpack.c.l.b16 %v362
        %v2203 = vunpack.c.h.b16 %v362
        %v2204 = vunpack.c.l.b16 %v363
        %v2205 = vunpack.c.h.b16 %v363
        %v2206 = vunpack.c.l.b16 %v366
        %v2207 = vunpack.c.h.b16 %v366
        %v2208 = vunpack.c.l.b16 %v367
        %v2209 = vunpack.c.h.b16 %v367
        %v2210 = vunpack.c.l.b16 %v370
        %v2211 = vunpack.c.h.b16 %v370
        %v2212 = vunpack.c.l.b16 %v371
        %v2213 = vunpack.c.h.b16 %v371
        %v2214 = vunpack.c.l.b16 %v374
        %v2215 = vunpack.c.h.b16 %v374
        %v2216 = vunpack.c.l.b16 %v375
        %v2217 = vunpack.c.h.b16 %v375
        %v2218 = vunpack.c.l.b16 %v378
        %v2219 = vunpack.c.h.b16 %v378
        %v2220 = vunpack.c.l.b16 %v379
        %v2221 = vunpack.c.h.b16 %v379
        %v2222 = vunpack.c.l.b16 %v382
        %v2223 = vunpack.c.h.b16 %v382
        %v2224 = vunpack.c.l.b16 %v383
        %v2225 = vunpack.c.h.b16 %v383
        %v2226 = vunpack.c.l.b16 %v386
        %v2227 = vunpack.c.h.b16 %v386
        %v2228 = vunpack.c.l.b16 %v387
        %v2229 = vunpack.c.h.b16 %v387
        %v2230 = vunpack.c.l.b16 %v390
        %v2231 = vunpack.c.h.b16 %v390
        %v2232 = vunpack.c.l.b16 %v391
        %v2233 = vunpack.c.h.b16 %v391
        %v2234 = vpack.c.b16 %v2174, %v2170
        %v2235 = vpack.c.b16 %v2175, %v2171
        %v2236 = vpack.c.b16 %v2176, %v2172
        %v2237 = vpack.c.b16 %v2177, %v2173
        %v2238 = vpack.c.b16 %v2182, %v2178
        %v2239 = vpack.c.b16 %v2183, %v2179
        %v2240 = vpack.c.b16 %v2184, %v2180
        %v2241 = vpack.c.b16 %v2185, %v2181
        %v2242 = vpack.c.b16 %v2190, %v2186
        %v2243 = vpack.c.b16 %v2191, %v2187
        %v2244 = vpack.c.b16 %v2192, %v2188
        %v2245 = vpack.c.b16 %v2193, %v2189
        %v2246 = vpack.c.b16 %v2198, %v2194
        %v2247 = vpack.c.b16 %v2199, %v2195
        %v2248 = vpack.c.b16 %v2200, %v2196
        %v2249 = vpack.c.b16 %v2201, %v2197
        %v2250 = vpack.c.b16 %v2206, %v2202
        %v2251 = vpack.c.b16 %v2207, %v2203
        %v2252 = vpack.c.b16 %v2208, %v2204
        %v2253 = vpack.c.b16 %v2209, %v2205
        %v2254 = vpack.c.b16 %v2214, %v2210
        %v2255 = vpack.c.b16 %v2215, %v2211
        %v2256 = vpack.c.b16 %v2216, %v2212
        %v2257 = vpack.c.b16 %v2217, %v2213
        %v2258 = vpack.c.b16 %v2222, %v2218
        %v2259 = vpack.c.b16 %v2223, %v2219
        %v2260 = vpack.c.b16 %v2224, %v2220
        %v2261 = vpack.c.b16 %v2225, %v2221
        %v2262 = vpack.c.b16 %v2230, %v2226
        %v2263 = vpack.c.b16 %v2231, %v2227
        %v2264 = vpack.c.b16 %v2232, %v2228
        %v2265 = vpack.c.b16 %v2233, %v2229
        %2298 = vmatprep.subr.bf16.mxu0 %v2235
        %2299 = vmatpush1.bf16.msra.mxu0 %v2234
        %2300 = vmatprep.subr.bf16.mxu0 %v2239
        %2301 = vmatpush1.bf16.msra.mxu0 %v2238
        %2302 = vmatprep.subr.bf16.mxu0 %v2243
        %2303 = vmatpush1.bf16.msra.mxu0 %v2242
        %2304 = vmatprep.subr.bf16.mxu0 %v2247
        %2305 = vmatpush1.bf16.msra.mxu0 %v2246
        %2306 = vmatprep.subr.bf16.mxu0 %v2251
        %2307 = vmatpush1.bf16.msra.mxu0 %v2250
        %2308 = vmatprep.subr.bf16.mxu0 %v2255
        %2309 = vmatpush1.bf16.msra.mxu0 %v2254
        %2310 = vmatprep.subr.bf16.mxu0 %v2259
        %2311 = vmatpush1.bf16.msra.mxu0 %v2258
        %2312 = vmatprep.subr.bf16.mxu0 %v2263
        %2313 = vmatpush1.bf16.msra.mxu0 %v2262
        %2314 = vmatprep.subr.bf16.mxu0 0
        %2315 = vmatpush1.bf16.msra.mxu0 0
        %2316 = vmatprep.subr.bf16.mxu0 0
        %2317 = vmatpush1.bf16.msra.mxu0 0
        %2318 = vmatprep.subr.bf16.mxu0 0
        %2319 = vmatpush1.bf16.msra.mxu0 0
        %2320 = vmatprep.subr.bf16.mxu0 0
        %2321 = vmatpush1.bf16.msra.mxu0 0
        %2322 = vmatprep.subr.bf16.mxu0 0
        %2323 = vmatpush1.bf16.msra.mxu0 0
        %2324 = vmatprep.subr.bf16.mxu0 0
        %2325 = vmatpush1.bf16.msra.mxu0 0
        %2326 = vmatprep.subr.bf16.mxu0 0
        %2327 = vmatpush1.bf16.msra.mxu0 0
        %2328 = vmatprep.subr.bf16.mxu0 0
        %2329 = vmatpush1.bf16.msra.mxu0 0
        %2330 = vmatprep.mubr.bf16.mxu0 0
        %2331 = vmatmul.mubr.bf16.gmra.mrb[0].mxu0 %v2121
        %v2332 = vpop.f32.mrb[0].mxu0
        %v2333 = vadd.f32 %v2125, %v2332
        %v2334 = vpop.f32.mrb[0].mxu0
        %v2335 = vadd.f32 %v2129, %v2334
        %v2336 = vpop.f32.mrb[0].mxu0
        %v2337 = vadd.f32 %v2125, %v2336
        %v2338 = vpop.f32.mrb[0].mxu0
        %v2339 = vadd.f32 %v2129, %v2338
        %2340 = vdwg.mxu0
        %2341 = vmatprep.subr.bf16.mxu0 %v2237
        %2342 = vmatpush1.bf16.msra.mxu0 %v2236
        %2343 = vmatprep.subr.bf16.mxu0 %v2241
        %2344 = vmatpush1.bf16.msra.mxu0 %v2240
        %2345 = vmatprep.subr.bf16.mxu0 %v2245
        %2346 = vmatpush1.bf16.msra.mxu0 %v2244
        %2347 = vmatprep.subr.bf16.mxu0 %v2249
        %2348 = vmatpush1.bf16.msra.mxu0 %v2248
        %2349 = vmatprep.subr.bf16.mxu0 %v2253
        %2350 = vmatpush1.bf16.msra.mxu0 %v2252
        %2351 = vmatprep.subr.bf16.mxu0 %v2257
        %2352 = vmatpush1.bf16.msra.mxu0 %v2256
        %2353 = vmatprep.subr.bf16.mxu0 %v2261
        %2354 = vmatpush1.bf16.msra.mxu0 %v2260
        %2355 = vmatprep.subr.bf16.mxu0 %v2265
        %2356 = vmatpush1.bf16.msra.mxu0 %v2264
        %2357 = vmatprep.subr.bf16.mxu0 0
        %2358 = vmatpush1.bf16.msra.mxu0 0
        %2359 = vmatprep.subr.bf16.mxu0 0
        %2360 = vmatpush1.bf16.msra.mxu0 0
        %2361 = vmatprep.subr.bf16.mxu0 0
        %2362 = vmatpush1.bf16.msra.mxu0 0
        %2363 = vmatprep.subr.bf16.mxu0 0
        %2364 = vmatpush1.bf16.msra.mxu0 0
        %2365 = vmatprep.subr.bf16.mxu0 0
        %2366 = vmatpush1.bf16.msra.mxu0 0
        %2367 = vmatprep.subr.bf16.mxu0 0
        %2368 = vmatpush1.bf16.msra.mxu0 0
        %2369 = vmatprep.subr.bf16.mxu0 0
        %2370 = vmatpush1.bf16.msra.mxu0 0
        %2371 = vmatprep.subr.bf16.mxu0 0
        %2372 = vmatpush1.bf16.msra.mxu0 0
        %2373 = vmatprep.mubr.bf16.mxu0 0
        %2374 = vmatmul.mubr.bf16.gmra.mrb[0].mxu0 %v2121
        %v2375 = vpop.f32.mrb[0].mxu0
        %v2376 = vadd.f32 %v2133, %v2375
        %v2377 = vpop.f32.mrb[0].mxu0
        %v2378 = vadd.f32 %v2137, %v2377
        %v2379 = vpop.f32.mrb[0].mxu0
        %v2380 = vadd.f32 %v2133, %v2379
        %v2381 = vpop.f32.mrb[0].mxu0
        %v2382 = vadd.f32 %v2137, %v2381
        %2383 = vdwg.mxu0
        %v2384 = vmul.f32 %v2333, -1.702
        %v2385 = vmul.f32 %v2335, -1.702
        %v2386 = vmul.f32 %v2376, -1.702
        %v2387 = vmul.f32 %v2378, -1.702
        %v2388 = vmul.f32 %v2337, -1.702
        %v2389 = vmul.f32 %v2339, -1.702
        %v2390 = vmul.f32 %v2380, -1.702
        %v2391 = vmul.f32 %v2382, -1.702
        %v2392 = vmul.f32 %v2384, 1.442695
        %v2393 = vpow.pop %v2392
        %v2394 = vmul.f32 %v2385, 1.442695
        %v2395 = vpow.pop %v2394
        %v2396 = vmul.f32 %v2386, 1.442695
        %v2397 = vpow.pop %v2396
        %v2398 = vmul.f32 %v2387, 1.442695
        %v2399 = vpow.pop %v2398
        %v2400 = vmul.f32 %v2388, 1.442695
        %v2401 = vpow.pop %v2400
        %v2402 = vmul.f32 %v2389, 1.442695
        %v2403 = vpow.pop %v2402
        %v2404 = vmul.f32 %v2390, 1.442695
        %v2405 = vpow.pop %v2404
        %v2406 = vmul.f32 %v2391, 1.442695
        %v2407 = vpow.pop %v2406
        %v2408 = vadd.f32 %v2393, 1.0
        %v2409 = vadd.f32 %v2395, 1.0
        %v2410 = vadd.f32 %v2397, 1.0
        %v2411 = vadd.f32 %v2399, 1.0
        %v2412 = vadd.f32 %v2401, 1.0
        %v2413 = vadd.f32 %v2403, 1.0
        %v2414 = vadd.f32 %v2405, 1.0
        %v2415 = vadd.f32 %v2407, 1.0
        %v2416 = vrcp.pop %v2408
        %v2417 = vmul.f32 1.0, %v2416
        %v2418 = vrcp.pop %v2409
        %v2419 = vmul.f32 1.0, %v2418
        %v2420 = vrcp.pop %v2410
        %v2421 = vmul.f32 1.0, %v2420
        %v2422 = vrcp.pop %v2411
        %v2423 = vmul.f32 1.0, %v2422
        %v2424 = vrcp.pop %v2412
        %v2425 = vmul.f32 1.0, %v2424
        %v2426 = vrcp.pop %v2413
        %v2427 = vmul.f32 1.0, %v2426
        %v2428 = vrcp.pop %v2414
        %v2429 = vmul.f32 1.0, %v2428
        %v2430 = vrcp.pop %v2415
        %v2431 = vmul.f32 1.0, %v2430
        %v2432 = vmul.f32 %v2333, %v2417
        %v2433 = vmul.f32 %v2335, %v2419
        %v2434 = vmul.f32 %v2376, %v2421
        %v2435 = vmul.f32 %v2378, %v2423
        %v2436 = vmul.f32 %v2337, %v2425
        %v2437 = vmul.f32 %v2339, %v2427
        %v2438 = vmul.f32 %v2380, %v2429
        %v2439 = vmul.f32 %v2382, %v2431
        %v2440 = vpack.c.bf16 %v2436, %v2432
        %v2441 = vpack.c.bf16 %v2437, %v2433
        %v2442 = vpack.c.bf16 %v2438, %v2434
        %v2443 = vpack.c.bf16 %v2439, %v2435
        %v2444 = vld [vmem:[%s278] sm:$0xf]
        %v2445 = vld [vmem:[%s278 + $0x4] sm:$0xf]
        %v2446 = vld [vmem:[%s278 + $0x8] sm:$0xf]
        %v2447 = vld [vmem:[%s278 + $0xc] sm:$0xf]
        %v2448 = vld [vmem:[%s278 + $0x10] sm:$0xf]
        %v2449 = vld [vmem:[%s278 + $0x14] sm:$0xf]
        %v2450 = vld [vmem:[%s278 + $0x18] sm:$0xf]
        %v2451 = vld [vmem:[%s278 + $0x1c] sm:$0xf]
        %v2452 = vld [vmem:[%s278 + $0x20] sm:$0xf]
        %v2453 = vld [vmem:[%s278 + $0x24] sm:$0xf]
        %v2454 = vld [vmem:[%s278 + $0x28] sm:$0xf]
        %v2455 = vld [vmem:[%s278 + $0x2c] sm:$0xf]
        %v2456 = vld [vmem:[%s278 + $0x30] sm:$0xf]
        %v2457 = vld [vmem:[%s278 + $0x34] sm:$0xf]
        %v2458 = vld [vmem:[%s278 + $0x38] sm:$0xf]
        %v2459 = vld [vmem:[%s278 + $0x3c] sm:$0xf]
        %v2460 = vld [vmem:[%s278 + $0x40] sm:$0xf]
        %v2461 = vld [vmem:[%s278 + $0x44] sm:$0xf]
        %v2462 = vld [vmem:[%s278 + $0x48] sm:$0xf]
        %v2463 = vld [vmem:[%s278 + $0x4c] sm:$0xf]
        %v2464 = vld [vmem:[%s278 + $0x50] sm:$0xf]
        %v2465 = vld [vmem:[%s278 + $0x54] sm:$0xf]
        %v2466 = vld [vmem:[%s278 + $0x58] sm:$0xf]
        %v2467 = vld [vmem:[%s278 + $0x5c] sm:$0xf]
        %v2468 = vld [vmem:[%s278 + $0x60] sm:$0xf]
        %v2469 = vld [vmem:[%s278 + $0x64] sm:$0xf]
        %v2470 = vld [vmem:[%s278 + $0x68] sm:$0xf]
        %v2471 = vld [vmem:[%s278 + $0x6c] sm:$0xf]
        %v2472 = vld [vmem:[%s278 + $0x70] sm:$0xf]
        %v2473 = vld [vmem:[%s278 + $0x74] sm:$0xf]
        %v2474 = vld [vmem:[%s278 + $0x78] sm:$0xf]
        %v2475 = vld [vmem:[%s278 + $0x7c] sm:$0xf]
        %v2476 = vld [vmem:[%s278 + $0x80] sm:$0xf]
        %v2477 = vld [vmem:[%s278 + $0x84] sm:$0xf]
        %v2478 = vld [vmem:[%s278 + $0x88] sm:$0xf]
        %v2479 = vld [vmem:[%s278 + $0x8c] sm:$0xf]
        %v2480 = vld [vmem:[%s278 + $0x90] sm:$0xf]
        %v2481 = vld [vmem:[%s278 + $0x94] sm:$0xf]
        %v2482 = vld [vmem:[%s278 + $0x98] sm:$0xf]
        %v2483 = vld [vmem:[%s278 + $0x9c] sm:$0xf]
        %v2484 = vld [vmem:[%s278 + $0xa0] sm:$0xf]
        %v2485 = vld [vmem:[%s278 + $0xa4] sm:$0xf]
        %v2486 = vld [vmem:[%s278 + $0xa8] sm:$0xf]
        %v2487 = vld [vmem:[%s278 + $0xac] sm:$0xf]
        %v2488 = vld [vmem:[%s278 + $0xb0] sm:$0xf]
        %v2489 = vld [vmem:[%s278 + $0xb4] sm:$0xf]
        %v2490 = vld [vmem:[%s278 + $0xb8] sm:$0xf]
        %v2491 = vld [vmem:[%s278 + $0xbc] sm:$0xf]
        %v2492 = vld [vmem:[%s278 + $0xc0] sm:$0xf]
        %v2493 = vld [vmem:[%s278 + $0xc4] sm:$0xf]
        %v2494 = vld [vmem:[%s278 + $0xc8] sm:$0xf]
        %v2495 = vld [vmem:[%s278 + $0xcc] sm:$0xf]
        %v2496 = vld [vmem:[%s278 + $0xd0] sm:$0xf]
        %v2497 = vld [vmem:[%s278 + $0xd4] sm:$0xf]
        %v2498 = vld [vmem:[%s278 + $0xd8] sm:$0xf]
        %v2499 = vld [vmem:[%s278 + $0xdc] sm:$0xf]
        %v2500 = vld [vmem:[%s278 + $0xe0] sm:$0xf]
        %v2501 = vld [vmem:[%s278 + $0xe4] sm:$0xf]
        %v2502 = vld [vmem:[%s278 + $0xe8] sm:$0xf]
        %v2503 = vld [vmem:[%s278 + $0xec] sm:$0xf]
        %v2504 = vld [vmem:[%s278 + $0xf0] sm:$0xf]
        %v2505 = vld [vmem:[%s278 + $0xf4] sm:$0xf]
        %v2506 = vld [vmem:[%s278 + $0xf8] sm:$0xf]
        %v2507 = vld [vmem:[%s278 + $0xfc] sm:$0xf]
        %v2572 = vunpack.c.l.b16 %v2444
        %v2573 = vunpack.c.l.b16 %v2445
        %v2574 = vunpack.c.l.b16 %v2446
        %v2575 = vunpack.c.l.b16 %v2447
        %v2576 = vunpack.c.l.b16 %v2448
        %v2577 = vunpack.c.l.b16 %v2449
        %v2578 = vunpack.c.l.b16 %v2450
        %v2579 = vunpack.c.l.b16 %v2451
        %v2580 = vunpack.c.l.b16 %v2452
        %v2581 = vunpack.c.l.b16 %v2453
        %v2582 = vunpack.c.l.b16 %v2454
        %v2583 = vunpack.c.l.b16 %v2455
        %v2584 = vunpack.c.l.b16 %v2456
        %v2585 = vunpack.c.l.b16 %v2457
        %v2586 = vunpack.c.l.b16 %v2458
        %v2587 = vunpack.c.l.b16 %v2459
        %v2588 = vunpack.c.l.b16 %v2460
        %v2589 = vunpack.c.l.b16 %v2461
        %v2590 = vunpack.c.l.b16 %v2462
        %v2591 = vunpack.c.l.b16 %v2463
        %v2592 = vunpack.c.l.b16 %v2464
        %v2593 = vunpack.c.l.b16 %v2465
        %v2594 = vunpack.c.l.b16 %v2466
        %v2595 = vunpack.c.l.b16 %v2467
        %v2596 = vunpack.c.l.b16 %v2468
        %v2597 = vunpack.c.l.b16 %v2469
        %v2598 = vunpack.c.l.b16 %v2470
        %v2599 = vunpack.c.l.b16 %v2471
        %v2600 = vunpack.c.l.b16 %v2472
        %v2601 = vunpack.c.l.b16 %v2473
        %v2602 = vunpack.c.l.b16 %v2474
        %v2603 = vunpack.c.l.b16 %v2475
        %v2604 = vunpack.c.l.b16 %v2476
        %v2605 = vunpack.c.l.b16 %v2477
        %v2606 = vunpack.c.l.b16 %v2478
        %v2607 = vunpack.c.l.b16 %v2479
        %v2608 = vunpack.c.l.b16 %v2480
        %v2609 = vunpack.c.l.b16 %v2481
        %v2610 = vunpack.c.l.b16 %v2482
        %v2611 = vunpack.c.l.b16 %v2483
        %v2612 = vunpack.c.l.b16 %v2484
        %v2613 = vunpack.c.l.b16 %v2485
        %v2614 = vunpack.c.l.b16 %v2486
        %v2615 = vunpack.c.l.b16 %v2487
        %v2616 = vunpack.c.l.b16 %v2488
        %v2617 = vunpack.c.l.b16 %v2489
        %v2618 = vunpack.c.l.b16 %v2490
        %v2619 = vunpack.c.l.b16 %v2491
        %v2620 = vunpack.c.l.b16 %v2492
        %v2621 = vunpack.c.l.b16 %v2493
        %v2622 = vunpack.c.l.b16 %v2494
        %v2623 = vunpack.c.l.b16 %v2495
        %v2624 = vunpack.c.l.b16 %v2496
        %v2625 = vunpack.c.l.b16 %v2497
        %v2626 = vunpack.c.l.b16 %v2498
        %v2627 = vunpack.c.l.b16 %v2499
        %v2628 = vunpack.c.l.b16 %v2500
        %v2629 = vunpack.c.l.b16 %v2501
        %v2630 = vunpack.c.l.b16 %v2502
        %v2631 = vunpack.c.l.b16 %v2503
        %v2632 = vunpack.c.l.b16 %v2504
        %v2633 = vunpack.c.l.b16 %v2505
        %v2634 = vunpack.c.l.b16 %v2506
        %v2635 = vunpack.c.l.b16 %v2507
        %v2636 = vpack.c.b16 %v2573, %v2572
        %v2637 = vpack.c.b16 %v2575, %v2574
        %v2638 = vpack.c.b16 %v2577, %v2576
        %v2639 = vpack.c.b16 %v2579, %v2578
        %v2640 = vpack.c.b16 %v2581, %v2580
        %v2641 = vpack.c.b16 %v2583, %v2582
        %v2642 = vpack.c.b16 %v2585, %v2584
        %v2643 = vpack.c.b16 %v2587, %v2586
        %v2644 = vpack.c.b16 %v2589, %v2588
        %v2645 = vpack.c.b16 %v2591, %v2590
        %v2646 = vpack.c.b16 %v2593, %v2592
        %v2647 = vpack.c.b16 %v2595, %v2594
        %v2648 = vpack.c.b16 %v2597, %v2596
        %v2649 = vpack.c.b16 %v2599, %v2598
        %v2650 = vpack.c.b16 %v2601, %v2600
        %v2651 = vpack.c.b16 %v2603, %v2602
        %v2652 = vpack.c.b16 %v2605, %v2604
        %v2653 = vpack.c.b16 %v2607, %v2606
        %v2654 = vpack.c.b16 %v2609, %v2608
        %v2655 = vpack.c.b16 %v2611, %v2610
        %v2656 = vpack.c.b16 %v2613, %v2612
        %v2657 = vpack.c.b16 %v2615, %v2614
        %v2658 = vpack.c.b16 %v2617, %v2616
        %v2659 = vpack.c.b16 %v2619, %v2618
        %v2660 = vpack.c.b16 %v2621, %v2620
        %v2661 = vpack.c.b16 %v2623, %v2622
        %v2662 = vpack.c.b16 %v2625, %v2624
        %v2663 = vpack.c.b16 %v2627, %v2626
        %v2664 = vpack.c.b16 %v2629, %v2628
        %v2665 = vpack.c.b16 %v2631, %v2630
        %v2666 = vpack.c.b16 %v2633, %v2632
        %v2667 = vpack.c.b16 %v2635, %v2634
        %2700 = vmatprep.subr.bf16.mxu0 0
        %2701 = vmatpush1.bf16.msra.mxu0 %v2636
        %2702 = vmatprep.subr.bf16.mxu0 0
        %2703 = vmatpush1.bf16.msra.mxu0 %v2637
        %2704 = vmatprep.subr.bf16.mxu0 0
        %2705 = vmatpush1.bf16.msra.mxu0 %v2638
        %2706 = vmatprep.subr.bf16.mxu0 0
        %2707 = vmatpush1.bf16.msra.mxu0 %v2639
        %2708 = vmatprep.subr.bf16.mxu0 0
        %2709 = vmatpush1.bf16.msra.mxu0 %v2640
        %2710 = vmatprep.subr.bf16.mxu0 0
        %2711 = vmatpush1.bf16.msra.mxu0 %v2641
        %2712 = vmatprep.subr.bf16.mxu0 0
        %2713 = vmatpush1.bf16.msra.mxu0 %v2642
        %2714 = vmatprep.subr.bf16.mxu0 0
        %2715 = vmatpush1.bf16.msra.mxu0 %v2643
        %2716 = vmatprep.subr.bf16.mxu0 0
        %2717 = vmatpush1.bf16.msra.mxu0 %v2644
        %2718 = vmatprep.subr.bf16.mxu0 0
        %2719 = vmatpush1.bf16.msra.mxu0 %v2645
        %2720 = vmatprep.subr.bf16.mxu0 0
        %2721 = vmatpush1.bf16.msra.mxu0 %v2646
        %2722 = vmatprep.subr.bf16.mxu0 0
        %2723 = vmatpush1.bf16.msra.mxu0 %v2647
        %2724 = vmatprep.subr.bf16.mxu0 0
        %2725 = vmatpush1.bf16.msra.mxu0 %v2648
        %2726 = vmatprep.subr.bf16.mxu0 0
        %2727 = vmatpush1.bf16.msra.mxu0 %v2649
        %2728 = vmatprep.subr.bf16.mxu0 0
        %2729 = vmatpush1.bf16.msra.mxu0 %v2650
        %2730 = vmatprep.subr.bf16.mxu0 0
        %2731 = vmatpush1.bf16.msra.mxu0 %v2651
        %2732 = vmatprep.mubr.bf16.mxu0 %v2441
        %2733 = vmatmul.mubr.bf16.gmra.mrb[0].mxu0 %v2440
        %v2734 = vpop.f32.mrb[0].mxu0
        %v2735 = vadd.f32 0.0, %v2734
        %v2736 = vpop.f32.mrb[0].mxu0
        %v2737 = vpop.f32.mrb[0].mxu0
        %v2738 = vadd.f32 0.0, %v2737
        %v2739 = vpop.f32.mrb[0].mxu0
        %2740 = vdwg.mxu0
        %2741 = vmatprep.subr.bf16.mxu0 0
        %2742 = vmatpush1.bf16.msra.mxu0 %v2652
        %2743 = vmatprep.subr.bf16.mxu0 0
        %2744 = vmatpush1.bf16.msra.mxu0 %v2653
        %2745 = vmatprep.subr.bf16.mxu0 0
        %2746 = vmatpush1.bf16.msra.mxu0 %v2654
        %2747 = vmatprep.subr.bf16.mxu0 0
        %2748 = vmatpush1.bf16.msra.mxu0 %v2655
        %2749 = vmatprep.subr.bf16.mxu0 0
        %2750 = vmatpush1.bf16.msra.mxu0 %v2656
        %2751 = vmatprep.subr.bf16.mxu0 0
        %2752 = vmatpush1.bf16.msra.mxu0 %v2657
        %2753 = vmatprep.subr.bf16.mxu0 0
        %2754 = vmatpush1.bf16.msra.mxu0 %v2658
        %2755 = vmatprep.subr.bf16.mxu0 0
        %2756 = vmatpush1.bf16.msra.mxu0 %v2659
        %2757 = vmatprep.subr.bf16.mxu0 0
        %2758 = vmatpush1.bf16.msra.mxu0 %v2660
        %2759 = vmatprep.subr.bf16.mxu0 0
        %2760 = vmatpush1.bf16.msra.mxu0 %v2661
        %2761 = vmatprep.subr.bf16.mxu0 0
        %2762 = vmatpush1.bf16.msra.mxu0 %v2662
        %2763 = vmatprep.subr.bf16.mxu0 0
        %2764 = vmatpush1.bf16.msra.mxu0 %v2663
        %2765 = vmatprep.subr.bf16.mxu0 0
        %2766 = vmatpush1.bf16.msra.mxu0 %v2664
        %2767 = vmatprep.subr.bf16.mxu0 0
        %2768 = vmatpush1.bf16.msra.mxu0 %v2665
        %2769 = vmatprep.subr.bf16.mxu0 0
        %2770 = vmatpush1.bf16.msra.mxu0 %v2666
        %2771 = vmatprep.subr.bf16.mxu0 0
        %2772 = vmatpush1.bf16.msra.mxu0 %v2667
        %2773 = vmatprep.mubr.bf16.mxu0 %v2443
        %2774 = vmatmul.mubr.bf16.gmra.mrb[0].mxu0 %v2442
        %v2775 = vpop.f32.mrb[0].mxu0
        %v2776 = vadd.f32 %v2735, %v2775
        %v2777 = vpop.f32.mrb[0].mxu0
        %v2778 = vpop.f32.mrb[0].mxu0
        %v2779 = vadd.f32 %v2738, %v2778
        %v2780 = vpop.f32.mrb[0].mxu0
        %2781 = vdwg.mxu0
        %v2782 = vadd.f32 %v2085, %v2776
        %v2783 = vadd.f32 %v2086, %v2779
        %v2784 = vlaneseq
        %v2785 = vshrl.u32 %v2784, 7
        %v2786 = vsub.s32 5, %v2785
        %v2787 = vrot.slane %v392, %v2786
        %v2788 = vadd.f32 %v2782, %v2787
        %v2789 = vadd.f32 %v2783, %v2787
        %2790 = vst [vmem:[%s6] sm:$0xff] %v2788
        %2791 = vst [vmem:[%s6 + $0x8] sm:$0xff] %v2789
        %p2792 = scmp.eq.s32.totalorder %s23, 1
        // Predicated region
        $region57: #{frozen_clip_t5_forward.2} parent=43 // pred_check
          %p2793 = pneg %p2792
        $region58: #{frozen_clip_t5_forward.2} parent=43 // pred_check_branch
          %2795 = sbr.rel (%p2793) target = $region60
        $region59: #{frozen_clip_t5_forward.2} parent=43 // pred_region
          %v2796 = vld [vmem:[%s5] sm:$0x1]
          %v2797 = vld [vmem:[%s5 + $0x1] sm:$0x1]
          %2798 = vadd.xlane.f32.xlu0 %v2788
          %v2799 = vpop.xlane.xlu0 %2798
          %2800 = vadd.xlane.f32.xlu0 %v2789
          %v2801 = vpop.xlane.xlu0 %2800
          %v2802 = vmul.f32 %v2799, %v400
          %v2803 = vmul.f32 %v2801, %v400
          %v2804 = vsub.f32 %v2788, %v2802
          %v2805 = vsub.f32 %v2789, %v2803
          %v2806 = vmul.f32 %v2804, %v2804
          %v2807 = vmul.f32 %v2805, %v2805
          %2808 = vadd.xlane.f32.xlu0 %v2806
          %v2809 = vpop.xlane.xlu0 %2808
          %2810 = vadd.xlane.f32.xlu0 %v2807
          %v2811 = vpop.xlane.xlu0 %2810
          %v2812 = vmul.f32 %v2809, %v400
          %v2813 = vmul.f32 %v2811, %v400
          %v2814 = vadd.f32 %v2812, 1e-05
          %v2815 = vadd.f32 %v2813, 1e-05
          %v2816 = vrsqrt.pop %v2814
          %v2817 = vrsqrt.pop %v2815
          %v2818 = vmul.f32 %v2804, %v2816
          %v2819 = vmul.f32 %v2805, %v2817
          %v2820 = vlaneseq
          %v2821 = vshrl.u32 %v2820, 7
          %v2822 = vsub.s32 0, %v2821
          %v2823 = vrot.slane %v2796, %v2822
          %v2824 = vmul.f32 %v2818, %v2823
          %v2825 = vmul.f32 %v2819, %v2823
          %v2826 = vlaneseq
          %v2827 = vshrl.u32 %v2826, 7
          %v2828 = vsub.s32 0, %v2827
          %v2829 = vrot.slane %v2797, %v2828
          %v2830 = vadd.f32 %v2824, %v2829
          %v2831 = vadd.f32 %v2825, %v2829
          %2832 = vst [vmem:[%s6] sm:$0xff] %v2830
          %2833 = vst [vmem:[%s6 + $0x8] sm:$0xff] %v2831
        $region60: #{frozen_clip_t5_forward.2} parent=43 // pred_fallthru
          _
        // Predicated region
        $region61: #{frozen_clip_t5_forward.2} parent=43 // pred_check
          %p2834 = pneg %p177
        $region62: #{frozen_clip_t5_forward.2} parent=43 // pred_check_branch
          %2836 = sbr.rel (%p2834) target = $region64
        $region63: #{frozen_clip_t5_forward.2} parent=43 // pred_region
          _
        $region64: #{frozen_clip_t5_forward.2} parent=43 // pred_fallthru
          _
        // Predicated region
        $region65: #{frozen_clip_t5_forward.2} parent=43 // pred_check
          %p2837 = pneg %p177
        $region66: #{frozen_clip_t5_forward.2} parent=43 // pred_check_branch
          %2839 = sbr.rel (%p2837) target = $region68
        $region67: #{frozen_clip_t5_forward.2} parent=43 // pred_region
          _
        $region68: #{frozen_clip_t5_forward.2} parent=43 // pred_fallthru
          _
      $region44: #{frozen_clip_t5_forward.2} parent=5 // pred_fallthru
        _
      %p2840 = scmp.le.s32.totalorder 2, %s18
      // Predicated region
      $region69: #{frozen_clip_t5_forward.2} parent=5 // pred_check
        %p2841 = pneg %p2840
      $region70: #{frozen_clip_t5_forward.2} parent=5 // pred_check_branch
        %2843 = sbr.rel (%p2841) target = $region72
      $region71: #{frozen_clip_t5_forward.2} parent=5 // pred_region
        %s2844 = ssub.s32 %s18, 2
      $region72: #{frozen_clip_t5_forward.2} parent=5 // pred_fallthru
        _
    $region6: #{frozen_clip_t5_forward.2} parent=1 // loop_footer
      %s22 = sadd.s32 1, %s18
    $region7: #{frozen_clip_t5_forward.2} parent=1 // loop_footer_branch
      %17 = sbr.rel target = $region3
    $region8: #{frozen_clip_t5_forward.2} parent=1 // loop_exit
      _
    %2845 = vsyncpa [#allocation3], 1
    %s2846 = scalar_lea.sflag [#allocation3], 1
    %2847 = vsyncpa %s2846, 1
    %2848 = vsyncpa [#allocation5], 1
    %s2849 = scalar_lea.sflag [#allocation5], 1
    %2850 = vsyncpa %s2849, 1

// kernel: frozen_clip_t5_forward.3
$region0: #{frozen_clip_t5_forward.3}
  #allocation0 [shape = 'u32[]', space=smem, size = 0x4, offset = 0x4, fixed_abs, tag = 'smem constant byte address 0x4 - core index']
  #allocation1 [shape = 'u32[144,128]{1,0:T(1,128)}', space=vmem, size = 0x12000, scoped, tag = 'internal scratch']
  %s0 = inlined_call_operand.vmem [shape: f32[16,128], index: 0, kind: input, shape index: {}, may-alias: {0,6}]
  %s1 = inlined_call_operand.vmem [shape: f32[4,8,8], index: 1, kind: input, shape index: {}]
  %s2 = inlined_call_operand.vmem [shape: f32[2,2,128], index: 2, kind: input, shape index: {}]
  %s3 = inlined_call_operand.vmem [shape: bf16[2,128,1024], index: 3, kind: input, shape index: {}]
  %s4 = inlined_call_operand.vmem [shape: bf16[2,256,128], index: 4, kind: input, shape index: {}]
  %s5 = inlined_call_operand.vmem [shape: f32[1,128], index: 5, kind: input, shape index: {}]
  %s6 = inlined_call_operand.vmem [shape: f32[16,128], index: 6, kind: output, shape index: {}, may-alias: {0,6}]
  %s7 = sld [smem:[#allocation0]]
  $region65: #{frozen_clip_t5_forward.3} parent=0
    _
  %s9 = ssub.s32 1, %s7
  %s10 = scalar_select 0, %s9, %s7
  loop: start=0, step=1, limit=4
  $region2: #{frozen_clip_t5_forward.3} parent=0 // loop_pre_header
    _
  $region3: #{frozen_clip_t5_forward.3} parent=0 // loop_header
    %s12 = sphi 0, %s16
    %p13 = scmp.ge.s32.totalorder %s12, 4
    %s20 = sphi 0, %s20
    %s22 = sphi 0, %s20
    %s23 = sphi 0, %s22
    %s37 = sphi 0, %s23
    %s41 = sphi 0, %s41
    %s43 = sphi 0, %s41
    %s44 = sphi 0, %s43
    %s58 = sphi 0, %s44
    %s64 = sphi 0, %s66
    %s67 = sphi 0, %s64
    %s68 = sphi 0, %s67
    %s84 = sphi 0, %s68
    %s90 = sphi 0, %s92
    %s93 = sphi 0, %s90
    %s94 = sphi 0, %s93
    %s110 = sphi 0, %s94
    %s116 = sphi 0, %s118
    %s119 = sphi 0, %s116
    %s120 = sphi 0, %s119
    %s136 = sphi 0, %s120
    %s140 = sphi 0, %s140
    %s142 = sphi 0, %s140
    %s143 = sphi 0, %s142
    %s157 = sphi 0, %s143
    %s161 = sphi 0, %s161
    %s163 = sphi 0, %s161
    %s164 = sphi 0, %s163
    %s178 = sphi 0, %s164
  $region4: #{frozen_clip_t5_forward.3} parent=0 // loop_header_branch
    %15 = sbr.rel (%p13) target = $region8
  $region5: #{frozen_clip_t5_forward.3} parent=0 // loop_body
    %s17 = ssub.s32 %s12, 1
    %s18 = ssub.s32 %s12, 2
    %s19 = sadd.s32 %s12, 1
    %s21 = sadd.s32 %s20, 1
    %p24 = scmp.eq.s32.totalorder %s12, 1
    %p25 = scmp.ne.s32.totalorder %s20, %s22
    %p26 = scmp.eq.s32.totalorder %s12, 0
    %p27 = por %p25, %p26
    %p28 = scmp.ne.s32.totalorder %s20, %s22
    %p29 = scmp.eq.s32.totalorder %s17, 1
    %p30 = por %p28, %p29
    %p31 = scmp.ne.s32.totalorder %s22, %s23
    %p32 = scmp.eq.s32.totalorder %s17, 0
    %p33 = por %p31, %p32
    %p34 = scmp.ne.s32.totalorder %s22, %s23
    %p35 = scmp.eq.s32.totalorder %s18, 1
    %p36 = por %p34, %p35
    %p38 = scmp.ne.s32.totalorder %s23, %s37
    %p39 = scmp.eq.s32.totalorder %s18, 0
    %p40 = por %p38, %p39
    %s42 = sadd.s32 %s41, 1
    %p45 = scmp.eq.s32.totalorder %s12, 1
    %p46 = scmp.ne.s32.totalorder %s41, %s43
    %p47 = scmp.eq.s32.totalorder %s12, 0
    %p48 = por %p46, %p47
    %p49 = scmp.ne.s32.totalorder %s41, %s43
    %p50 = scmp.eq.s32.totalorder %s17, 1
    %p51 = por %p49, %p50
    %p52 = scmp.ne.s32.totalorder %s43, %s44
    %p53 = scmp.eq.s32.totalorder %s17, 0
    %p54 = por %p52, %p53
    %p55 = scmp.ne.s32.totalorder %s43, %s44
    %p56 = scmp.eq.s32.totalorder %s18, 1
    %p57 = por %p55, %p56
    %p59 = scmp.ne.s32.totalorder %s44, %s58
    %p60 = scmp.eq.s32.totalorder %s18, 0
    %p61 = por %p59, %p60
    %s62 = ssub.s32 %s12, %s19
    %p63 = scmp.eq.s32.totalorder %s62, 0
    %s65 = sadd.s32 %s64, 1
    %s66 = scalar_select %p63, %s64, %s65
    %p69 = pneg %p63
    %p70 = scmp.eq.s32.totalorder %s12, 1
    %p71 = por %p69, %p70
    %p72 = scmp.ne.s32.totalorder %s64, %s67
    %p73 = scmp.eq.s32.totalorder %s12, 0
    %p74 = por %p72, %p73
    %p75 = scmp.ne.s32.totalorder %s64, %s67
    %p76 = scmp.eq.s32.totalorder %s17, 1
    %p77 = por %p75, %p76
    %p78 = scmp.ne.s32.totalorder %s67, %s68
    %p79 = scmp.eq.s32.totalorder %s17, 0
    %p80 = por %p78, %p79
    %p81 = scmp.ne.s32.totalorder %s67, %s68
    %p82 = scmp.eq.s32.totalorder %s18, 1
    %p83 = por %p81, %p82
    %p85 = scmp.ne.s32.totalorder %s68, %s84
    %p86 = scmp.eq.s32.totalorder %s18, 0
    %p87 = por %p85, %p86
    %s88 = ssub.s32 %s12, %s19
    %p89 = scmp.eq.s32.totalorder %s88, 0
    %s91 = sadd.s32 %s90, 1
    %s92 = scalar_select %p89, %s90, %s91
    %p95 = pneg %p89
    %p96 = scmp.eq.s32.totalorder %s12, 1
    %p97 = por %p95, %p96
    %p98 = scmp.ne.s32.totalorder %s90, %s93
    %p99 = scmp.eq.s32.totalorder %s12, 0
    %p100 = por %p98, %p99
    %p101 = scmp.ne.s32.totalorder %s90, %s93
    %p102 = scmp.eq.s32.totalorder %s17, 1
    %p103 = por %p101, %p102
    %p104 = scmp.ne.s32.totalorder %s93, %s94
    %p105 = scmp.eq.s32.totalorder %s17, 0
    %p106 = por %p104, %p105
    %p107 = scmp.ne.s32.totalorder %s93, %s94
    %p108 = scmp.eq.s32.totalorder %s18, 1
    %p109 = por %p107, %p108
    %p111 = scmp.ne.s32.totalorder %s94, %s110
    %p112 = scmp.eq.s32.totalorder %s18, 0
    %p113 = por %p111, %p112
    %s114 = ssub.s32 %s12, %s19
    %p115 = scmp.eq.s32.totalorder %s114, 0
    %s117 = sadd.s32 %s116, 1
    %s118 = scalar_select %p115, %s116, %s117
    %p121 = pneg %p115
    %p122 = scmp.eq.s32.totalorder %s12, 1
    %p123 = por %p121, %p122
    %p124 = scmp.ne.s32.totalorder %s116, %s119
    %p125 = scmp.eq.s32.totalorder %s12, 0
    %p126 = por %p124, %p125
    %p127 = scmp.ne.s32.totalorder %s116, %s119
    %p128 = scmp.eq.s32.totalorder %s17, 1
    %p129 = por %p127, %p128
    %p130 = scmp.ne.s32.totalorder %s119, %s120
    %p131 = scmp.eq.s32.totalorder %s17, 0
    %p132 = por %p130, %p131
    %p133 = scmp.ne.s32.totalorder %s119, %s120
    %p134 = scmp.eq.s32.totalorder %s18, 1
    %p135 = por %p133, %p134
    %p137 = scmp.ne.s32.totalorder %s120, %s136
    %p138 = scmp.eq.s32.totalorder %s18, 0
    %p139 = por %p137, %p138
    %s141 = sadd.s32 %s140, 1
    %p144 = scmp.eq.s32.totalorder %s12, 1
    %p145 = scmp.ne.s32.totalorder %s140, %s142
    %p146 = scmp.eq.s32.totalorder %s12, 0
    %p147 = por %p145, %p146
    %p148 = scmp.ne.s32.totalorder %s140, %s142
    %p149 = scmp.eq.s32.totalorder %s17, 1
    %p150 = por %p148, %p149
    %p151 = scmp.ne.s32.totalorder %s142, %s143
    %p152 = scmp.eq.s32.totalorder %s17, 0
    %p153 = por %p151, %p152
    %p154 = scmp.ne.s32.totalorder %s142, %s143
    %p155 = scmp.eq.s32.totalorder %s18, 1
    %p156 = por %p154, %p155
    %p158 = scmp.ne.s32.totalorder %s143, %s157
    %p159 = scmp.eq.s32.totalorder %s18, 0
    %p160 = por %p158, %p159
    %s162 = sadd.s32 %s161, 1
    %p165 = scmp.eq.s32.totalorder %s12, 1
    %p166 = scmp.ne.s32.totalorder %s161, %s163
    %p167 = scmp.eq.s32.totalorder %s12, 0
    %p168 = por %p166, %p167
    %p169 = scmp.ne.s32.totalorder %s161, %s163
    %p170 = scmp.eq.s32.totalorder %s17, 1
    %p171 = por %p169, %p170
    %p172 = scmp.ne.s32.totalorder %s163, %s164
    %p173 = scmp.eq.s32.totalorder %s17, 0
    %p174 = por %p172, %p173
    %p175 = scmp.ne.s32.totalorder %s163, %s164
    %p176 = scmp.eq.s32.totalorder %s18, 1
    %p177 = por %p175, %p176
    %p179 = scmp.ne.s32.totalorder %s164, %s178
    %p180 = scmp.eq.s32.totalorder %s18, 0
    %p181 = por %p179, %p180
    %p182 = scmp.le.s32.totalorder 1, %s12
    %p183 = scmp.lt.s32.totalorder %s12, 3
    %p184 = pnand %p182, %p183
    %p185 = pneg %p184
    // Predicated region
    $region9: #{frozen_clip_t5_forward.3} parent=5 // pred_check
      _
    $region10: #{frozen_clip_t5_forward.3} parent=5 // pred_check_branch
      %187 = sbr.rel (%p184) target = $region12
    $region11: #{frozen_clip_t5_forward.3} parent=5 // pred_region
      %s188 = ssub.s32 %s12, 1
      // Predicated region
      $region13: #{frozen_clip_t5_forward.3} parent=11 // pred_check
        %p189 = pneg %p33
      $region14: #{frozen_clip_t5_forward.3} parent=11 // pred_check_branch
        %191 = sbr.rel (%p189) target = $region16
      $region15: #{frozen_clip_t5_forward.3} parent=11 // pred_region
        _
      $region16: #{frozen_clip_t5_forward.3} parent=11 // pred_fallthru
        _
      // Predicated region
      $region17: #{frozen_clip_t5_forward.3} parent=11 // pred_check
        %p192 = pneg %p54
      $region18: #{frozen_clip_t5_forward.3} parent=11 // pred_check_branch
        %194 = sbr.rel (%p192) target = $region20
      $region19: #{frozen_clip_t5_forward.3} parent=11 // pred_region
        _
      $region20: #{frozen_clip_t5_forward.3} parent=11 // pred_fallthru
        _
      // Predicated region
      $region21: #{frozen_clip_t5_forward.3} parent=11 // pred_check
        %p195 = pneg %p153
      $region22: #{frozen_clip_t5_forward.3} parent=11 // pred_check_branch
        %197 = sbr.rel (%p195) target = $region24
      $region23: #{frozen_clip_t5_forward.3} parent=11 // pred_region
        _
      $region24: #{frozen_clip_t5_forward.3} parent=11 // pred_fallthru
        _
    $region12: #{frozen_clip_t5_forward.3} parent=5 // pred_fallthru
      _
    %p198 = scmp.lt.s32.totalorder %s12, 2
    // Predicated region
    $region25: #{frozen_clip_t5_forward.3} parent=5 // pred_check
      %p199 = pneg %p198
    $region26: #{frozen_clip_t5_forward.3} parent=5 // pred_check_branch
      %201 = sbr.rel (%p199) target = $region28
    $region27: #{frozen_clip_t5_forward.3} parent=5 // pred_region
      // Predicated region
      $region29: #{frozen_clip_t5_forward.3} parent=27 // pred_check
        %p202 = pneg %p74
      $region30: #{frozen_clip_t5_forward.3} parent=27 // pred_check_branch
        %204 = sbr.rel (%p202) target = $region32
      $region31: #{frozen_clip_t5_forward.3} parent=27 // pred_region
        %p205 = scmp.lt.s32.totalorder %s12, 1
        %s206 = scalar_select %p205, %s12, 1
        %s207 = smul.addr %s206, 2
        %s208 = scalar_lea.vmem %s2, %s207
      $region32: #{frozen_clip_t5_forward.3} parent=27 // pred_fallthru
        _
      // Predicated region
      $region33: #{frozen_clip_t5_forward.3} parent=27 // pred_check
        %p209 = pneg %p100
      $region34: #{frozen_clip_t5_forward.3} parent=27 // pred_check_branch
        %211 = sbr.rel (%p209) target = $region36
      $region35: #{frozen_clip_t5_forward.3} parent=27 // pred_region
        %p212 = scmp.lt.s32.totalorder %s12, 1
        %s213 = scalar_select %p212, %s12, 1
        %s214 = smul.addr %s213, 128
        %s215 = smul.addr %s214, 4
        %s216 = scalar_lea.vmem %s3, %s215
      $region36: #{frozen_clip_t5_forward.3} parent=27 // pred_fallthru
        _
      // Predicated region
      $region37: #{frozen_clip_t5_forward.3} parent=27 // pred_check
        %p217 = pneg %p126
      $region38: #{frozen_clip_t5_forward.3} parent=27 // pred_check_branch
        %219 = sbr.rel (%p217) target = $region40
      $region39: #{frozen_clip_t5_forward.3} parent=27 // pred_region
        %p220 = scmp.lt.s32.totalorder %s12, 1
        %s221 = scalar_select %p220, %s12, 1
        %s222 = smul.addr %s221, 32
        %s223 = smul.addr %s222, 4
        %s224 = scalar_lea.vmem %s4, %s223
      $region40: #{frozen_clip_t5_forward.3} parent=27 // pred_fallthru
        _
    $region28: #{frozen_clip_t5_forward.3} parent=5 // pred_fallthru
      _
    %p225 = scmp.le.s32.totalorder 1, %s12
    %p226 = scmp.lt.s32.totalorder %s12, 3
    %p227 = pnand %p225, %p226
    %p228 = pneg %p227
    // Predicated region
    $region41: #{frozen_clip_t5_forward.3} parent=5 // pred_check
      _
    $region42: #{frozen_clip_t5_forward.3} parent=5 // pred_check_branch
      %230 = sbr.rel (%p227) target = $region44
    $region43: #{frozen_clip_t5_forward.3} parent=5 // pred_region
      %s231 = ssub.s32 %s12, 1
      %p232 = pneg %p33
      %p233 = pneg %p30
      %p234 = pneg %p54
      %p235 = pneg %p51
      %p236 = scmp.lt.s32.totalorder %s17, 1
      %s237 = scalar_select %p236, %s17, 1
      %s238 = smul.addr %s237, 2
      %s239 = scalar_lea.vmem %s2, %s238
      %p240 = pneg %p80
      %p241 = pneg %p77
      %p242 = scmp.lt.s32.totalorder %s17, 1
      %s243 = scalar_select %p242, %s17, 1
      %s244 = smul.addr %s243, 128
      %s245 = smul.addr %s244, 4
      %s246 = scalar_lea.vmem %s3, %s245
      %p247 = pneg %p106
      %p248 = pneg %p103
      %p249 = scmp.lt.s32.totalorder %s17, 1
      %s250 = scalar_select %p249, %s17, 1
      %s251 = smul.addr %s250, 32
      %s252 = smul.addr %s251, 4
      %s253 = scalar_lea.vmem %s4, %s252
      %p254 = pneg %p132
      %p255 = pneg %p129
      %p256 = pneg %p153
      %p257 = pneg %p150
      %p258 = pneg %p174
      %p259 = pneg %p171
      %p260 = scmp.lt.s32.totalorder %s17, 1
      %s261 = scalar_select %p260, %s17, 1
      %s262 = smul.addr %s261, 2
      %s263 = scalar_lea.vmem %s2, %s262
      %p264 = scmp.lt.s32.totalorder %s17, 1
      %s265 = scalar_select %p264, %s17, 1
      %s266 = smul.addr %s265, 128
      %s267 = smul.addr %s266, 4
      %s268 = scalar_lea.vmem %s3, %s267
      %p269 = scmp.lt.s32.totalorder %s17, 1
      %s270 = scalar_select %p269, %s17, 1
      %s271 = smul.addr %s270, 32
      %s272 = smul.addr %s271, 4
      %s273 = scalar_lea.vmem %s4, %s272
      %p275 = scmp.eq.s32.totalorder %s17, 0
      // Predicated region
      $region45: #{frozen_clip_t5_forward.3} parent=43 // pred_check
        %p276 = pneg %p275
      $region46: #{frozen_clip_t5_forward.3} parent=43 // pred_check_branch
        %278 = sbr.rel (%p276) target = $region48
      $region47: #{frozen_clip_t5_forward.3} parent=43 // pred_region
        %v279 = vld [vmem:[%s0] sm:$0xff]
        %v280 = vld [vmem:[%s0 + $0x8] sm:$0xff]
        %281 = vst [vmem:[%s6] sm:$0xff] %v279
        %282 = vst [vmem:[%s6 + $0x8] sm:$0xff] %v280
      $region48: #{frozen_clip_t5_forward.3} parent=43 // pred_fallthru
        _
      %v283 = vld [vmem:[%s6] sm:$0xff]
      %v284 = vld [vmem:[%s6 + $0x8] sm:$0xff]
      %v285 = vld [vmem:[%s268] sm:$0xff]
      %v286 = vld [vmem:[%s268 + $0x8] sm:$0xff]
      %v287 = vld [vmem:[%s268 + $0x10] sm:$0xff]
      %v288 = vld [vmem:[%s268 + $0x18] sm:$0xff]
      %v289 = vld [vmem:[%s268 + $0x20] sm:$0xff]
      %v290 = vld [vmem:[%s268 + $0x28] sm:$0xff]
      %v291 = vld [vmem:[%s268 + $0x30] sm:$0xff]
      %v292 = vld [vmem:[%s268 + $0x38] sm:$0xff]
      %v293 = vld [vmem:[%s268 + $0x40] sm:$0xff]
      %v294 = vld [vmem:[%s268 + $0x48] sm:$0xff]
      %v295 = vld [vmem:[%s268 + $0x50] sm:$0xff]
      %v296 = vld [vmem:[%s268 + $0x58] sm:$0xff]
      %v297 = vld [vmem:[%s268 + $0x60] sm:$0xff]
      %v298 = vld [vmem:[%s268 + $0x68] sm:$0xff]
      %v299 = vld [vmem:[%s268 + $0x70] sm:$0xff]
      %v300 = vld [vmem:[%s268 + $0x78] sm:$0xff]
      %v301 = vld [vmem:[%s268 + $0x80] sm:$0xff]
      %v302 = vld [vmem:[%s268 + $0x88] sm:$0xff]
      %v303 = vld [vmem:[%s268 + $0x90] sm:$0xff]
      %v304 = vld [vmem:[%s268 + $0x98] sm:$0xff]
      %v305 = vld [vmem:[%s268 + $0xa0] sm:$0xff]
      %v306 = vld [vmem:[%s268 + $0xa8] sm:$0xff]
      %v307 = vld [vmem:[%s268 + $0xb0] sm:$0xff]
      %v308 = vld [vmem:[%s268 + $0xb8] sm:$0xff]
      %v309 = vld [vmem:[%s268 + $0xc0] sm:$0xff]
      %v310 = vld [vmem:[%s268 + $0xc8] sm:$0xff]
      %v311 = vld [vmem:[%s268 + $0xd0] sm:$0xff]
      %v312 = vld [vmem:[%s268 + $0xd8] sm:$0xff]
      %v313 = vld [vmem:[%s268 + $0xe0] sm:$0xff]
      %v314 = vld [vmem:[%s268 + $0xe8] sm:$0xff]
      %v315 = vld [vmem:[%s268 + $0xf0] sm:$0xff]
      %v316 = vld [vmem:[%s268 + $0xf8] sm:$0xff]
      %v317 = vld [vmem:[%s268 + $0x100] sm:$0xff]
      %v318 = vld [vmem:[%s268 + $0x108] sm:$0xff]
      %v319 = vld [vmem:[%s268 + $0x110] sm:$0xff]
      %v320 = vld [vmem:[%s268 + $0x118] sm:$0xff]
      %v321 = vld [vmem:[%s268 + $0x120] sm:$0xff]
      %v322 = vld [vmem:[%s268 + $0x128] sm:$0xff]
      %v323 = vld [vmem:[%s268 + $0x130] sm:$0xff]
      %v324 = vld [vmem:[%s268 + $0x138] sm:$0xff]
      %v325 = vld [vmem:[%s268 + $0x140] sm:$0xff]
      %v326 = vld [vmem:[%s268 + $0x148] sm:$0xff]
      %v327 = vld [vmem:[%s268 + $0x150] sm:$0xff]
      %v328 = vld [vmem:[%s268 + $0x158] sm:$0xff]
      %v329 = vld [vmem:[%s268 + $0x160] sm:$0xff]
      %v330 = vld [vmem:[%s268 + $0x168] sm:$0xff]
      %v331 = vld [vmem:[%s268 + $0x170] sm:$0xff]
      %v332 = vld [vmem:[%s268 + $0x178] sm:$0xff]
      %v333 = vld [vmem:[%s268 + $0x180] sm:$0xff]
      %v334 = vld [vmem:[%s268 + $0x188] sm:$0xff]
      %v335 = vld [vmem:[%s268 + $0x190] sm:$0xff]
      %v336 = vld [vmem:[%s268 + $0x198] sm:$0xff]
      %v337 = vld [vmem:[%s268 + $0x1a0] sm:$0xff]
      %v338 = vld [vmem:[%s268 + $0x1a8] sm:$0xff]
      %v339 = vld [vmem:[%s268 + $0x1b0] sm:$0xff]
      %v340 = vld [vmem:[%s268 + $0x1b8] sm:$0xff]
      %v341 = vld [vmem:[%s268 + $0x1c0] sm:$0xff]
      %v342 = vld [vmem:[%s268 + $0x1c8] sm:$0xff]
      %v343 = vld [vmem:[%s268 + $0x1d0] sm:$0xff]
      %v344 = vld [vmem:[%s268 + $0x1d8] sm:$0xff]
      %v345 = vld [vmem:[%s268 + $0x1e0] sm:$0xff]
      %v346 = vld [vmem:[%s268 + $0x1e8] sm:$0xff]
      %v347 = vld [vmem:[%s268 + $0x1f0] sm:$0xff]
      %v348 = vld [vmem:[%s268 + $0x1f8] sm:$0xff]
      %v349 = vld [vmem:[%s263] sm:$0x1]
      %v350 = vld [vmem:[%s263 + $0x1] sm:$0x1]
      %v351 = vmul.f32 %v283, %v283
      %v352 = vmul.f32 %v284, %v284
      %353 = vadd.xlane.f32.xlu0 %v351
      %v354 = vpop.xlane.xlu0 %353
      %355 = vadd.xlane.f32.xlu0 %v352
      %v356 = vpop.xlane.xlu0 %355
      %v357 = vrcp.pop 128.0
      %v358 = vmul.f32 %v354, %v357
      %v359 = vmul.f32 %v356, %v357
      %v360 = vadd.f32 %v358, 1e-06
      %v361 = vadd.f32 %v359, 1e-06
      %v362 = vrsqrt.pop %v360
      %v363 = vrsqrt.pop %v361
      %v364 = vmul.f32 %v283, %v362
      %v365 = vmul.f32 %v284, %v363
      %v366 = vlaneseq
      %v367 = vshrl.u32 %v366, 7
      %v368 = vsub.s32 0, %v367
      %v369 = vrot.slane %v349, %v368
      %v370 = vmul.f32 %v364, %v369
      %v371 = vmul.f32 %v365, %v369
      %v372 = vpack.c.bf16 %v371, %v370
      %v405 = vunpack.c.l.b16 %v285
      %v406 = vunpack.c.h.b16 %v285
      %v407 = vunpack.c.l.b16 %v286
      %v408 = vunpack.c.l.b16 %v289
      %v409 = vunpack.c.h.b16 %v289
      %v410 = vunpack.c.l.b16 %v290
      %v411 = vunpack.c.l.b16 %v293
      %v412 = vunpack.c.h.b16 %v293
      %v413 = vunpack.c.l.b16 %v294
      %v414 = vunpack.c.l.b16 %v297
      %v415 = vunpack.c.h.b16 %v297
      %v416 = vunpack.c.l.b16 %v298
      %v417 = vunpack.c.l.b16 %v301
      %v418 = vunpack.c.h.b16 %v301
      %v419 = vunpack.c.l.b16 %v302
      %v420 = vunpack.c.l.b16 %v305
      %v421 = vunpack.c.h.b16 %v305
      %v422 = vunpack.c.l.b16 %v306
      %v423 = vunpack.c.l.b16 %v309
      %v424 = vunpack.c.h.b16 %v309
      %v425 = vunpack.c.l.b16 %v310
      %v426 = vunpack.c.l.b16 %v313
      %v427 = vunpack.c.h.b16 %v313
      %v428 = vunpack.c.l.b16 %v314
      %v429 = vunpack.c.l.b16 %v317
      %v430 = vunpack.c.h.b16 %v317
      %v431 = vunpack.c.l.b16 %v318
      %v432 = vunpack.c.l.b16 %v321
      %v433 = vunpack.c.h.b16 %v321
      %v434 = vunpack.c.l.b16 %v322
      %v435 = vunpack.c.l.b16 %v325
      %v436 = vunpack.c.h.b16 %v325
      %v437 = vunpack.c.l.b16 %v326
      %v438 = vunpack.c.l.b16 %v329
      %v439 = vunpack.c.h.b16 %v329
      %v440 = vunpack.c.l.b16 %v330
      %v441 = vunpack.c.l.b16 %v333
      %v442 = vunpack.c.h.b16 %v333
      %v443 = vunpack.c.l.b16 %v334
      %v444 = vunpack.c.l.b16 %v337
      %v445 = vunpack.c.h.b16 %v337
      %v446 = vunpack.c.l.b16 %v338
      %v447 = vunpack.c.l.b16 %v341
      %v448 = vunpack.c.h.b16 %v341
      %v449 = vunpack.c.l.b16 %v342
      %v450 = vunpack.c.l.b16 %v345
      %v451 = vunpack.c.h.b16 %v345
      %v452 = vunpack.c.l.b16 %v346
      %v453 = vpack.c.b16 %v408, %v405
      %v454 = vpack.c.b16 %v409, %v406
      %v455 = vpack.c.b16 %v410, %v407
      %v456 = vpack.c.b16 %v414, %v411
      %v457 = vpack.c.b16 %v415, %v412
      %v458 = vpack.c.b16 %v416, %v413
      %v459 = vpack.c.b16 %v420, %v417
      %v460 = vpack.c.b16 %v421, %v418
      %v461 = vpack.c.b16 %v422, %v419
      %v462 = vpack.c.b16 %v426, %v423
      %v463 = vpack.c.b16 %v427, %v424
      %v464 = vpack.c.b16 %v428, %v425
      %v465 = vpack.c.b16 %v432, %v429
      %v466 = vpack.c.b16 %v433, %v430
      %v467 = vpack.c.b16 %v434, %v431
      %v468 = vpack.c.b16 %v438, %v435
      %v469 = vpack.c.b16 %v439, %v436
      %v470 = vpack.c.b16 %v440, %v437
      %v471 = vpack.c.b16 %v444, %v441
      %v472 = vpack.c.b16 %v445, %v442
      %v473 = vpack.c.b16 %v446, %v443
      %v474 = vpack.c.b16 %v450, %v447
      %v475 = vpack.c.b16 %v451, %v448
      %v476 = vpack.c.b16 %v452, %v449
      %501 = vmatprep.subr.bf16.mxu0 %v454
      %502 = vmatpush1.bf16.msra.mxu0 %v453
      %503 = vmatprep.subr.bf16.mxu0 %v457
      %504 = vmatpush1.bf16.msra.mxu0 %v456
      %505 = vmatprep.subr.bf16.mxu0 %v460
      %506 = vmatpush1.bf16.msra.mxu0 %v459
      %507 = vmatprep.subr.bf16.mxu0 %v463
      %508 = vmatpush1.bf16.msra.mxu0 %v462
      %509 = vmatprep.subr.bf16.mxu0 %v466
      %510 = vmatpush1.bf16.msra.mxu0 %v465
      %511 = vmatprep.subr.bf16.mxu0 %v469
      %512 = vmatpush1.bf16.msra.mxu0 %v468
      %513 = vmatprep.subr.bf16.mxu0 %v472
      %514 = vmatpush1.bf16.msra.mxu0 %v471
      %515 = vmatprep.subr.bf16.mxu0 %v475
      %516 = vmatpush1.bf16.msra.mxu0 %v474
      %517 = vmatprep.subr.bf16.mxu0 0
      %518 = vmatpush1.bf16.msra.mxu0 0
      %519 = vmatprep.subr.bf16.mxu0 0
      %520 = vmatpush1.bf16.msra.mxu0 0
      %521 = vmatprep.subr.bf16.mxu0 0
      %522 = vmatpush1.bf16.msra.mxu0 0
      %523 = vmatprep.subr.bf16.mxu0 0
      %524 = vmatpush1.bf16.msra.mxu0 0
      %525 = vmatprep.subr.bf16.mxu0 0
      %526 = vmatpush1.bf16.msra.mxu0 0
      %527 = vmatprep.subr.bf16.mxu0 0
      %528 = vmatpush1.bf16.msra.mxu0 0
      %529 = vmatprep.subr.bf16.mxu0 0
      %530 = vmatpush1.bf16.msra.mxu0 0
      %531 = vmatprep.subr.bf16.mxu0 0
      %532 = vmatpush1.bf16.msra.mxu0 0
      %533 = vmatprep.mubr.bf16.mxu0 0
      %534 = vmatmul.mubr.bf16.gmra.mrb[0].mxu0 %v372
      %v535 = vpop.f32.mrb[0].mxu0
      %v536 = vadd.f32 0.0, %v535
      %v537 = vpop.f32.mrb[0].mxu0
      %v538 = vadd.f32 0.0, %v537
      %v539 = vpop.f32.mrb[0].mxu0
      %v540 = vadd.f32 0.0, %v539
      %v541 = vpop.f32.mrb[0].mxu0
      %v542 = vadd.f32 0.0, %v541
      %543 = vdwg.mxu0
      %544 = vmatprep.subr.bf16.mxu0 0
      %545 = vmatpush1.bf16.msra.mxu0 %v455
      %546 = vmatprep.subr.bf16.mxu0 0
      %547 = vmatpush1.bf16.msra.mxu0 %v458
      %548 = vmatprep.subr.bf16.mxu0 0
      %549 = vmatpush1.bf16.msra.mxu0 %v461
      %550 = vmatprep.subr.bf16.mxu0 0
      %551 = vmatpush1.bf16.msra.mxu0 %v464
      %552 = vmatprep.subr.bf16.mxu0 0
      %553 = vmatpush1.bf16.msra.mxu0 %v467
      %554 = vmatprep.subr.bf16.mxu0 0
      %555 = vmatpush1.bf16.msra.mxu0 %v470
      %556 = vmatprep.subr.bf16.mxu0 0
      %557 = vmatpush1.bf16.msra.mxu0 %v473
      %558 = vmatprep.subr.bf16.mxu0 0
      %559 = vmatpush1.bf16.msra.mxu0 %v476
      %560 = vmatprep.subr.bf16.mxu0 0
      %561 = vmatpush1.bf16.msra.mxu0 0
      %562 = vmatprep.subr.bf16.mxu0 0
      %563 = vmatpush1.bf16.msra.mxu0 0
      %564 = vmatprep.subr.bf16.mxu0 0
      %565 = vmatpush1.bf16.msra.mxu0 0
      %566 = vmatprep.subr.bf16.mxu0 0
      %567 = vmatpush1.bf16.msra.mxu0 0
      %568 = vmatprep.subr.bf16.mxu0 0
      %569 = vmatpush1.bf16.msra.mxu0 0
      %570 = vmatprep.subr.bf16.mxu0 0
      %571 = vmatpush1.bf16.msra.mxu0 0
      %572 = vmatprep.subr.bf16.mxu0 0
      %573 = vmatpush1.bf16.msra.mxu0 0
      %574 = vmatprep.subr.bf16.mxu0 0
      %575 = vmatpush1.bf16.msra.mxu0 0
      %576 = vmatprep.mubr.bf16.mxu0 0
      %577 = vmatmul.mubr.bf16.gmra.mrb[0].mxu0 %v372
      %v578 = vpop.f32.mrb[0].mxu0
      %v579 = vadd.f32 0.0, %v578
      %v580 = vpop.f32.mrb[0].mxu0
      %v581 = vpop.f32.mrb[0].mxu0
      %v582 = vadd.f32 0.0, %v581
      %v583 = vpop.f32.mrb[0].mxu0
      %584 = vdwg.mxu0
      %v585 = vld [vmem:[%s1] sm:$0xff]
      %s586 = scalar_lea.vmem %s1, 8
      %v587 = vld [vmem:[%s586] sm:$0xff]
      %s588 = scalar_lea.vmem %s1, 16
      %v589 = vld [vmem:[%s588] sm:$0xff]
      %s590 = scalar_lea.vmem %s1, 24
      %v591 = vld [vmem:[%s590] sm:$0xff]
      %vm592 = vcmask 261120
      %v594 = vsel %vm592, %v536, 0
      %v597 = vsel %vm592, %v538, 0
      %599 = vmatprep.subr.mxu0 0.0
      %600 = vmatpush1.xpose.msra.mxu0 %v597
      %601 = vmatprep.subr.mxu0 0.0
      %602 = vmatpush1.xpose.msra.mxu0 0.0
      %603 = vmatprep.subr.mxu0 0.0
      %604 = vmatpush1.xpose.msra.mxu0 0.0
      %605 = vmatprep.subr.mxu0 0.0
      %606 = vmatpush1.xpose.msra.mxu0 0.0
      %607 = vmatprep.subr.mxu0 0.0
      %608 = vmatpush1.xpose.msra.mxu0 0.0
      %609 = vmatprep.subr.mxu0 0.0
      %610 = vmatpush1.xpose.msra.mxu0 0.0
      %611 = vmatprep.subr.mxu0 0.0
      %612 = vmatpush1.xpose.msra.mxu0 0.0
      %613 = vmatprep.subr.mxu0 0.0
      %614 = vmatpush1.xpose.msra.mxu0 0.0
      %615 = vmatprep.subr.mxu0 0.0
      %616 = vmatpush1.xpose.msra.mxu0 0.0
      %617 = vmatprep.subr.mxu0 0.0
      %618 = vmatpush1.xpose.msra.mxu0 0.0
      %619 = vmatprep.subr.mxu0 0.0
      %620 = vmatpush1.xpose.msra.mxu0 0.0
      %621 = vmatprep.subr.mxu0 0.0
      %622 = vmatpush1.xpose.msra.mxu0 0.0
      %623 = vmatprep.subr.mxu0 0.0
      %624 = vmatpush1.xpose.msra.mxu0 0.0
      %625 = vmatprep.subr.mxu0 0.0
      %626 = vmatpush1.xpose.msra.mxu0 0.0
      %627 = vmatprep.subr.mxu0 0.0
      %628 = vmatpush1.xpose.msra.mxu0 0.0
      %629 = vmatprep.subr.mxu0 0.0
      %630 = vmatpush1.xpose.msra.mxu0 0.0
      %631 = vmatprep.subr.mxu0 0.0
      %632 = vmatpush1.xpose.msra.mxu0 0.0
      %633 = vmatprep.subr.mxu0 0.0
      %634 = vmatpush1.xpose.msra.mxu0 0.0
      %635 = vmatprep.subr.mxu0 0.0
      %636 = vmatpush1.xpose.msra.mxu0 0.0
      %637 = vmatprep.subr.mxu0 0.0
      %638 = vmatpush1.xpose.msra.mxu0 0.0
      %639 = vmatprep.subr.mxu0 0.0
      %640 = vmatpush1.xpose.msra.mxu0 0.0
      %641 = vmatprep.subr.mxu0 0.0
      %642 = vmatpush1.xpose.msra.mxu0 0.0
      %643 = vmatprep.subr.mxu0 0.0
      %644 = vmatpush1.xpose.msra.mxu0 0.0
      %645 = vmatprep.subr.mxu0 0.0
      %646 = vmatpush1.xpose.msra.mxu0 0.0
      %647 = vmatprep.subr.mxu0 0.0
      %648 = vmatpush1.xpose.msra.mxu0 0.0
      %649 = vmatprep.subr.mxu0 0.0
      %650 = vmatpush1.xpose.msra.mxu0 0.0
      %651 = vmatprep.subr.mxu0 0.0
      %652 = vmatpush1.xpose.msra.mxu0 0.0
      %653 = vmatprep.subr.mxu0 0.0
      %654 = vmatpush1.xpose.msra.mxu0 0.0
      %655 = vmatprep.subr.mxu0 0.0
      %656 = vmatpush1.xpose.msra.mxu0 0.0
      %657 = vmatprep.subr.mxu0 0.0
      %658 = vmatpush1.xpose.msra.mxu0 0.0
      %659 = vmatprep.subr.mxu0 0.0
      %660 = vmatpush1.xpose.msra.mxu0 0.0
      %661 = vmatprep.subr.mxu0 0.0
      %662 = vmatpush1.xpose.msra.mxu0 0.0
      %663 = vmatprep.mubr.f32.mxu0 0.0
      %664 = vmatmul.mubr.f32.gmra.mrb[0].mxu0 %v594
      %v665 = vpop.f32.mrb[0].mxu0
      %v666 = vadd.f32 %v585, %v665
      %v667 = vpop.f32.mrb[0].mxu0
      %668 = vdwg.mxu0
      %v670 = vsel %vm592, %v540, 0
      %v673 = vsel %vm592, %v542, 0
      %675 = vmatprep.subr.mxu0 0.0
      %676 = vmatpush1.xpose.msra.mxu0 %v673
      %677 = vmatprep.subr.mxu0 0.0
      %678 = vmatpush1.xpose.msra.mxu0 0.0
      %679 = vmatprep.subr.mxu0 0.0
      %680 = vmatpush1.xpose.msra.mxu0 0.0
      %681 = vmatprep.subr.mxu0 0.0
      %682 = vmatpush1.xpose.msra.mxu0 0.0
      %683 = vmatprep.subr.mxu0 0.0
      %684 = vmatpush1.xpose.msra.mxu0 0.0
      %685 = vmatprep.subr.mxu0 0.0
      %686 = vmatpush1.xpose.msra.mxu0 0.0
      %687 = vmatprep.subr.mxu0 0.0
      %688 = vmatpush1.xpose.msra.mxu0 0.0
      %689 = vmatprep.subr.mxu0 0.0
      %690 = vmatpush1.xpose.msra.mxu0 0.0
      %691 = vmatprep.subr.mxu0 0.0
      %692 = vmatpush1.xpose.msra.mxu0 0.0
      %693 = vmatprep.subr.mxu0 0.0
      %694 = vmatpush1.xpose.msra.mxu0 0.0
      %695 = vmatprep.subr.mxu0 0.0
      %696 = vmatpush1.xpose.msra.mxu0 0.0
      %697 = vmatprep.subr.mxu0 0.0
      %698 = vmatpush1.xpose.msra.mxu0 0.0
      %699 = vmatprep.subr.mxu0 0.0
      %700 = vmatpush1.xpose.msra.mxu0 0.0
      %701 = vmatprep.subr.mxu0 0.0
      %702 = vmatpush1.xpose.msra.mxu0 0.0
      %703 = vmatprep.subr.mxu0 0.0
      %704 = vmatpush1.xpose.msra.mxu0 0.0
      %705 = vmatprep.subr.mxu0 0.0
      %706 = vmatpush1.xpose.msra.mxu0 0.0
      %707 = vmatprep.subr.mxu0 0.0
      %708 = vmatpush1.xpose.msra.mxu0 0.0
      %709 = vmatprep.subr.mxu0 0.0
      %710 = vmatpush1.xpose.msra.mxu0 0.0
      %711 = vmatprep.subr.mxu0 0.0
      %712 = vmatpush1.xpose.msra.mxu0 0.0
      %713 = vmatprep.subr.mxu0 0.0
      %714 = vmatpush1.xpose.msra.mxu0 0.0
      %715 = vmatprep.subr.mxu0 0.0
      %716 = vmatpush1.xpose.msra.mxu0 0.0
      %717 = vmatprep.subr.mxu0 0.0
      %718 = vmatpush1.xpose.msra.mxu0 0.0
      %719 = vmatprep.subr.mxu0 0.0
      %720 = vmatpush1.xpose.msra.mxu0 0.0
      %721 = vmatprep.subr.mxu0 0.0
      %722 = vmatpush1.xpose.msra.mxu0 0.0
      %723 = vmatprep.subr.mxu0 0.0
      %724 = vmatpush1.xpose.msra.mxu0 0.0
      %725 = vmatprep.subr.mxu0 0.0
      %726 = vmatpush1.xpose.msra.mxu0 0.0
      %727 = vmatprep.subr.mxu0 0.0
      %728 = vmatpush1.xpose.msra.mxu0 0.0
      %729 = vmatprep.subr.mxu0 0.0
      %730 = vmatpush1.xpose.msra.mxu0 0.0
      %731 = vmatprep.subr.mxu0 0.0
      %732 = vmatpush1.xpose.msra.mxu0 0.0
      %733 = vmatprep.subr.mxu0 0.0
      %734 = vmatpush1.xpose.msra.mxu0 0.0
      %735 = vmatprep.subr.mxu0 0.0
      %736 = vmatpush1.xpose.msra.mxu0 0.0
      %737 = vmatprep.subr.mxu0 0.0
      %738 = vmatpush1.xpose.msra.mxu0 0.0
      %739 = vmatprep.mubr.f32.mxu0 0.0
      %740 = vmatmul.mubr.f32.gmra.mrb[0].mxu0 %v670
      %v741 = vpop.f32.mrb[0].mxu0
      %v742 = vadd.f32 %v585, %v741
      %v743 = vpop.f32.mrb[0].mxu0
      %744 = vdwg.mxu0
      %vm745 = vcmask 64512
      %v746 = vsel %vm745, %v666, -inf
      %747 = vmax.xlane.f32.xlu0 %v746
      %v748 = vpop.xlane.xlu0 %747
      %v749 = vsel %vm745, %v742, -inf
      %750 = vmax.xlane.f32.xlu0 %v749
      %v751 = vpop.xlane.xlu0 %750
      %v752 = vsub.f32 %v666, %v748
      %v753 = vsub.f32 %v742, %v751
      %v754 = vmul.f32 %v752, 1.442695
      %v755 = vpow.pop %v754
      %v756 = vmul.f32 %v753, 1.442695
      %v757 = vpow.pop %v756
      %v758 = vsel %vm745, %v755, 0.0
      %759 = vadd.xlane.f32.xlu0 %v758
      %v760 = vpop.xlane.xlu0 %759
      %v761 = vsel %vm745, %v757, 0.0
      %762 = vadd.xlane.f32.xlu0 %v761
      %v763 = vpop.xlane.xlu0 %762
      %v764 = vrcp.pop %v760
      %v765 = vrcp.pop %v763
      %v766 = vmul.f32 %v755, %v764
      %v767 = vmul.f32 %v757, %v765
      %v769 = vsel %vm745, %v766, 0
      %771 = vmatprep.subr.mxu0 0.0
      %772 = vmatpush1.msra.mxu0 %v579
      %773 = vmatprep.subr.mxu0 0.0
      %774 = vmatpush1.msra.mxu0 0.0
      %775 = vmatprep.subr.mxu0 0.0
      %776 = vmatpush1.msra.mxu0 0.0
      %777 = vmatprep.subr.mxu0 0.0
      %778 = vmatpush1.msra.mxu0 0.0
      %779 = vmatprep.subr.mxu0 0.0
      %780 = vmatpush1.msra.mxu0 0.0
      %781 = vmatprep.subr.mxu0 0.0
      %782 = vmatpush1.msra.mxu0 0.0
      %783 = vmatprep.subr.mxu0 0.0
      %784 = vmatpush1.msra.mxu0 0.0
      %785 = vmatprep.subr.mxu0 0.0
      %786 = vmatpush1.msra.mxu0 0.0
      %787 = vmatprep.subr.mxu0 0.0
      %788 = vmatpush1.msra.mxu0 0.0
      %789 = vmatprep.subr.mxu0 0.0
      %790 = vmatpush1.msra.mxu0 0.0
      %791 = vmatprep.subr.mxu0 0.0
      %792 = vmatpush1.msra.mxu0 0.0
      %793 = vmatprep.subr.mxu0 0.0
      %794 = vmatpush1.msra.mxu0 0.0
      %795 = vmatprep.subr.mxu0 0.0
      %796 = vmatpush1.msra.mxu0 0.0
      %797 = vmatprep.subr.mxu0 0.0
      %798 = vmatpush1.msra.mxu0 0.0
      %799 = vmatprep.subr.mxu0 0.0
      %800 = vmatpush1.msra.mxu0 0.0
      %801 = vmatprep.subr.mxu0 0.0
      %802 = vmatpush1.msra.mxu0 0.0
      %803 = vmatprep.subr.mxu0 0.0
      %804 = vmatpush1.msra.mxu0 0.0
      %805 = vmatprep.subr.mxu0 0.0
      %806 = vmatpush1.msra.mxu0 0.0
      %807 = vmatprep.subr.mxu0 0.0
      %808 = vmatpush1.msra.mxu0 0.0
      %809 = vmatprep.subr.mxu0 0.0
      %810 = vmatpush1.msra.mxu0 0.0
      %811 = vmatprep.subr.mxu0 0.0
      %812 = vmatpush1.msra.mxu0 0.0
      %813 = vmatprep.subr.mxu0 0.0
      %814 = vmatpush1.msra.mxu0 0.0
      %815 = vmatprep.subr.mxu0 0.0
      %816 = vmatpush1.msra.mxu0 0.0
      %817 = vmatprep.subr.mxu0 0.0
      %818 = vmatpush1.msra.mxu0 0.0
      %819 = vmatprep.subr.mxu0 0.0
      %820 = vmatpush1.msra.mxu0 0.0
      %821 = vmatprep.subr.mxu0 0.0
      %822 = vmatpush1.msra.mxu0 0.0
      %823 = vmatprep.subr.mxu0 0.0
      %824 = vmatpush1.msra.mxu0 0.0
      %825 = vmatprep.subr.mxu0 0.0
      %826 = vmatpush1.msra.mxu0 0.0
      %827 = vmatprep.subr.mxu0 0.0
      %828 = vmatpush1.msra.mxu0 0.0
      %829 = vmatprep.subr.mxu0 0.0
      %830 = vmatpush1.msra.mxu0 0.0
      %831 = vmatprep.subr.mxu0 0.0
      %832 = vmatpush1.msra.mxu0 0.0
      %833 = vmatprep.subr.mxu0 0.0
      %834 = vmatpush1.msra.mxu0 0.0
      %835 = vmatprep.mubr.f32.mxu0 0.0
      %836 = vmatmul.mubr.f32.gmra.mrb[0].mxu0 %v769
      %v837 = vpop.f32.mrb[0].mxu0
      %v838 = vadd.f32 0.0, %v837
      %v839 = vpop.f32.mrb[0].mxu0
      %840 = vdwg.mxu0
      %v842 = vsel %vm745, %v767, 0
      %844 = vmatprep.subr.mxu0 0.0
      %845 = vmatpush1.msra.mxu0 %v582
      %846 = vmatprep.subr.mxu0 0.0
      %847 = vmatpush1.msra.mxu0 0.0
      %848 = vmatprep.subr.mxu0 0.0
      %849 = vmatpush1.msra.mxu0 0.0
      %850 = vmatprep.subr.mxu0 0.0
      %851 = vmatpush1.msra.mxu0 0.0
      %852 = vmatprep.subr.mxu0 0.0
      %853 = vmatpush1.msra.mxu0 0.0
      %854 = vmatprep.subr.mxu0 0.0
      %855 = vmatpush1.msra.mxu0 0.0
      %856 = vmatprep.subr.mxu0 0.0
      %857 = vmatpush1.msra.mxu0 0.0
      %858 = vmatprep.subr.mxu0 0.0
      %859 = vmatpush1.msra.mxu0 0.0
      %860 = vmatprep.subr.mxu0 0.0
      %861 = vmatpush1.msra.mxu0 0.0
      %862 = vmatprep.subr.mxu0 0.0
      %863 = vmatpush1.msra.mxu0 0.0
      %864 = vmatprep.subr.mxu0 0.0
      %865 = vmatpush1.msra.mxu0 0.0
      %866 = vmatprep.subr.mxu0 0.0
      %867 = vmatpush1.msra.mxu0 0.0
      %868 = vmatprep.subr.mxu0 0.0
      %869 = vmatpush1.msra.mxu0 0.0
      %870 = vmatprep.subr.mxu0 0.0
      %871 = vmatpush1.msra.mxu0 0.0
      %872 = vmatprep.subr.mxu0 0.0
      %873 = vmatpush1.msra.mxu0 0.0
      %874 = vmatprep.subr.mxu0 0.0
      %875 = vmatpush1.msra.mxu0 0.0
      %876 = vmatprep.subr.mxu0 0.0
      %877 = vmatpush1.msra.mxu0 0.0
      %878 = vmatprep.subr.mxu0 0.0
      %879 = vmatpush1.msra.mxu0 0.0
      %880 = vmatprep.subr.mxu0 0.0
      %881 = vmatpush1.msra.mxu0 0.0
      %882 = vmatprep.subr.mxu0 0.0
      %883 = vmatpush1.msra.mxu0 0.0
      %884 = vmatprep.subr.mxu0 0.0
      %885 = vmatpush1.msra.mxu0 0.0
      %886 = vmatprep.subr.mxu0 0.0
      %887 = vmatpush1.msra.mxu0 0.0
      %888 = vmatprep.subr.mxu0 0.0
      %889 = vmatpush1.msra.mxu0 0.0
      %890 = vmatprep.subr.mxu0 0.0
      %891 = vmatpush1.msra.mxu0 0.0
      %892 = vmatprep.subr.mxu0 0.0
      %893 = vmatpush1.msra.mxu0 0.0
      %894 = vmatprep.subr.mxu0 0.0
      %895 = vmatpush1.msra.mxu0 0.0
      %896 = vmatprep.subr.mxu0 0.0
      %897 = vmatpush1.msra.mxu0 0.0
      %898 = vmatprep.subr.mxu0 0.0
      %899 = vmatpush1.msra.mxu0 0.0
      %900 = vmatprep.subr.mxu0 0.0
      %901 = vmatpush1.msra.mxu0 0.0
      %902 = vmatprep.subr.mxu0 0.0
      %903 = vmatpush1.msra.mxu0 0.0
      %904 = vmatprep.subr.mxu0 0.0
      %905 = vmatpush1.msra.mxu0 0.0
      %906 = vmatprep.subr.mxu0 0.0
      %907 = vmatpush1.msra.mxu0 0.0
      %908 = vmatprep.mubr.f32.mxu0 0.0
      %909 = vmatmul.mubr.f32.gmra.mrb[0].mxu0 %v842
      %v910 = vpop.f32.mrb[0].mxu0
      %v911 = vadd.f32 0.0, %v910
      %v912 = vpop.f32.mrb[0].mxu0
      %913 = vdwg.mxu0
      %914 = vrot.lane.b32.xlu0 %v536, 96
      %v915 = vpop.permute.xlu0 %914
      %916 = vrot.lane.b32.xlu0 %v538, 96
      %v917 = vpop.permute.xlu0 %916
      %v918 = vsel %vm592, %v915, 0
      %v920 = vsel %vm592, %v917, 0
      %922 = vmatprep.subr.mxu0 0.0
      %923 = vmatpush1.xpose.msra.mxu0 %v920
      %924 = vmatprep.subr.mxu0 0.0
      %925 = vmatpush1.xpose.msra.mxu0 0.0
      %926 = vmatprep.subr.mxu0 0.0
      %927 = vmatpush1.xpose.msra.mxu0 0.0
      %928 = vmatprep.subr.mxu0 0.0
      %929 = vmatpush1.xpose.msra.mxu0 0.0
      %930 = vmatprep.subr.mxu0 0.0
      %931 = vmatpush1.xpose.msra.mxu0 0.0
      %932 = vmatprep.subr.mxu0 0.0
      %933 = vmatpush1.xpose.msra.mxu0 0.0
      %934 = vmatprep.subr.mxu0 0.0
      %935 = vmatpush1.xpose.msra.mxu0 0.0
      %936 = vmatprep.subr.mxu0 0.0
      %937 = vmatpush1.xpose.msra.mxu0 0.0
      %938 = vmatprep.subr.mxu0 0.0
      %939 = vmatpush1.xpose.msra.mxu0 0.0
      %940 = vmatprep.subr.mxu0 0.0
      %941 = vmatpush1.xpose.msra.mxu0 0.0
      %942 = vmatprep.subr.mxu0 0.0
      %943 = vmatpush1.xpose.msra.mxu0 0.0
      %944 = vmatprep.subr.mxu0 0.0
      %945 = vmatpush1.xpose.msra.mxu0 0.0
      %946 = vmatprep.subr.mxu0 0.0
      %947 = vmatpush1.xpose.msra.mxu0 0.0
      %948 = vmatprep.subr.mxu0 0.0
      %949 = vmatpush1.xpose.msra.mxu0 0.0
      %950 = vmatprep.subr.mxu0 0.0
      %951 = vmatpush1.xpose.msra.mxu0 0.0
      %952 = vmatprep.subr.mxu0 0.0
      %953 = vmatpush1.xpose.msra.mxu0 0.0
      %954 = vmatprep.subr.mxu0 0.0
      %955 = vmatpush1.xpose.msra.mxu0 0.0
      %956 = vmatprep.subr.mxu0 0.0
      %957 = vmatpush1.xpose.msra.mxu0 0.0
      %958 = vmatprep.subr.mxu0 0.0
      %959 = vmatpush1.xpose.msra.mxu0 0.0
      %960 = vmatprep.subr.mxu0 0.0
      %961 = vmatpush1.xpose.msra.mxu0 0.0
      %962 = vmatprep.subr.mxu0 0.0
      %963 = vmatpush1.xpose.msra.mxu0 0.0
      %964 = vmatprep.subr.mxu0 0.0
      %965 = vmatpush1.xpose.msra.mxu0 0.0
      %966 = vmatprep.subr.mxu0 0.0
      %967 = vmatpush1.xpose.msra.mxu0 0.0
      %968 = vmatprep.subr.mxu0 0.0
      %969 = vmatpush1.xpose.msra.mxu0 0.0
      %970 = vmatprep.subr.mxu0 0.0
      %971 = vmatpush1.xpose.msra.mxu0 0.0
      %972 = vmatprep.subr.mxu0 0.0
      %973 = vmatpush1.xpose.msra.mxu0 0.0
      %974 = vmatprep.subr.mxu0 0.0
      %975 = vmatpush1.xpose.msra.mxu0 0.0
      %976 = vmatprep.subr.mxu0 0.0
      %977 = vmatpush1.xpose.msra.mxu0 0.0
      %978 = vmatprep.subr.mxu0 0.0
      %979 = vmatpush1.xpose.msra.mxu0 0.0
      %980 = vmatprep.subr.mxu0 0.0
      %981 = vmatpush1.xpose.msra.mxu0 0.0
      %982 = vmatprep.subr.mxu0 0.0
      %983 = vmatpush1.xpose.msra.mxu0 0.0
      %984 = vmatprep.subr.mxu0 0.0
      %985 = vmatpush1.xpose.msra.mxu0 0.0
      %986 = vmatprep.mubr.f32.mxu0 0.0
      %987 = vmatmul.mubr.f32.gmra.mrb[0].mxu0 %v918
      %v988 = vpop.f32.mrb[0].mxu0
      %v989 = vadd.f32 %v587, %v988
      %v990 = vpop.f32.mrb[0].mxu0
      %991 = vdwg.mxu0
      %992 = vrot.lane.b32.xlu0 %v540, 96
      %v993 = vpop.permute.xlu0 %992
      %994 = vrot.lane.b32.xlu0 %v542, 96
      %v995 = vpop.permute.xlu0 %994
      %v996 = vsel %vm592, %v993, 0
      %v998 = vsel %vm592, %v995, 0
      %1000 = vmatprep.subr.mxu0 0.0
      %1001 = vmatpush1.xpose.msra.mxu0 %v998
      %1002 = vmatprep.subr.mxu0 0.0
      %1003 = vmatpush1.xpose.msra.mxu0 0.0
      %1004 = vmatprep.subr.mxu0 0.0
      %1005 = vmatpush1.xpose.msra.mxu0 0.0
      %1006 = vmatprep.subr.mxu0 0.0
      %1007 = vmatpush1.xpose.msra.mxu0 0.0
      %1008 = vmatprep.subr.mxu0 0.0
      %1009 = vmatpush1.xpose.msra.mxu0 0.0
      %1010 = vmatprep.subr.mxu0 0.0
      %1011 = vmatpush1.xpose.msra.mxu0 0.0
      %1012 = vmatprep.subr.mxu0 0.0
      %1013 = vmatpush1.xpose.msra.mxu0 0.0
      %1014 = vmatprep.subr.mxu0 0.0
      %1015 = vmatpush1.xpose.msra.mxu0 0.0
      %1016 = vmatprep.subr.mxu0 0.0
      %1017 = vmatpush1.xpose.msra.mxu0 0.0
      %1018 = vmatprep.subr.mxu0 0.0
      %1019 = vmatpush1.xpose.msra.mxu0 0.0
      %1020 = vmatprep.subr.mxu0 0.0
      %1021 = vmatpush1.xpose.msra.mxu0 0.0
      %1022 = vmatprep.subr.mxu0 0.0
      %1023 = vmatpush1.xpose.msra.mxu0 0.0
      %1024 = vmatprep.subr.mxu0 0.0
      %1025 = vmatpush1.xpose.msra.mxu0 0.0
      %1026 = vmatprep.subr.mxu0 0.0
      %1027 = vmatpush1.xpose.msra.mxu0 0.0
      %1028 = vmatprep.subr.mxu0 0.0
      %1029 = vmatpush1.xpose.msra.mxu0 0.0
      %1030 = vmatprep.subr.mxu0 0.0
      %1031 = vmatpush1.xpose.msra.mxu0 0.0
      %1032 = vmatprep.subr.mxu0 0.0
      %1033 = vmatpush1.xpose.msra.mxu0 0.0
      %1034 = vmatprep.subr.mxu0 0.0
      %1035 = vmatpush1.xpose.msra.mxu0 0.0
      %1036 = vmatprep.subr.mxu0 0.0
      %1037 = vmatpush1.xpose.msra.mxu0 0.0
      %1038 = vmatprep.subr.mxu0 0.0
      %1039 = vmatpush1.xpose.msra.mxu0 0.0
      %1040 = vmatprep.subr.mxu0 0.0
      %1041 = vmatpush1.xpose.msra.mxu0 0.0
      %1042 = vmatprep.subr.mxu0 0.0
      %1043 = vmatpush1.xpose.msra.mxu0 0.0
      %1044 = vmatprep.subr.mxu0 0.0
      %1045 = vmatpush1.xpose.msra.mxu0 0.0
      %1046 = vmatprep.subr.mxu0 0.0
      %1047 = vmatpush1.xpose.msra.mxu0 0.0
      %1048 = vmatprep.subr.mxu0 0.0
      %1049 = vmatpush1.xpose.msra.mxu0 0.0
      %1050 = vmatprep.subr.mxu0 0.0
      %1051 = vmatpush1.xpose.msra.mxu0 0.0
      %1052 = vmatprep.subr.mxu0 0.0
      %1053 = vmatpush1.xpose.msra.mxu0 0.0
      %1054 = vmatprep.subr.mxu0 0.0
      %1055 = vmatpush1.xpose.msra.mxu0 0.0
      %1056 = vmatprep.subr.mxu0 0.0
      %1057 = vmatpush1.xpose.msra.mxu0 0.0
      %1058 = vmatprep.subr.mxu0 0.0
      %1059 = vmatpush1.xpose.msra.mxu0 0.0
      %1060 = vmatprep.subr.mxu0 0.0
      %1061 = vmatpush1.xpose.msra.mxu0 0.0
      %1062 = vmatprep.subr.mxu0 0.0
      %1063 = vmatpush1.xpose.msra.mxu0 0.0
      %1064 = vmatprep.mubr.f32.mxu0 0.0
      %1065 = vmatmul.mubr.f32.gmra.mrb[0].mxu0 %v996
      %v1066 = vpop.f32.mrb[0].mxu0
      %v1067 = vadd.f32 %v587, %v1066
      %v1068 = vpop.f32.mrb[0].mxu0
      %1069 = vdwg.mxu0
      %v1070 = vsel %vm745, %v989, -inf
      %1071 = vmax.xlane.f32.xlu0 %v1070
      %v1072 = vpop.xlane.xlu0 %1071
      %v1073 = vsel %vm745, %v1067, -inf
      %1074 = vmax.xlane.f32.xlu0 %v1073
      %v1075 = vpop.xlane.xlu0 %1074
      %v1076 = vsub.f32 %v989, %v1072
      %v1077 = vsub.f32 %v1067, %v1075
      %v1078 = vmul.f32 %v1076, 1.442695
      %v1079 = vpow.pop %v1078
      %v1080 = vmul.f32 %v1077, 1.442695
      %v1081 = vpow.pop %v1080
      %v1082 = vsel %vm745, %v1079, 0.0
      %1083 = vadd.xlane.f32.xlu0 %v1082
      %v1084 = vpop.xlane.xlu0 %1083
      %v1085 = vsel %vm745, %v1081, 0.0
      %1086 = vadd.xlane.f32.xlu0 %v1085
      %v1087 = vpop.xlane.xlu0 %1086
      %v1088 = vrcp.pop %v1084
      %v1089 = vrcp.pop %v1087
      %v1090 = vmul.f32 %v1079, %v1088
      %v1091 = vmul.f32 %v1081, %v1089
      %1093 = vrot.lane.b32.xlu0 %v579, 96
      %v1094 = vpop.permute.xlu0 %1093
      %v1097 = vsel %vm745, %v1090, 0
      %1099 = vmatprep.subr.mxu0 0.0
      %1100 = vmatpush1.msra.mxu0 %v1094
      %1101 = vmatprep.subr.mxu0 0.0
      %1102 = vmatpush1.msra.mxu0 0.0
      %1103 = vmatprep.subr.mxu0 0.0
      %1104 = vmatpush1.msra.mxu0 0.0
      %1105 = vmatprep.subr.mxu0 0.0
      %1106 = vmatpush1.msra.mxu0 0.0
      %1107 = vmatprep.subr.mxu0 0.0
      %1108 = vmatpush1.msra.mxu0 0.0
      %1109 = vmatprep.subr.mxu0 0.0
      %1110 = vmatpush1.msra.mxu0 0.0
      %1111 = vmatprep.subr.mxu0 0.0
      %1112 = vmatpush1.msra.mxu0 0.0
      %1113 = vmatprep.subr.mxu0 0.0
      %1114 = vmatpush1.msra.mxu0 0.0
      %1115 = vmatprep.subr.mxu0 0.0
      %1116 = vmatpush1.msra.mxu0 0.0
      %1117 = vmatprep.subr.mxu0 0.0
      %1118 = vmatpush1.msra.mxu0 0.0
      %1119 = vmatprep.subr.mxu0 0.0
      %1120 = vmatpush1.msra.mxu0 0.0
      %1121 = vmatprep.subr.mxu0 0.0
      %1122 = vmatpush1.msra.mxu0 0.0
      %1123 = vmatprep.subr.mxu0 0.0
      %1124 = vmatpush1.msra.mxu0 0.0
      %1125 = vmatprep.subr.mxu0 0.0
      %1126 = vmatpush1.msra.mxu0 0.0
      %1127 = vmatprep.subr.mxu0 0.0
      %1128 = vmatpush1.msra.mxu0 0.0
      %1129 = vmatprep.subr.mxu0 0.0
      %1130 = vmatpush1.msra.mxu0 0.0
      %1131 = vmatprep.subr.mxu0 0.0
      %1132 = vmatpush1.msra.mxu0 0.0
      %1133 = vmatprep.subr.mxu0 0.0
      %1134 = vmatpush1.msra.mxu0 0.0
      %1135 = vmatprep.subr.mxu0 0.0
      %1136 = vmatpush1.msra.mxu0 0.0
      %1137 = vmatprep.subr.mxu0 0.0
      %1138 = vmatpush1.msra.mxu0 0.0
      %1139 = vmatprep.subr.mxu0 0.0
      %1140 = vmatpush1.msra.mxu0 0.0
      %1141 = vmatprep.subr.mxu0 0.0
      %1142 = vmatpush1.msra.mxu0 0.0
      %1143 = vmatprep.subr.mxu0 0.0
      %1144 = vmatpush1.msra.mxu0 0.0
      %1145 = vmatprep.subr.mxu0 0.0
      %1146 = vmatpush1.msra.mxu0 0.0
      %1147 = vmatprep.subr.mxu0 0.0
      %1148 = vmatpush1.msra.mxu0 0.0
      %1149 = vmatprep.subr.mxu0 0.0
      %1150 = vmatpush1.msra.mxu0 0.0
      %1151 = vmatprep.subr.mxu0 0.0
      %1152 = vmatpush1.msra.mxu0 0.0
      %1153 = vmatprep.subr.mxu0 0.0
      %1154 = vmatpush1.msra.mxu0 0.0
      %1155 = vmatprep.subr.mxu0 0.0
      %1156 = vmatpush1.msra.mxu0 0.0
      %1157 = vmatprep.subr.mxu0 0.0
      %1158 = vmatpush1.msra.mxu0 0.0
      %1159 = vmatprep.subr.mxu0 0.0
      %1160 = vmatpush1.msra.mxu0 0.0
      %1161 = vmatprep.subr.mxu0 0.0
      %1162 = vmatpush1.msra.mxu0 0.0
      %1163 = vmatprep.mubr.f32.mxu0 0.0
      %1164 = vmatmul.mubr.f32.gmra.mrb[0].mxu0 %v1097
      %v1165 = vpop.f32.mrb[0].mxu0
      %v1166 = vadd.f32 0.0, %v1165
      %v1167 = vpop.f32.mrb[0].mxu0
      %1168 = vdwg.mxu0
      %1170 = vrot.lane.b32.xlu0 %v582, 96
      %v1171 = vpop.permute.xlu0 %1170
      %v1174 = vsel %vm745, %v1091, 0
      %1176 = vmatprep.subr.mxu0 0.0
      %1177 = vmatpush1.msra.mxu0 %v1171
      %1178 = vmatprep.subr.mxu0 0.0
      %1179 = vmatpush1.msra.mxu0 0.0
      %1180 = vmatprep.subr.mxu0 0.0
      %1181 = vmatpush1.msra.mxu0 0.0
      %1182 = vmatprep.subr.mxu0 0.0
      %1183 = vmatpush1.msra.mxu0 0.0
      %1184 = vmatprep.subr.mxu0 0.0
      %1185 = vmatpush1.msra.mxu0 0.0
      %1186 = vmatprep.subr.mxu0 0.0
      %1187 = vmatpush1.msra.mxu0 0.0
      %1188 = vmatprep.subr.mxu0 0.0
      %1189 = vmatpush1.msra.mxu0 0.0
      %1190 = vmatprep.subr.mxu0 0.0
      %1191 = vmatpush1.msra.mxu0 0.0
      %1192 = vmatprep.subr.mxu0 0.0
      %1193 = vmatpush1.msra.mxu0 0.0
      %1194 = vmatprep.subr.mxu0 0.0
      %1195 = vmatpush1.msra.mxu0 0.0
      %1196 = vmatprep.subr.mxu0 0.0
      %1197 = vmatpush1.msra.mxu0 0.0
      %1198 = vmatprep.subr.mxu0 0.0
      %1199 = vmatpush1.msra.mxu0 0.0
      %1200 = vmatprep.subr.mxu0 0.0
      %1201 = vmatpush1.msra.mxu0 0.0
      %1202 = vmatprep.subr.mxu0 0.0
      %1203 = vmatpush1.msra.mxu0 0.0
      %1204 = vmatprep.subr.mxu0 0.0
      %1205 = vmatpush1.msra.mxu0 0.0
      %1206 = vmatprep.subr.mxu0 0.0
      %1207 = vmatpush1.msra.mxu0 0.0
      %1208 = vmatprep.subr.mxu0 0.0
      %1209 = vmatpush1.msra.mxu0 0.0
      %1210 = vmatprep.subr.mxu0 0.0
      %1211 = vmatpush1.msra.mxu0 0.0
      %1212 = vmatprep.subr.mxu0 0.0
      %1213 = vmatpush1.msra.mxu0 0.0
      %1214 = vmatprep.subr.mxu0 0.0
      %1215 = vmatpush1.msra.mxu0 0.0
      %1216 = vmatprep.subr.mxu0 0.0
      %1217 = vmatpush1.msra.mxu0 0.0
      %1218 = vmatprep.subr.mxu0 0.0
      %1219 = vmatpush1.msra.mxu0 0.0
      %1220 = vmatprep.subr.mxu0 0.0
      %1221 = vmatpush1.msra.mxu0 0.0
      %1222 = vmatprep.subr.mxu0 0.0
      %1223 = vmatpush1.msra.mxu0 0.0
      %1224 = vmatprep.subr.mxu0 0.0
      %1225 = vmatpush1.msra.mxu0 0.0
      %1226 = vmatprep.subr.mxu0 0.0
      %1227 = vmatpush1.msra.mxu0 0.0
      %1228 = vmatprep.subr.mxu0 0.0
      %1229 = vmatpush1.msra.mxu0 0.0
      %1230 = vmatprep.subr.mxu0 0.0
      %1231 = vmatpush1.msra.mxu0 0.0
      %1232 = vmatprep.subr.mxu0 0.0
      %1233 = vmatpush1.msra.mxu0 0.0
      %1234 = vmatprep.subr.mxu0 0.0
      %1235 = vmatpush1.msra.mxu0 0.0
      %1236 = vmatprep.subr.mxu0 0.0
      %1237 = vmatpush1.msra.mxu0 0.0
      %1238 = vmatprep.subr.mxu0 0.0
      %1239 = vmatpush1.msra.mxu0 0.0
      %1240 = vmatprep.mubr.f32.mxu0 0.0
      %1241 = vmatmul.mubr.f32.gmra.mrb[0].mxu0 %v1174
      %v1242 = vpop.f32.mrb[0].mxu0
      %v1243 = vadd.f32 0.0, %v1242
      %v1244 = vpop.f32.mrb[0].mxu0
      %1245 = vdwg.mxu0
      %1246 = vrot.lane.b32.xlu0 %v536, 64
      %v1247 = vpop.permute.xlu0 %1246
      %1248 = vrot.lane.b32.xlu0 %v538, 64
      %v1249 = vpop.permute.xlu0 %1248
      %v1250 = vsel %vm592, %v1247, 0
      %v1252 = vsel %vm592, %v1249, 0
      %1254 = vmatprep.subr.mxu0 0.0
      %1255 = vmatpush1.xpose.msra.mxu0 %v1252
      %1256 = vmatprep.subr.mxu0 0.0
      %1257 = vmatpush1.xpose.msra.mxu0 0.0
      %1258 = vmatprep.subr.mxu0 0.0
      %1259 = vmatpush1.xpose.msra.mxu0 0.0
      %1260 = vmatprep.subr.mxu0 0.0
      %1261 = vmatpush1.xpose.msra.mxu0 0.0
      %1262 = vmatprep.subr.mxu0 0.0
      %1263 = vmatpush1.xpose.msra.mxu0 0.0
      %1264 = vmatprep.subr.mxu0 0.0
      %1265 = vmatpush1.xpose.msra.mxu0 0.0
      %1266 = vmatprep.subr.mxu0 0.0
      %1267 = vmatpush1.xpose.msra.mxu0 0.0
      %1268 = vmatprep.subr.mxu0 0.0
      %1269 = vmatpush1.xpose.msra.mxu0 0.0
      %1270 = vmatprep.subr.mxu0 0.0
      %1271 = vmatpush1.xpose.msra.mxu0 0.0
      %1272 = vmatprep.subr.mxu0 0.0
      %1273 = vmatpush1.xpose.msra.mxu0 0.0
      %1274 = vmatprep.subr.mxu0 0.0
      %1275 = vmatpush1.xpose.msra.mxu0 0.0
      %1276 = vmatprep.subr.mxu0 0.0
      %1277 = vmatpush1.xpose.msra.mxu0 0.0
      %1278 = vmatprep.subr.mxu0 0.0
      %1279 = vmatpush1.xpose.msra.mxu0 0.0
      %1280 = vmatprep.subr.mxu0 0.0
      %1281 = vmatpush1.xpose.msra.mxu0 0.0
      %1282 = vmatprep.subr.mxu0 0.0
      %1283 = vmatpush1.xpose.msra.mxu0 0.0
      %1284 = vmatprep.subr.mxu0 0.0
      %1285 = vmatpush1.xpose.msra.mxu0 0.0
      %1286 = vmatprep.subr.mxu0 0.0
      %1287 = vmatpush1.xpose.msra.mxu0 0.0
      %1288 = vmatprep.subr.mxu0 0.0
      %1289 = vmatpush1.xpose.msra.mxu0 0.0
      %1290 = vmatprep.subr.mxu0 0.0
      %1291 = vmatpush1.xpose.msra.mxu0 0.0
      %1292 = vmatprep.subr.mxu0 0.0
      %1293 = vmatpush1.xpose.msra.mxu0 0.0
      %1294 = vmatprep.subr.mxu0 0.0
      %1295 = vmatpush1.xpose.msra.mxu0 0.0
      %1296 = vmatprep.subr.mxu0 0.0
      %1297 = vmatpush1.xpose.msra.mxu0 0.0
      %1298 = vmatprep.subr.mxu0 0.0
      %1299 = vmatpush1.xpose.msra.mxu0 0.0
      %1300 = vmatprep.subr.mxu0 0.0
      %1301 = vmatpush1.xpose.msra.mxu0 0.0
      %1302 = vmatprep.subr.mxu0 0.0
      %1303 = vmatpush1.xpose.msra.mxu0 0.0
      %1304 = vmatprep.subr.mxu0 0.0
      %1305 = vmatpush1.xpose.msra.mxu0 0.0
      %1306 = vmatprep.subr.mxu0 0.0
      %1307 = vmatpush1.xpose.msra.mxu0 0.0
      %1308 = vmatprep.subr.mxu0 0.0
      %1309 = vmatpush1.xpose.msra.mxu0 0.0
      %1310 = vmatprep.subr.mxu0 0.0
      %1311 = vmatpush1.xpose.msra.mxu0 0.0
      %1312 = vmatprep.subr.mxu0 0.0
      %1313 = vmatpush1.xpose.msra.mxu0 0.0
      %1314 = vmatprep.subr.mxu0 0.0
      %1315 = vmatpush1.xpose.msra.mxu0 0.0
      %1316 = vmatprep.subr.mxu0 0.0
      %1317 = vmatpush1.xpose.msra.mxu0 0.0
      %1318 = vmatprep.mubr.f32.mxu0 0.0
      %1319 = vmatmul.mubr.f32.gmra.mrb[0].mxu0 %v1250
      %v1320 = vpop.f32.mrb[0].mxu0
      %v1321 = vadd.f32 %v589, %v1320
      %v1322 = vpop.f32.mrb[0].mxu0
      %1323 = vdwg.mxu0
      %1324 = vrot.lane.b32.xlu0 %v540, 64
      %v1325 = vpop.permute.xlu0 %1324
      %1326 = vrot.lane.b32.xlu0 %v542, 64
      %v1327 = vpop.permute.xlu0 %1326
      %v1328 = vsel %vm592, %v1325, 0
      %v1330 = vsel %vm592, %v1327, 0
      %1332 = vmatprep.subr.mxu0 0.0
      %1333 = vmatpush1.xpose.msra.mxu0 %v1330
      %1334 = vmatprep.subr.mxu0 0.0
      %1335 = vmatpush1.xpose.msra.mxu0 0.0
      %1336 = vmatprep.subr.mxu0 0.0
      %1337 = vmatpush1.xpose.msra.mxu0 0.0
      %1338 = vmatprep.subr.mxu0 0.0
      %1339 = vmatpush1.xpose.msra.mxu0 0.0
      %1340 = vmatprep.subr.mxu0 0.0
      %1341 = vmatpush1.xpose.msra.mxu0 0.0
      %1342 = vmatprep.subr.mxu0 0.0
      %1343 = vmatpush1.xpose.msra.mxu0 0.0
      %1344 = vmatprep.subr.mxu0 0.0
      %1345 = vmatpush1.xpose.msra.mxu0 0.0
      %1346 = vmatprep.subr.mxu0 0.0
      %1347 = vmatpush1.xpose.msra.mxu0 0.0
      %1348 = vmatprep.subr.mxu0 0.0
      %1349 = vmatpush1.xpose.msra.mxu0 0.0
      %1350 = vmatprep.subr.mxu0 0.0
      %1351 = vmatpush1.xpose.msra.mxu0 0.0
      %1352 = vmatprep.subr.mxu0 0.0
      %1353 = vmatpush1.xpose.msra.mxu0 0.0
      %1354 = vmatprep.subr.mxu0 0.0
      %1355 = vmatpush1.xpose.msra.mxu0 0.0
      %1356 = vmatprep.subr.mxu0 0.0
      %1357 = vmatpush1.xpose.msra.mxu0 0.0
      %1358 = vmatprep.subr.mxu0 0.0
      %1359 = vmatpush1.xpose.msra.mxu0 0.0
      %1360 = vmatprep.subr.mxu0 0.0
      %1361 = vmatpush1.xpose.msra.mxu0 0.0
      %1362 = vmatprep.subr.mxu0 0.0
      %1363 = vmatpush1.xpose.msra.mxu0 0.0
      %1364 = vmatprep.subr.mxu0 0.0
      %1365 = vmatpush1.xpose.msra.mxu0 0.0
      %1366 = vmatprep.subr.mxu0 0.0
      %1367 = vmatpush1.xpose.msra.mxu0 0.0
      %1368 = vmatprep.subr.mxu0 0.0
      %1369 = vmatpush1.xpose.msra.mxu0 0.0
      %1370 = vmatprep.subr.mxu0 0.0
      %1371 = vmatpush1.xpose.msra.mxu0 0.0
      %1372 = vmatprep.subr.mxu0 0.0
      %1373 = vmatpush1.xpose.msra.mxu0 0.0
      %1374 = vmatprep.subr.mxu0 0.0
      %1375 = vmatpush1.xpose.msra.mxu0 0.0
      %1376 = vmatprep.subr.mxu0 0.0
      %1377 = vmatpush1.xpose.msra.mxu0 0.0
      %1378 = vmatprep.subr.mxu0 0.0
      %1379 = vmatpush1.xpose.msra.mxu0 0.0
      %1380 = vmatprep.subr.mxu0 0.0
      %1381 = vmatpush1.xpose.msra.mxu0 0.0
      %1382 = vmatprep.subr.mxu0 0.0
      %1383 = vmatpush1.xpose.msra.mxu0 0.0
      %1384 = vmatprep.subr.mxu0 0.0
      %1385 = vmatpush1.xpose.msra.mxu0 0.0
      %1386 = vmatprep.subr.mxu0 0.0
      %1387 = vmatpush1.xpose.msra.mxu0 0.0
      %1388 = vmatprep.subr.mxu0 0.0
      %1389 = vmatpush1.xpose.msra.mxu0 0.0
      %1390 = vmatprep.subr.mxu0 0.0
      %1391 = vmatpush1.xpose.msra.mxu0 0.0
      %1392 = vmatprep.subr.mxu0 0.0
      %1393 = vmatpush1.xpose.msra.mxu0 0.0
      %1394 = vmatprep.subr.mxu0 0.0
      %1395 = vmatpush1.xpose.msra.mxu0 0.0
      %1396 = vmatprep.mubr.f32.mxu0 0.0
      %1397 = vmatmul.mubr.f32.gmra.mrb[0].mxu0 %v1328
      %v1398 = vpop.f32.mrb[0].mxu0
      %v1399 = vadd.f32 %v589, %v1398
      %v1400 = vpop.f32.mrb[0].mxu0
      %1401 = vdwg.mxu0
      %v1402 = vsel %vm745, %v1321, -inf
      %1403 = vmax.xlane.f32.xlu0 %v1402
      %v1404 = vpop.xlane.xlu0 %1403
      %v1405 = vsel %vm745, %v1399, -inf
      %1406 = vmax.xlane.f32.xlu0 %v1405
      %v1407 = vpop.xlane.xlu0 %1406
      %v1408 = vsub.f32 %v1321, %v1404
      %v1409 = vsub.f32 %v1399, %v1407
      %v1410 = vmul.f32 %v1408, 1.442695
      %v1411 = vpow.pop %v1410
      %v1412 = vmul.f32 %v1409, 1.442695
      %v1413 = vpow.pop %v1412
      %v1414 = vsel %vm745, %v1411, 0.0
      %1415 = vadd.xlane.f32.xlu0 %v1414
      %v1416 = vpop.xlane.xlu0 %1415
      %v1417 = vsel %vm745, %v1413, 0.0
      %1418 = vadd.xlane.f32.xlu0 %v1417
      %v1419 = vpop.xlane.xlu0 %1418
      %v1420 = vrcp.pop %v1416
      %v1421 = vrcp.pop %v1419
      %v1422 = vmul.f32 %v1411, %v1420
      %v1423 = vmul.f32 %v1413, %v1421
      %1424 = vrot.lane.b32.xlu0 %v579, 64
      %v1425 = vpop.permute.xlu0 %1424
      %v1428 = vsel %vm745, %v1422, 0
      %1430 = vmatprep.subr.mxu0 0.0
      %1431 = vmatpush1.msra.mxu0 %v1425
      %1432 = vmatprep.subr.mxu0 0.0
      %1433 = vmatpush1.msra.mxu0 0.0
      %1434 = vmatprep.subr.mxu0 0.0
      %1435 = vmatpush1.msra.mxu0 0.0
      %1436 = vmatprep.subr.mxu0 0.0
      %1437 = vmatpush1.msra.mxu0 0.0
      %1438 = vmatprep.subr.mxu0 0.0
      %1439 = vmatpush1.msra.mxu0 0.0
      %1440 = vmatprep.subr.mxu0 0.0
      %1441 = vmatpush1.msra.mxu0 0.0
      %1442 = vmatprep.subr.mxu0 0.0
      %1443 = vmatpush1.msra.mxu0 0.0
      %1444 = vmatprep.subr.mxu0 0.0
      %1445 = vmatpush1.msra.mxu0 0.0
      %1446 = vmatprep.subr.mxu0 0.0
      %1447 = vmatpush1.msra.mxu0 0.0
      %1448 = vmatprep.subr.mxu0 0.0
      %1449 = vmatpush1.msra.mxu0 0.0
      %1450 = vmatprep.subr.mxu0 0.0
      %1451 = vmatpush1.msra.mxu0 0.0
      %1452 = vmatprep.subr.mxu0 0.0
      %1453 = vmatpush1.msra.mxu0 0.0
      %1454 = vmatprep.subr.mxu0 0.0
      %1455 = vmatpush1.msra.mxu0 0.0
      %1456 = vmatprep.subr.mxu0 0.0
      %1457 = vmatpush1.msra.mxu0 0.0
      %1458 = vmatprep.subr.mxu0 0.0
      %1459 = vmatpush1.msra.mxu0 0.0
      %1460 = vmatprep.subr.mxu0 0.0
      %1461 = vmatpush1.msra.mxu0 0.0
      %1462 = vmatprep.subr.mxu0 0.0
      %1463 = vmatpush1.msra.mxu0 0.0
      %1464 = vmatprep.subr.mxu0 0.0
      %1465 = vmatpush1.msra.mxu0 0.0
      %1466 = vmatprep.subr.mxu0 0.0
      %1467 = vmatpush1.msra.mxu0 0.0
      %1468 = vmatprep.subr.mxu0 0.0
      %1469 = vmatpush1.msra.mxu0 0.0
      %1470 = vmatprep.subr.mxu0 0.0
      %1471 = vmatpush1.msra.mxu0 0.0
      %1472 = vmatprep.subr.mxu0 0.0
      %1473 = vmatpush1.msra.mxu0 0.0
      %1474 = vmatprep.subr.mxu0 0.0
      %1475 = vmatpush1.msra.mxu0 0.0
      %1476 = vmatprep.subr.mxu0 0.0
      %1477 = vmatpush1.msra.mxu0 0.0
      %1478 = vmatprep.subr.mxu0 0.0
      %1479 = vmatpush1.msra.mxu0 0.0
      %1480 = vmatprep.subr.mxu0 0.0
      %1481 = vmatpush1.msra.mxu0 0.0
      %1482 = vmatprep.subr.mxu0 0.0
      %1483 = vmatpush1.msra.mxu0 0.0
      %1484 = vmatprep.subr.mxu0 0.0
      %1485 = vmatpush1.msra.mxu0 0.0
      %1486 = vmatprep.subr.mxu0 0.0
      %1487 = vmatpush1.msra.mxu0 0.0
      %1488 = vmatprep.subr.mxu0 0.0
      %1489 = vmatpush1.msra.mxu0 0.0
      %1490 = vmatprep.subr.mxu0 0.0
      %1491 = vmatpush1.msra.mxu0 0.0
      %1492 = vmatprep.subr.mxu0 0.0
      %1493 = vmatpush1.msra.mxu0 0.0
      %1494 = vmatprep.mubr.f32.mxu0 0.0
      %1495 = vmatmul.mubr.f32.gmra.mrb[0].mxu0 %v1428
      %v1496 = vpop.f32.mrb[0].mxu0
      %v1497 = vadd.f32 0.0, %v1496
      %v1498 = vpop.f32.mrb[0].mxu0
      %1499 = vdwg.mxu0
      %1500 = vrot.lane.b32.xlu0 %v582, 64
      %v1501 = vpop.permute.xlu0 %1500
      %v1504 = vsel %vm745, %v1423, 0
      %1506 = vmatprep.subr.mxu0 0.0
      %1507 = vmatpush1.msra.mxu0 %v1501
      %1508 = vmatprep.subr.mxu0 0.0
      %1509 = vmatpush1.msra.mxu0 0.0
      %1510 = vmatprep.subr.mxu0 0.0
      %1511 = vmatpush1.msra.mxu0 0.0
      %1512 = vmatprep.subr.mxu0 0.0
      %1513 = vmatpush1.msra.mxu0 0.0
      %1514 = vmatprep.subr.mxu0 0.0
      %1515 = vmatpush1.msra.mxu0 0.0
      %1516 = vmatprep.subr.mxu0 0.0
      %1517 = vmatpush1.msra.mxu0 0.0
      %1518 = vmatprep.subr.mxu0 0.0
      %1519 = vmatpush1.msra.mxu0 0.0
      %1520 = vmatprep.subr.mxu0 0.0
      %1521 = vmatpush1.msra.mxu0 0.0
      %1522 = vmatprep.subr.mxu0 0.0
      %1523 = vmatpush1.msra.mxu0 0.0
      %1524 = vmatprep.subr.mxu0 0.0
      %1525 = vmatpush1.msra.mxu0 0.0
      %1526 = vmatprep.subr.mxu0 0.0
      %1527 = vmatpush1.msra.mxu0 0.0
      %1528 = vmatprep.subr.mxu0 0.0
      %1529 = vmatpush1.msra.mxu0 0.0
      %1530 = vmatprep.subr.mxu0 0.0
      %1531 = vmatpush1.msra.mxu0 0.0
      %1532 = vmatprep.subr.mxu0 0.0
      %1533 = vmatpush1.msra.mxu0 0.0
      %1534 = vmatprep.subr.mxu0 0.0
      %1535 = vmatpush1.msra.mxu0 0.0
      %1536 = vmatprep.subr.mxu0 0.0
      %1537 = vmatpush1.msra.mxu0 0.0
      %1538 = vmatprep.subr.mxu0 0.0
      %1539 = vmatpush1.msra.mxu0 0.0
      %1540 = vmatprep.subr.mxu0 0.0
      %1541 = vmatpush1.msra.mxu0 0.0
      %1542 = vmatprep.subr.mxu0 0.0
      %1543 = vmatpush1.msra.mxu0 0.0
      %1544 = vmatprep.subr.mxu0 0.0
      %1545 = vmatpush1.msra.mxu0 0.0
      %1546 = vmatprep.subr.mxu0 0.0
      %1547 = vmatpush1.msra.mxu0 0.0
      %1548 = vmatprep.subr.mxu0 0.0
      %1549 = vmatpush1.msra.mxu0 0.0
      %1550 = vmatprep.subr.mxu0 0.0
      %1551 = vmatpush1.msra.mxu0 0.0
      %1552 = vmatprep.subr.mxu0 0.0
      %1553 = vmatpush1.msra.mxu0 0.0
      %1554 = vmatprep.subr.mxu0 0.0
      %1555 = vmatpush1.msra.mxu0 0.0
      %1556 = vmatprep.subr.mxu0 0.0
      %1557 = vmatpush1.msra.mxu0 0.0
      %1558 = vmatprep.subr.mxu0 0.0
      %1559 = vmatpush1.msra.mxu0 0.0
      %1560 = vmatprep.subr.mxu0 0.0
      %1561 = vmatpush1.msra.mxu0 0.0
      %1562 = vmatprep.subr.mxu0 0.0
      %1563 = vmatpush1.msra.mxu0 0.0
      %1564 = vmatprep.subr.mxu0 0.0
      %1565 = vmatpush1.msra.mxu0 0.0
      %1566 = vmatprep.subr.mxu0 0.0
      %1567 = vmatpush1.msra.mxu0 0.0
      %1568 = vmatprep.subr.mxu0 0.0
      %1569 = vmatpush1.msra.mxu0 0.0
      %1570 = vmatprep.mubr.f32.mxu0 0.0
      %1571 = vmatmul.mubr.f32.gmra.mrb[0].mxu0 %v1504
      %v1572 = vpop.f32.mrb[0].mxu0
      %v1573 = vadd.f32 0.0, %v1572
      %v1574 = vpop.f32.mrb[0].mxu0
      %1575 = vdwg.mxu0
      %1576 = vrot.lane.b32.xlu0 %v536, 32
      %v1577 = vpop.permute.xlu0 %1576
      %1578 = vrot.lane.b32.xlu0 %v538, 32
      %v1579 = vpop.permute.xlu0 %1578
      %v1580 = vsel %vm592, %v1577, 0
      %v1582 = vsel %vm592, %v1579, 0
      %1584 = vmatprep.subr.mxu0 0.0
      %1585 = vmatpush1.xpose.msra.mxu0 %v1582
      %1586 = vmatprep.subr.mxu0 0.0
      %1587 = vmatpush1.xpose.msra.mxu0 0.0
      %1588 = vmatprep.subr.mxu0 0.0
      %1589 = vmatpush1.xpose.msra.mxu0 0.0
      %1590 = vmatprep.subr.mxu0 0.0
      %1591 = vmatpush1.xpose.msra.mxu0 0.0
      %1592 = vmatprep.subr.mxu0 0.0
      %1593 = vmatpush1.xpose.msra.mxu0 0.0
      %1594 = vmatprep.subr.mxu0 0.0
      %1595 = vmatpush1.xpose.msra.mxu0 0.0
      %1596 = vmatprep.subr.mxu0 0.0
      %1597 = vmatpush1.xpose.msra.mxu0 0.0
      %1598 = vmatprep.subr.mxu0 0.0
      %1599 = vmatpush1.xpose.msra.mxu0 0.0
      %1600 = vmatprep.subr.mxu0 0.0
      %1601 = vmatpush1.xpose.msra.mxu0 0.0
      %1602 = vmatprep.subr.mxu0 0.0
      %1603 = vmatpush1.xpose.msra.mxu0 0.0
      %1604 = vmatprep.subr.mxu0 0.0
      %1605 = vmatpush1.xpose.msra.mxu0 0.0
      %1606 = vmatprep.subr.mxu0 0.0
      %1607 = vmatpush1.xpose.msra.mxu0 0.0
      %1608 = vmatprep.subr.mxu0 0.0
      %1609 = vmatpush1.xpose.msra.mxu0 0.0
      %1610 = vmatprep.subr.mxu0 0.0
      %1611 = vmatpush1.xpose.msra.mxu0 0.0
      %1612 = vmatprep.subr.mxu0 0.0
      %1613 = vmatpush1.xpose.msra.mxu0 0.0
      %1614 = vmatprep.subr.mxu0 0.0
      %1615 = vmatpush1.xpose.msra.mxu0 0.0
      %1616 = vmatprep.subr.mxu0 0.0
      %1617 = vmatpush1.xpose.msra.mxu0 0.0
      %1618 = vmatprep.subr.mxu0 0.0
      %1619 = vmatpush1.xpose.msra.mxu0 0.0
      %1620 = vmatprep.subr.mxu0 0.0
      %1621 = vmatpush1.xpose.msra.mxu0 0.0
      %1622 = vmatprep.subr.mxu0 0.0
      %1623 = vmatpush1.xpose.msra.mxu0 0.0
      %1624 = vmatprep.subr.mxu0 0.0
      %1625 = vmatpush1.xpose.msra.mxu0 0.0
      %1626 = vmatprep.subr.mxu0 0.0
      %1627 = vmatpush1.xpose.msra.mxu0 0.0
      %1628 = vmatprep.subr.mxu0 0.0
      %1629 = vmatpush1.xpose.msra.mxu0 0.0
      %1630 = vmatprep.subr.mxu0 0.0
      %1631 = vmatpush1.xpose.msra.mxu0 0.0
      %1632 = vmatprep.subr.mxu0 0.0
      %1633 = vmatpush1.xpose.msra.mxu0 0.0
      %1634 = vmatprep.subr.mxu0 0.0
      %1635 = vmatpush1.xpose.msra.mxu0 0.0
      %1636 = vmatprep.subr.mxu0 0.0
      %1637 = vmatpush1.xpose.msra.mxu0 0.0
      %1638 = vmatprep.subr.mxu0 0.0
      %1639 = vmatpush1.xpose.msra.mxu0 0.0
      %1640 = vmatprep.subr.mxu0 0.0
      %1641 = vmatpush1.xpose.msra.mxu0 0.0
      %1642 = vmatprep.subr.mxu0 0.0
      %1643 = vmatpush1.xpose.msra.mxu0 0.0
      %1644 = vmatprep.subr.mxu0 0.0
      %1645 = vmatpush1.xpose.msra.mxu0 0.0
      %1646 = vmatprep.subr.mxu0 0.0
      %1647 = vmatpush1.xpose.msra.mxu0 0.0
      %1648 = vmatprep.mubr.f32.mxu0 0.0
      %1649 = vmatmul.mubr.f32.gmra.mrb[0].mxu0 %v1580
      %v1650 = vpop.f32.mrb[0].mxu0
      %v1651 = vadd.f32 %v591, %v1650
      %v1652 = vpop.f32.mrb[0].mxu0
      %1653 = vdwg.mxu0
      %1654 = vrot.lane.b32.xlu0 %v540, 32
      %v1655 = vpop.permute.xlu0 %1654
      %1656 = vrot.lane.b32.xlu0 %v542, 32
      %v1657 = vpop.permute.xlu0 %1656
      %v1658 = vsel %vm592, %v1655, 0
      %v1660 = vsel %vm592, %v1657, 0
      %1662 = vmatprep.subr.mxu0 0.0
      %1663 = vmatpush1.xpose.msra.mxu0 %v1660
      %1664 = vmatprep.subr.mxu0 0.0
      %1665 = vmatpush1.xpose.msra.mxu0 0.0
      %1666 = vmatprep.subr.mxu0 0.0
      %1667 = vmatpush1.xpose.msra.mxu0 0.0
      %1668 = vmatprep.subr.mxu0 0.0
      %1669 = vmatpush1.xpose.msra.mxu0 0.0
      %1670 = vmatprep.subr.mxu0 0.0
      %1671 = vmatpush1.xpose.msra.mxu0 0.0
      %1672 = vmatprep.subr.mxu0 0.0
      %1673 = vmatpush1.xpose.msra.mxu0 0.0
      %1674 = vmatprep.subr.mxu0 0.0
      %1675 = vmatpush1.xpose.msra.mxu0 0.0
      %1676 = vmatprep.subr.mxu0 0.0
      %1677 = vmatpush1.xpose.msra.mxu0 0.0
      %1678 = vmatprep.subr.mxu0 0.0
      %1679 = vmatpush1.xpose.msra.mxu0 0.0
      %1680 = vmatprep.subr.mxu0 0.0
      %1681 = vmatpush1.xpose.msra.mxu0 0.0
      %1682 = vmatprep.subr.mxu0 0.0
      %1683 = vmatpush1.xpose.msra.mxu0 0.0
      %1684 = vmatprep.subr.mxu0 0.0
      %1685 = vmatpush1.xpose.msra.mxu0 0.0
      %1686 = vmatprep.subr.mxu0 0.0
      %1687 = vmatpush1.xpose.msra.mxu0 0.0
      %1688 = vmatprep.subr.mxu0 0.0
      %1689 = vmatpush1.xpose.msra.mxu0 0.0
      %1690 = vmatprep.subr.mxu0 0.0
      %1691 = vmatpush1.xpose.msra.mxu0 0.0
      %1692 = vmatprep.subr.mxu0 0.0
      %1693 = vmatpush1.xpose.msra.mxu0 0.0
      %1694 = vmatprep.subr.mxu0 0.0
      %1695 = vmatpush1.xpose.msra.mxu0 0.0
      %1696 = vmatprep.subr.mxu0 0.0
      %1697 = vmatpush1.xpose.msra.mxu0 0.0
      %1698 = vmatprep.subr.mxu0 0.0
      %1699 = vmatpush1.xpose.msra.mxu0 0.0
      %1700 = vmatprep.subr.mxu0 0.0
      %1701 = vmatpush1.xpose.msra.mxu0 0.0
      %1702 = vmatprep.subr.mxu0 0.0
      %1703 = vmatpush1.xpose.msra.mxu0 0.0
      %1704 = vmatprep.subr.mxu0 0.0
      %1705 = vmatpush1.xpose.msra.mxu0 0.0
      %1706 = vmatprep.subr.mxu0 0.0
      %1707 = vmatpush1.xpose.msra.mxu0 0.0
      %1708 = vmatprep.subr.mxu0 0.0
      %1709 = vmatpush1.xpose.msra.mxu0 0.0
      %1710 = vmatprep.subr.mxu0 0.0
      %1711 = vmatpush1.xpose.msra.mxu0 0.0
      %1712 = vmatprep.subr.mxu0 0.0
      %1713 = vmatpush1.xpose.msra.mxu0 0.0
      %1714 = vmatprep.subr.mxu0 0.0
      %1715 = vmatpush1.xpose.msra.mxu0 0.0
      %1716 = vmatprep.subr.mxu0 0.0
      %1717 = vmatpush1.xpose.msra.mxu0 0.0
      %1718 = vmatprep.subr.mxu0 0.0
      %1719 = vmatpush1.xpose.msra.mxu0 0.0
      %1720 = vmatprep.subr.mxu0 0.0
      %1721 = vmatpush1.xpose.msra.mxu0 0.0
      %1722 = vmatprep.subr.mxu0 0.0
      %1723 = vmatpush1.xpose.msra.mxu0 0.0
      %1724 = vmatprep.subr.mxu0 0.0
      %1725 = vmatpush1.xpose.msra.mxu0 0.0
      %1726 = vmatprep.mubr.f32.mxu0 0.0
      %1727 = vmatmul.mubr.f32.gmra.mrb[0].mxu0 %v1658
      %v1728 = vpop.f32.mrb[0].mxu0
      %v1729 = vadd.f32 %v591, %v1728
      %v1730 = vpop.f32.mrb[0].mxu0
      %1731 = vdwg.mxu0
      %v1732 = vsel %vm745, %v1651, -inf
      %1733 = vmax.xlane.f32.xlu0 %v1732
      %v1734 = vpop.xlane.xlu0 %1733
      %v1735 = vsel %vm745, %v1729, -inf
      %1736 = vmax.xlane.f32.xlu0 %v1735
      %v1737 = vpop.xlane.xlu0 %1736
      %v1738 = vsub.f32 %v1651, %v1734
      %v1739 = vsub.f32 %v1729, %v1737
      %v1740 = vmul.f32 %v1738, 1.442695
      %v1741 = vpow.pop %v1740
      %v1742 = vmul.f32 %v1739, 1.442695
      %v1743 = vpow.pop %v1742
      %v1744 = vsel %vm745, %v1741, 0.0
      %1745 = vadd.xlane.f32.xlu0 %v1744
      %v1746 = vpop.xlane.xlu0 %1745
      %v1747 = vsel %vm745, %v1743, 0.0
      %1748 = vadd.xlane.f32.xlu0 %v1747
      %v1749 = vpop.xlane.xlu0 %1748
      %v1750 = vrcp.pop %v1746
      %v1751 = vrcp.pop %v1749
      %v1752 = vmul.f32 %v1741, %v1750
      %v1753 = vmul.f32 %v1743, %v1751
      %1754 = vrot.lane.b32.xlu0 %v579, 32
      %v1755 = vpop.permute.xlu0 %1754
      %v1758 = vsel %vm745, %v1752, 0
      %1760 = vmatprep.subr.mxu0 0.0
      %1761 = vmatpush1.msra.mxu0 %v1755
      %1762 = vmatprep.subr.mxu0 0.0
      %1763 = vmatpush1.msra.mxu0 0.0
      %1764 = vmatprep.subr.mxu0 0.0
      %1765 = vmatpush1.msra.mxu0 0.0
      %1766 = vmatprep.subr.mxu0 0.0
      %1767 = vmatpush1.msra.mxu0 0.0
      %1768 = vmatprep.subr.mxu0 0.0
      %1769 = vmatpush1.msra.mxu0 0.0
      %1770 = vmatprep.subr.mxu0 0.0
      %1771 = vmatpush1.msra.mxu0 0.0
      %1772 = vmatprep.subr.mxu0 0.0
      %1773 = vmatpush1.msra.mxu0 0.0
      %1774 = vmatprep.subr.mxu0 0.0
      %1775 = vmatpush1.msra.mxu0 0.0
      %1776 = vmatprep.subr.mxu0 0.0
      %1777 = vmatpush1.msra.mxu0 0.0
      %1778 = vmatprep.subr.mxu0 0.0
      %1779 = vmatpush1.msra.mxu0 0.0
      %1780 = vmatprep.subr.mxu0 0.0
      %1781 = vmatpush1.msra.mxu0 0.0
      %1782 = vmatprep.subr.mxu0 0.0
      %1783 = vmatpush1.msra.mxu0 0.0
      %1784 = vmatprep.subr.mxu0 0.0
      %1785 = vmatpush1.msra.mxu0 0.0
      %1786 = vmatprep.subr.mxu0 0.0
      %1787 = vmatpush1.msra.mxu0 0.0
      %1788 = vmatprep.subr.mxu0 0.0
      %1789 = vmatpush1.msra.mxu0 0.0
      %1790 = vmatprep.subr.mxu0 0.0
      %1791 = vmatpush1.msra.mxu0 0.0
      %1792 = vmatprep.subr.mxu0 0.0
      %1793 = vmatpush1.msra.mxu0 0.0
      %1794 = vmatprep.subr.mxu0 0.0
      %1795 = vmatpush1.msra.mxu0 0.0
      %1796 = vmatprep.subr.mxu0 0.0
      %1797 = vmatpush1.msra.mxu0 0.0
      %1798 = vmatprep.subr.mxu0 0.0
      %1799 = vmatpush1.msra.mxu0 0.0
      %1800 = vmatprep.subr.mxu0 0.0
      %1801 = vmatpush1.msra.mxu0 0.0
      %1802 = vmatprep.subr.mxu0 0.0
      %1803 = vmatpush1.msra.mxu0 0.0
      %1804 = vmatprep.subr.mxu0 0.0
      %1805 = vmatpush1.msra.mxu0 0.0
      %1806 = vmatprep.subr.mxu0 0.0
      %1807 = vmatpush1.msra.mxu0 0.0
      %1808 = vmatprep.subr.mxu0 0.0
      %1809 = vmatpush1.msra.mxu0 0.0
      %1810 = vmatprep.subr.mxu0 0.0
      %1811 = vmatpush1.msra.mxu0 0.0
      %1812 = vmatprep.subr.mxu0 0.0
      %1813 = vmatpush1.msra.mxu0 0.0
      %1814 = vmatprep.subr.mxu0 0.0
      %1815 = vmatpush1.msra.mxu0 0.0
      %1816 = vmatprep.subr.mxu0 0.0
      %1817 = vmatpush1.msra.mxu0 0.0
      %1818 = vmatprep.subr.mxu0 0.0
      %1819 = vmatpush1.msra.mxu0 0.0
      %1820 = vmatprep.subr.mxu0 0.0
      %1821 = vmatpush1.msra.mxu0 0.0
      %1822 = vmatprep.subr.mxu0 0.0
      %1823 = vmatpush1.msra.mxu0 0.0
      %1824 = vmatprep.mubr.f32.mxu0 0.0
      %1825 = vmatmul.mubr.f32.gmra.mrb[0].mxu0 %v1758
      %v1826 = vpop.f32.mrb[0].mxu0
      %v1827 = vadd.f32 0.0, %v1826
      %v1828 = vpop.f32.mrb[0].mxu0
      %1829 = vdwg.mxu0
      %1830 = vrot.lane.b32.xlu0 %v582, 32
      %v1831 = vpop.permute.xlu0 %1830
      %v1834 = vsel %vm745, %v1753, 0
      %1836 = vmatprep.subr.mxu0 0.0
      %1837 = vmatpush1.msra.mxu0 %v1831
      %1838 = vmatprep.subr.mxu0 0.0
      %1839 = vmatpush1.msra.mxu0 0.0
      %1840 = vmatprep.subr.mxu0 0.0
      %1841 = vmatpush1.msra.mxu0 0.0
      %1842 = vmatprep.subr.mxu0 0.0
      %1843 = vmatpush1.msra.mxu0 0.0
      %1844 = vmatprep.subr.mxu0 0.0
      %1845 = vmatpush1.msra.mxu0 0.0
      %1846 = vmatprep.subr.mxu0 0.0
      %1847 = vmatpush1.msra.mxu0 0.0
      %1848 = vmatprep.subr.mxu0 0.0
      %1849 = vmatpush1.msra.mxu0 0.0
      %1850 = vmatprep.subr.mxu0 0.0
      %1851 = vmatpush1.msra.mxu0 0.0
      %1852 = vmatprep.subr.mxu0 0.0
      %1853 = vmatpush1.msra.mxu0 0.0
      %1854 = vmatprep.subr.mxu0 0.0
      %1855 = vmatpush1.msra.mxu0 0.0
      %1856 = vmatprep.subr.mxu0 0.0
      %1857 = vmatpush1.msra.mxu0 0.0
      %1858 = vmatprep.subr.mxu0 0.0
      %1859 = vmatpush1.msra.mxu0 0.0
      %1860 = vmatprep.subr.mxu0 0.0
      %1861 = vmatpush1.msra.mxu0 0.0
      %1862 = vmatprep.subr.mxu0 0.0
      %1863 = vmatpush1.msra.mxu0 0.0
      %1864 = vmatprep.subr.mxu0 0.0
      %1865 = vmatpush1.msra.mxu0 0.0
      %1866 = vmatprep.subr.mxu0 0.0
      %1867 = vmatpush1.msra.mxu0 0.0
      %1868 = vmatprep.subr.mxu0 0.0
      %1869 = vmatpush1.msra.mxu0 0.0
      %1870 = vmatprep.subr.mxu0 0.0
      %1871 = vmatpush1.msra.mxu0 0.0
      %1872 = vmatprep.subr.mxu0 0.0
      %1873 = vmatpush1.msra.mxu0 0.0
      %1874 = vmatprep.subr.mxu0 0.0
      %1875 = vmatpush1.msra.mxu0 0.0
      %1876 = vmatprep.subr.mxu0 0.0
      %1877 = vmatpush1.msra.mxu0 0.0
      %1878 = vmatprep.subr.mxu0 0.0
      %1879 = vmatpush1.msra.mxu0 0.0
      %1880 = vmatprep.subr.mxu0 0.0
      %1881 = vmatpush1.msra.mxu0 0.0
      %1882 = vmatprep.subr.mxu0 0.0
      %1883 = vmatpush1.msra.mxu0 0.0
      %1884 = vmatprep.subr.mxu0 0.0
      %1885 = vmatpush1.msra.mxu0 0.0
      %1886 = vmatprep.subr.mxu0 0.0
      %1887 = vmatpush1.msra.mxu0 0.0
      %1888 = vmatprep.subr.mxu0 0.0
      %1889 = vmatpush1.msra.mxu0 0.0
      %1890 = vmatprep.subr.mxu0 0.0
      %1891 = vmatpush1.msra.mxu0 0.0
      %1892 = vmatprep.subr.mxu0 0.0
      %1893 = vmatpush1.msra.mxu0 0.0
      %1894 = vmatprep.subr.mxu0 0.0
      %1895 = vmatpush1.msra.mxu0 0.0
      %1896 = vmatprep.subr.mxu0 0.0
      %1897 = vmatpush1.msra.mxu0 0.0
      %1898 = vmatprep.subr.mxu0 0.0
      %1899 = vmatpush1.msra.mxu0 0.0
      %1900 = vmatprep.mubr.f32.mxu0 0.0
      %1901 = vmatmul.mubr.f32.gmra.mrb[0].mxu0 %v1834
      %v1902 = vpop.f32.mrb[0].mxu0
      %v1903 = vadd.f32 0.0, %v1902
      %v1904 = vpop.f32.mrb[0].mxu0
      %1905 = vdwg.mxu0
      %1908 = vrot.lane.b32.xlu0 %v1166, 32
      %v1909 = vpop.permute.xlu0 %1908
      %1910 = vrot.lane.b32.xlu0 %v1243, 32
      %v1911 = vpop.permute.xlu0 %1910
      %1916 = vrot.lane.b32.xlu0 %v1497, 64
      %v1917 = vpop.permute.xlu0 %1916
      %1918 = vrot.lane.b32.xlu0 %v1573, 64
      %v1919 = vpop.permute.xlu0 %1918
      %1924 = vrot.lane.b32.xlu0 %v1827, 96
      %v1925 = vpop.permute.xlu0 %1924
      %1926 = vrot.lane.b32.xlu0 %v1903, 96
      %v1927 = vpop.permute.xlu0 %1926
      %v1930 = vsel %vm592, %v838, %v1909
      %v1931 = vsel %vm592, %v911, %v1911
      %vm1932 = vcmask 523264
      %v1933 = vsel %vm1932, %v1930, %v1917
      %v1934 = vsel %vm1932, %v1931, %v1919
      %vm1935 = vcmask 785408
      %v1936 = vsel %vm1935, %v1933, %v1925
      %v1937 = vsel %vm1935, %v1934, %v1927
      %v1938 = vpack.c.bf16 %v1937, %v1936
      %v1939 = vunpack.c.h.b16 %v286
      %v1940 = vunpack.c.h.b16 %v290
      %v1941 = vunpack.c.h.b16 %v294
      %v1942 = vunpack.c.h.b16 %v298
      %v1943 = vunpack.c.h.b16 %v302
      %v1944 = vunpack.c.h.b16 %v306
      %v1945 = vunpack.c.h.b16 %v310
      %v1946 = vunpack.c.h.b16 %v314
      %v1947 = vunpack.c.h.b16 %v318
      %v1948 = vunpack.c.h.b16 %v322
      %v1949 = vunpack.c.h.b16 %v326
      %v1950 = vunpack.c.h.b16 %v330
      %v1951 = vunpack.c.h.b16 %v334
      %v1952 = vunpack.c.h.b16 %v338
      %v1953 = vunpack.c.h.b16 %v342
      %v1954 = vunpack.c.h.b16 %v346
      %v1955 = vpack.c.b16 %v1940, %v1939
      %v1956 = vpack.c.b16 %v1942, %v1941
      %v1957 = vpack.c.b16 %v1944, %v1943
      %v1958 = vpack.c.b16 %v1946, %v1945
      %v1959 = vpack.c.b16 %v1948, %v1947
      %v1960 = vpack.c.b16 %v1950, %v1949
      %v1961 = vpack.c.b16 %v1952, %v1951
      %v1962 = vpack.c.b16 %v1954, %v1953
      %1971 = vmatprep.subr.bf16.mxu0 0
      %1972 = vmatpush1.bf16.msra.mxu0 %v1955
      %1973 = vmatprep.subr.bf16.mxu0 0
      %1974 = vmatpush1.bf16.msra.mxu0 %v1956
      %1975 = vmatprep.subr.bf16.mxu0 0
      %1976 = vmatpush1.bf16.msra.mxu0 %v1957
      %1977 = vmatprep.subr.bf16.mxu0 0
      %1978 = vmatpush1.bf16.msra.mxu0 %v1958
      %1979 = vmatprep.subr.bf16.mxu0 0
      %1980 = vmatpush1.bf16.msra.mxu0 %v1959
      %1981 = vmatprep.subr.bf16.mxu0 0
      %1982 = vmatpush1.bf16.msra.mxu0 %v1960
      %1983 = vmatprep.subr.bf16.mxu0 0
      %1984 = vmatpush1.bf16.msra.mxu0 %v1961
      %1985 = vmatprep.subr.bf16.mxu0 0
      %1986 = vmatpush1.bf16.msra.mxu0 %v1962
      %1987 = vmatprep.subr.bf16.mxu0 0
      %1988 = vmatpush1.bf16.msra.mxu0 0
      %1989 = vmatprep.subr.bf16.mxu0 0
      %1990 = vmatpush1.bf16.msra.mxu0 0
      %1991 = vmatprep.subr.bf16.mxu0 0
      %1992 = vmatpush1.bf16.msra.mxu0 0
      %1993 = vmatprep.subr.bf16.mxu0 0
      %1994 = vmatpush1.bf16.msra.mxu0 0
      %1995 = vmatprep.subr.bf16.mxu0 0
      %1996 = vmatpush1.bf16.msra.mxu0 0
      %1997 = vmatprep.subr.bf16.mxu0 0
      %1998 = vmatpush1.bf16.msra.mxu0 0
      %1999 = vmatprep.subr.bf16.mxu0 0
      %2000 = vmatpush1.bf16.msra.mxu0 0
      %2001 = vmatprep.subr.bf16.mxu0 0
      %2002 = vmatpush1.bf16.msra.mxu0 0
      %2003 = vmatprep.mubr.bf16.mxu0 0
      %2004 = vmatmul.mubr.bf16.gmra.mrb[0].mxu0 %v1938
      %v2005 = vpop.f32.mrb[0].mxu0
      %v2006 = vadd.f32 0.0, %v2005
      %v2007 = vpop.f32.mrb[0].mxu0
      %v2008 = vpop.f32.mrb[0].mxu0
      %v2009 = vadd.f32 0.0, %v2008
      %v2010 = vpop.f32.mrb[0].mxu0
      %2011 = vdwg.mxu0
      %v2012 = vadd.f32 %v283, %v2006
      %v2013 = vadd.f32 %v284, %v2009
      %v2014 = vmul.f32 %v2012, %v2012
      %v2015 = vmul.f32 %v2013, %v2013
      %2016 = vadd.xlane.f32.xlu0 %v2014
      %v2017 = vpop.xlane.xlu0 %2016
      %2018 = vadd.xlane.f32.xlu0 %v2015
      %v2019 = vpop.xlane.xlu0 %2018
      %v2020 = vmul.f32 %v2017, %v357
      %v2021 = vmul.f32 %v2019, %v357
      %v2022 = vadd.f32 %v2020, 1e-06
      %v2023 = vadd.f32 %v2021, 1e-06
      %v2024 = vrsqrt.pop %v2022
      %v2025 = vrsqrt.pop %v2023
      %v2026 = vmul.f32 %v2012, %v2024
      %v2027 = vmul.f32 %v2013, %v2025
      %v2028 = vlaneseq
      %v2029 = vshrl.u32 %v2028, 7
      %v2030 = vsub.s32 0, %v2029
      %v2031 = vrot.slane %v350, %v2030
      %v2032 = vmul.f32 %v2026, %v2031
      %v2033 = vmul.f32 %v2027, %v2031
      %v2034 = vpack.c.bf16 %v2033, %v2032
      %v2067 = vunpack.c.l.b16 %v287
      %v2068 = vunpack.c.h.b16 %v287
      %v2069 = vunpack.c.l.b16 %v288
      %v2070 = vunpack.c.h.b16 %v288
      %v2071 = vunpack.c.l.b16 %v291
      %v2072 = vunpack.c.h.b16 %v291
      %v2073 = vunpack.c.l.b16 %v292
      %v2074 = vunpack.c.h.b16 %v292
      %v2075 = vunpack.c.l.b16 %v295
      %v2076 = vunpack.c.h.b16 %v295
      %v2077 = vunpack.c.l.b16 %v296
      %v2078 = vunpack.c.h.b16 %v296
      %v2079 = vunpack.c.l.b16 %v299
      %v2080 = vunpack.c.h.b16 %v299
      %v2081 = vunpack.c.l.b16 %v300
      %v2082 = vunpack.c.h.b16 %v300
      %v2083 = vunpack.c.l.b16 %v303
      %v2084 = vunpack.c.h.b16 %v303
      %v2085 = vunpack.c.l.b16 %v304
      %v2086 = vunpack.c.h.b16 %v304
      %v2087 = vunpack.c.l.b16 %v307
      %v2088 = vunpack.c.h.b16 %v307
      %v2089 = vunpack.c.l.b16 %v308
      %v2090 = vunpack.c.h.b16 %v308
      %v2091 = vunpack.c.l.b16 %v311
      %v2092 = vunpack.c.h.b16 %v311
      %v2093 = vunpack.c.l.b16 %v312
      %v2094 = vunpack.c.h.b16 %v312
      %v2095 = vunpack.c.l.b16 %v315
      %v2096 = vunpack.c.h.b16 %v315
      %v2097 = vunpack.c.l.b16 %v316
      %v2098 = vunpack.c.h.b16 %v316
      %v2099 = vunpack.c.l.b16 %v319
      %v2100 = vunpack.c.h.b16 %v319
      %v2101 = vunpack.c.l.b16 %v320
      %v2102 = vunpack.c.h.b16 %v320
      %v2103 = vunpack.c.l.b16 %v323
      %v2104 = vunpack.c.h.b16 %v323
      %v2105 = vunpack.c.l.b16 %v324
      %v2106 = vunpack.c.h.b16 %v324
      %v2107 = vunpack.c.l.b16 %v327
      %v2108 = vunpack.c.h.b16 %v327
      %v2109 = vunpack.c.l.b16 %v328
      %v2110 = vunpack.c.h.b16 %v328
      %v2111 = vunpack.c.l.b16 %v331
      %v2112 = vunpack.c.h.b16 %v331
      %v2113 = vunpack.c.l.b16 %v332
      %v2114 = vunpack.c.h.b16 %v332
      %v2115 = vunpack.c.l.b16 %v335
      %v2116 = vunpack.c.h.b16 %v335
      %v2117 = vunpack.c.l.b16 %v336
      %v2118 = vunpack.c.h.b16 %v336
      %v2119 = vunpack.c.l.b16 %v339
      %v2120 = vunpack.c.h.b16 %v339
      %v2121 = vunpack.c.l.b16 %v340
      %v2122 = vunpack.c.h.b16 %v340
      %v2123 = vunpack.c.l.b16 %v343
      %v2124 = vunpack.c.h.b16 %v343
      %v2125 = vunpack.c.l.b16 %v344
      %v2126 = vunpack.c.h.b16 %v344
      %v2127 = vunpack.c.l.b16 %v347
      %v2128 = vunpack.c.h.b16 %v347
      %v2129 = vunpack.c.l.b16 %v348
      %v2130 = vunpack.c.h.b16 %v348
      %v2131 = vpack.c.b16 %v2071, %v2067
      %v2132 = vpack.c.b16 %v2072, %v2068
      %v2133 = vpack.c.b16 %v2073, %v2069
      %v2134 = vpack.c.b16 %v2074, %v2070
      %v2135 = vpack.c.b16 %v2079, %v2075
      %v2136 = vpack.c.b16 %v2080, %v2076
      %v2137 = vpack.c.b16 %v2081, %v2077
      %v2138 = vpack.c.b16 %v2082, %v2078
      %v2139 = vpack.c.b16 %v2087, %v2083
      %v2140 = vpack.c.b16 %v2088, %v2084
      %v2141 = vpack.c.b16 %v2089, %v2085
      %v2142 = vpack.c.b16 %v2090, %v2086
      %v2143 = vpack.c.b16 %v2095, %v2091
      %v2144 = vpack.c.b16 %v2096, %v2092
      %v2145 = vpack.c.b16 %v2097, %v2093
      %v2146 = vpack.c.b16 %v2098, %v2094
      %v2147 = vpack.c.b16 %v2103, %v2099
      %v2148 = vpack.c.b16 %v2104, %v2100
      %v2149 = vpack.c.b16 %v2105, %v2101
      %v2150 = vpack.c.b16 %v2106, %v2102
      %v2151 = vpack.c.b16 %v2111, %v2107
      %v2152 = vpack.c.b16 %v2112, %v2108
      %v2153 = vpack.c.b16 %v2113, %v2109
      %v2154 = vpack.c.b16 %v2114, %v2110
      %v2155 = vpack.c.b16 %v2119, %v2115
      %v2156 = vpack.c.b16 %v2120, %v2116
      %v2157 = vpack.c.b16 %v2121, %v2117
      %v2158 = vpack.c.b16 %v2122, %v2118
      %v2159 = vpack.c.b16 %v2127, %v2123
      %v2160 = vpack.c.b16 %v2128, %v2124
      %v2161 = vpack.c.b16 %v2129, %v2125
      %v2162 = vpack.c.b16 %v2130, %v2126
      %2195 = vmatprep.subr.bf16.mxu0 %v2132
      %2196 = vmatpush1.bf16.msra.mxu0 %v2131
      %2197 = vmatprep.subr.bf16.mxu0 %v2136
      %2198 = vmatpush1.bf16.msra.mxu0 %v2135
      %2199 = vmatprep.subr.bf16.mxu0 %v2140
      %2200 = vmatpush1.bf16.msra.mxu0 %v2139
      %2201 = vmatprep.subr.bf16.mxu0 %v2144
      %2202 = vmatpush1.bf16.msra.mxu0 %v2143
      %2203 = vmatprep.subr.bf16.mxu0 %v2148
      %2204 = vmatpush1.bf16.msra.mxu0 %v2147
      %2205 = vmatprep.subr.bf16.mxu0 %v2152
      %2206 = vmatpush1.bf16.msra.mxu0 %v2151
      %2207 = vmatprep.subr.bf16.mxu0 %v2156
      %2208 = vmatpush1.bf16.msra.mxu0 %v2155
      %2209 = vmatprep.subr.bf16.mxu0 %v2160
      %2210 = vmatpush1.bf16.msra.mxu0 %v2159
      %2211 = vmatprep.subr.bf16.mxu0 0
      %2212 = vmatpush1.bf16.msra.mxu0 0
      %2213 = vmatprep.subr.bf16.mxu0 0
      %2214 = vmatpush1.bf16.msra.mxu0 0
      %2215 = vmatprep.subr.bf16.mxu0 0
      %2216 = vmatpush1.bf16.msra.mxu0 0
      %2217 = vmatprep.subr.bf16.mxu0 0
      %2218 = vmatpush1.bf16.msra.mxu0 0
      %2219 = vmatprep.subr.bf16.mxu0 0
      %2220 = vmatpush1.bf16.msra.mxu0 0
      %2221 = vmatprep.subr.bf16.mxu0 0
      %2222 = vmatpush1.bf16.msra.mxu0 0
      %2223 = vmatprep.subr.bf16.mxu0 0
      %2224 = vmatpush1.bf16.msra.mxu0 0
      %2225 = vmatprep.subr.bf16.mxu0 0
      %2226 = vmatpush1.bf16.msra.mxu0 0
      %2227 = vmatprep.mubr.bf16.mxu0 0
      %2228 = vmatmul.mubr.bf16.gmra.mrb[0].mxu0 %v2034
      %v2229 = vpop.f32.mrb[0].mxu0
      %v2230 = vadd.f32 0.0, %v2229
      %v2231 = vpop.f32.mrb[0].mxu0
      %v2232 = vadd.f32 0.0, %v2231
      %v2233 = vpop.f32.mrb[0].mxu0
      %v2234 = vadd.f32 0.0, %v2233
      %v2235 = vpop.f32.mrb[0].mxu0
      %v2236 = vadd.f32 0.0, %v2235
      %2237 = vdwg.mxu0
      %2238 = vmatprep.subr.bf16.mxu0 %v2134
      %2239 = vmatpush1.bf16.msra.mxu0 %v2133
      %2240 = vmatprep.subr.bf16.mxu0 %v2138
      %2241 = vmatpush1.bf16.msra.mxu0 %v2137
      %2242 = vmatprep.subr.bf16.mxu0 %v2142
      %2243 = vmatpush1.bf16.msra.mxu0 %v2141
      %2244 = vmatprep.subr.bf16.mxu0 %v2146
      %2245 = vmatpush1.bf16.msra.mxu0 %v2145
      %2246 = vmatprep.subr.bf16.mxu0 %v2150
      %2247 = vmatpush1.bf16.msra.mxu0 %v2149
      %2248 = vmatprep.subr.bf16.mxu0 %v2154
      %2249 = vmatpush1.bf16.msra.mxu0 %v2153
      %2250 = vmatprep.subr.bf16.mxu0 %v2158
      %2251 = vmatpush1.bf16.msra.mxu0 %v2157
      %2252 = vmatprep.subr.bf16.mxu0 %v2162
      %2253 = vmatpush1.bf16.msra.mxu0 %v2161
      %2254 = vmatprep.subr.bf16.mxu0 0
      %2255 = vmatpush1.bf16.msra.mxu0 0
      %2256 = vmatprep.subr.bf16.mxu0 0
      %2257 = vmatpush1.bf16.msra.mxu0 0
      %2258 = vmatprep.subr.bf16.mxu0 0
      %2259 = vmatpush1.bf16.msra.mxu0 0
      %2260 = vmatprep.subr.bf16.mxu0 0
      %2261 = vmatpush1.bf16.msra.mxu0 0
      %2262 = vmatprep.subr.bf16.mxu0 0
      %2263 = vmatpush1.bf16.msra.mxu0 0
      %2264 = vmatprep.subr.bf16.mxu0 0
      %2265 = vmatpush1.bf16.msra.mxu0 0
      %2266 = vmatprep.subr.bf16.mxu0 0
      %2267 = vmatpush1.bf16.msra.mxu0 0
      %2268 = vmatprep.subr.bf16.mxu0 0
      %2269 = vmatpush1.bf16.msra.mxu0 0
      %2270 = vmatprep.mubr.bf16.mxu0 0
      %2271 = vmatmul.mubr.bf16.gmra.mrb[0].mxu0 %v2034
      %v2272 = vpop.f32.mrb[0].mxu0
      %v2273 = vadd.f32 0.0, %v2272
      %v2274 = vpop.f32.mrb[0].mxu0
      %v2275 = vadd.f32 0.0, %v2274
      %v2276 = vpop.f32.mrb[0].mxu0
      %v2277 = vadd.f32 0.0, %v2276
      %v2278 = vpop.f32.mrb[0].mxu0
      %v2279 = vadd.f32 0.0, %v2278
      %2280 = vdwg.mxu0
      %v2281 = vmul.f32 %v2230, 0.5
      %v2282 = vmul.f32 %v2232, 0.5
      %v2283 = vmul.f32 %v2234, 0.5
      %v2284 = vmul.f32 %v2236, 0.5
      %v2285 = vmul.f32 %v2230, 0.044715
      %v2286 = vmul.f32 %v2232, 0.044715
      %v2287 = vmul.f32 %v2234, 0.044715
      %v2288 = vmul.f32 %v2236, 0.044715
      %v2289 = vmul.f32 %v2285, %v2230
      %v2290 = vmul.f32 %v2286, %v2232
      %v2291 = vmul.f32 %v2287, %v2234
      %v2292 = vmul.f32 %v2288, %v2236
      %v2293 = vmul.f32 %v2289, %v2230
      %v2294 = vmul.f32 %v2290, %v2232
      %v2295 = vmul.f32 %v2291, %v2234
      %v2296 = vmul.f32 %v2292, %v2236
      %v2297 = vadd.f32 %v2230, %v2293
      %v2298 = vadd.f32 %v2232, %v2294
      %v2299 = vadd.f32 %v2234, %v2295
      %v2300 = vadd.f32 %v2236, %v2296
      %v2301 = vmul.f32 %v2297, 0.7978846
      %v2302 = vmul.f32 %v2298, 0.7978846
      %v2303 = vmul.f32 %v2299, 0.7978846
      %v2304 = vmul.f32 %v2300, 0.7978846
      %v2305 = vtanh.pop %v2301
      %v2306 = vtanh.pop %v2302
      %v2307 = vtanh.pop %v2303
      %v2308 = vtanh.pop %v2304
      %v2309 = vadd.f32 %v2305, 1.0
      %v2310 = vadd.f32 %v2306, 1.0
      %v2311 = vadd.f32 %v2307, 1.0
      %v2312 = vadd.f32 %v2308, 1.0
      %v2313 = vmul.f32 %v2281, %v2309
      %v2314 = vmul.f32 %v2282, %v2310
      %v2315 = vmul.f32 %v2283, %v2311
      %v2316 = vmul.f32 %v2284, %v2312
      %v2317 = vmul.f32 %v2313, %v2273
      %v2318 = vmul.f32 %v2314, %v2275
      %v2319 = vmul.f32 %v2315, %v2277
      %v2320 = vmul.f32 %v2316, %v2279
      %v2321 = vpack.c.bf16 %v2319, %v2317
      %v2322 = vpack.c.bf16 %v2320, %v2318
      %v2323 = vld [vmem:[%s273] sm:$0xf]
      %v2324 = vld [vmem:[%s273 + $0x4] sm:$0xf]
      %v2325 = vld [vmem:[%s273 + $0x8] sm:$0xf]
      %v2326 = vld [vmem:[%s273 + $0xc] sm:$0xf]
      %v2327 = vld [vmem:[%s273 + $0x10] sm:$0xf]
      %v2328 = vld [vmem:[%s273 + $0x14] sm:$0xf]
      %v2329 = vld [vmem:[%s273 + $0x18] sm:$0xf]
      %v2330 = vld [vmem:[%s273 + $0x1c] sm:$0xf]
      %v2331 = vld [vmem:[%s273 + $0x20] sm:$0xf]
      %v2332 = vld [vmem:[%s273 + $0x24] sm:$0xf]
      %v2333 = vld [vmem:[%s273 + $0x28] sm:$0xf]
      %v2334 = vld [vmem:[%s273 + $0x2c] sm:$0xf]
      %v2335 = vld [vmem:[%s273 + $0x30] sm:$0xf]
      %v2336 = vld [vmem:[%s273 + $0x34] sm:$0xf]
      %v2337 = vld [vmem:[%s273 + $0x38] sm:$0xf]
      %v2338 = vld [vmem:[%s273 + $0x3c] sm:$0xf]
      %v2339 = vld [vmem:[%s273 + $0x40] sm:$0xf]
      %v2340 = vld [vmem:[%s273 + $0x44] sm:$0xf]
      %v2341 = vld [vmem:[%s273 + $0x48] sm:$0xf]
      %v2342 = vld [vmem:[%s273 + $0x4c] sm:$0xf]
      %v2343 = vld [vmem:[%s273 + $0x50] sm:$0xf]
      %v2344 = vld [vmem:[%s273 + $0x54] sm:$0xf]
      %v2345 = vld [vmem:[%s273 + $0x58] sm:$0xf]
      %v2346 = vld [vmem:[%s273 + $0x5c] sm:$0xf]
      %v2347 = vld [vmem:[%s273 + $0x60] sm:$0xf]
      %v2348 = vld [vmem:[%s273 + $0x64] sm:$0xf]
      %v2349 = vld [vmem:[%s273 + $0x68] sm:$0xf]
      %v2350 = vld [vmem:[%s273 + $0x6c] sm:$0xf]
      %v2351 = vld [vmem:[%s273 + $0x70] sm:$0xf]
      %v2352 = vld [vmem:[%s273 + $0x74] sm:$0xf]
      %v2353 = vld [vmem:[%s273 + $0x78] sm:$0xf]
      %v2354 = vld [vmem:[%s273 + $0x7c] sm:$0xf]
      %v2387 = vunpack.c.l.b16 %v2323
      %v2388 = vunpack.c.l.b16 %v2324
      %v2389 = vunpack.c.l.b16 %v2325
      %v2390 = vunpack.c.l.b16 %v2326
      %v2391 = vunpack.c.l.b16 %v2327
      %v2392 = vunpack.c.l.b16 %v2328
      %v2393 = vunpack.c.l.b16 %v2329
      %v2394 = vunpack.c.l.b16 %v2330
      %v2395 = vunpack.c.l.b16 %v2331
      %v2396 = vunpack.c.l.b16 %v2332
      %v2397 = vunpack.c.l.b16 %v2333
      %v2398 = vunpack.c.l.b16 %v2334
      %v2399 = vunpack.c.l.b16 %v2335
      %v2400 = vunpack.c.l.b16 %v2336
      %v2401 = vunpack.c.l.b16 %v2337
      %v2402 = vunpack.c.l.b16 %v2338
      %v2403 = vunpack.c.l.b16 %v2339
      %v2404 = vunpack.c.l.b16 %v2340
      %v2405 = vunpack.c.l.b16 %v2341
      %v2406 = vunpack.c.l.b16 %v2342
      %v2407 = vunpack.c.l.b16 %v2343
      %v2408 = vunpack.c.l.b16 %v2344
      %v2409 = vunpack.c.l.b16 %v2345
      %v2410 = vunpack.c.l.b16 %v2346
      %v2411 = vunpack.c.l.b16 %v2347
      %v2412 = vunpack.c.l.b16 %v2348
      %v2413 = vunpack.c.l.b16 %v2349
      %v2414 = vunpack.c.l.b16 %v2350
      %v2415 = vunpack.c.l.b16 %v2351
      %v2416 = vunpack.c.l.b16 %v2352
      %v2417 = vunpack.c.l.b16 %v2353
      %v2418 = vunpack.c.l.b16 %v2354
      %v2419 = vpack.c.b16 %v2388, %v2387
      %v2420 = vpack.c.b16 %v2390, %v2389
      %v2421 = vpack.c.b16 %v2392, %v2391
      %v2422 = vpack.c.b16 %v2394, %v2393
      %v2423 = vpack.c.b16 %v2396, %v2395
      %v2424 = vpack.c.b16 %v2398, %v2397
      %v2425 = vpack.c.b16 %v2400, %v2399
      %v2426 = vpack.c.b16 %v2402, %v2401
      %v2427 = vpack.c.b16 %v2404, %v2403
      %v2428 = vpack.c.b16 %v2406, %v2405
      %v2429 = vpack.c.b16 %v2408, %v2407
      %v2430 = vpack.c.b16 %v2410, %v2409
      %v2431 = vpack.c.b16 %v2412, %v2411
      %v2432 = vpack.c.b16 %v2414, %v2413
      %v2433 = vpack.c.b16 %v2416, %v2415
      %v2434 = vpack.c.b16 %v2418, %v2417
      %2451 = vmatprep.subr.bf16.mxu0 0
      %2452 = vmatpush1.bf16.msra.mxu0 %v2419
      %2453 = vmatprep.subr.bf16.mxu0 0
      %2454 = vmatpush1.bf16.msra.mxu0 %v2420
      %2455 = vmatprep.subr.bf16.mxu0 0
      %2456 = vmatpush1.bf16.msra.mxu0 %v2421
      %2457 = vmatprep.subr.bf16.mxu0 0
      %2458 = vmatpush1.bf16.msra.mxu0 %v2422
      %2459 = vmatprep.subr.bf16.mxu0 0
      %2460 = vmatpush1.bf16.msra.mxu0 %v2423
      %2461 = vmatprep.subr.bf16.mxu0 0
      %2462 = vmatpush1.bf16.msra.mxu0 %v2424
      %2463 = vmatprep.subr.bf16.mxu0 0
      %2464 = vmatpush1.bf16.msra.mxu0 %v2425
      %2465 = vmatprep.subr.bf16.mxu0 0
      %2466 = vmatpush1.bf16.msra.mxu0 %v2426
      %2467 = vmatprep.subr.bf16.mxu0 0
      %2468 = vmatpush1.bf16.msra.mxu0 %v2427
      %2469 = vmatprep.subr.bf16.mxu0 0
      %2470 = vmatpush1.bf16.msra.mxu0 %v2428
      %2471 = vmatprep.subr.bf16.mxu0 0
      %2472 = vmatpush1.bf16.msra.mxu0 %v2429
      %2473 = vmatprep.subr.bf16.mxu0 0
      %2474 = vmatpush1.bf16.msra.mxu0 %v2430
      %2475 = vmatprep.subr.bf16.mxu0 0
      %2476 = vmatpush1.bf16.msra.mxu0 %v2431
      %2477 = vmatprep.subr.bf16.mxu0 0
      %2478 = vmatpush1.bf16.msra.mxu0 %v2432
      %2479 = vmatprep.subr.bf16.mxu0 0
      %2480 = vmatpush1.bf16.msra.mxu0 %v2433
      %2481 = vmatprep.subr.bf16.mxu0 0
      %2482 = vmatpush1.bf16.msra.mxu0 %v2434
      %2483 = vmatprep.mubr.bf16.mxu0 %v2322
      %2484 = vmatmul.mubr.bf16.gmra.mrb[0].mxu0 %v2321
      %v2485 = vpop.f32.mrb[0].mxu0
      %v2486 = vadd.f32 0.0, %v2485
      %v2487 = vpop.f32.mrb[0].mxu0
      %v2488 = vpop.f32.mrb[0].mxu0
      %v2489 = vadd.f32 0.0, %v2488
      %v2490 = vpop.f32.mrb[0].mxu0
      %2491 = vdwg.mxu0
      %v2492 = vadd.f32 %v2012, %v2486
      %v2493 = vadd.f32 %v2013, %v2489
      %2494 = vst [vmem:[%s6] sm:$0xff] %v2492
      %2495 = vst [vmem:[%s6 + $0x8] sm:$0xff] %v2493
      %p2496 = scmp.eq.s32.totalorder %s17, 1
      // Predicated region
      $region49: #{frozen_clip_t5_forward.3} parent=43 // pred_check
        %p2497 = pneg %p2496
      $region50: #{frozen_clip_t5_forward.3} parent=43 // pred_check_branch
        %2499 = sbr.rel (%p2497) target = $region52
      $region51: #{frozen_clip_t5_forward.3} parent=43 // pred_region
        %v2500 = vld [vmem:[%s5] sm:$0x1]
        %v2501 = vmul.f32 %v2492, %v2492
        %v2502 = vmul.f32 %v2493, %v2493
        %2503 = vadd.xlane.f32.xlu0 %v2501
        %v2504 = vpop.xlane.xlu0 %2503
        %2505 = vadd.xlane.f32.xlu0 %v2502
        %v2506 = vpop.xlane.xlu0 %2505
        %v2507 = vmul.f32 %v2504, %v357
        %v2508 = vmul.f32 %v2506, %v357
        %v2509 = vadd.f32 %v2507, 1e-06
        %v2510 = vadd.f32 %v2508, 1e-06
        %v2511 = vrsqrt.pop %v2509
        %v2512 = vrsqrt.pop %v2510
        %v2513 = vmul.f32 %v2492, %v2511
        %v2514 = vmul.f32 %v2493, %v2512
        %v2516 = vlaneseq
        %v2517 = vshrl.u32 %v2516, 7
        %v2518 = vsub.s32 0, %v2517
        %v2519 = vrot.slane %v2500, %v2518
        %v2521 = vmul.f32 %v2513, %v2519
        %v2522 = vmul.f32 %v2514, %v2519
        %2523 = vst [vmem:[%s6] sm:$0xff] %v2521
        %2524 = vst [vmem:[%s6 + $0x8] sm:$0xff] %v2522
      $region52: #{frozen_clip_t5_forward.3} parent=43 // pred_fallthru
        _
      // Predicated region
      $region53: #{frozen_clip_t5_forward.3} parent=43 // pred_check
        %p2525 = pneg %p171
      $region54: #{frozen_clip_t5_forward.3} parent=43 // pred_check_branch
        %2527 = sbr.rel (%p2525) target = $region56
      $region55: #{frozen_clip_t5_forward.3} parent=43 // pred_region
        _
      $region56: #{frozen_clip_t5_forward.3} parent=43 // pred_fallthru
        _
      // Predicated region
      $region57: #{frozen_clip_t5_forward.3} parent=43 // pred_check
        %p2528 = pneg %p171
      $region58: #{frozen_clip_t5_forward.3} parent=43 // pred_check_branch
        %2530 = sbr.rel (%p2528) target = $region60
      $region59: #{frozen_clip_t5_forward.3} parent=43 // pred_region
        _
      $region60: #{frozen_clip_t5_forward.3} parent=43 // pred_fallthru
        _
    $region44: #{frozen_clip_t5_forward.3} parent=5 // pred_fallthru
      _
    %p2531 = scmp.le.s32.totalorder 2, %s12
    // Predicated region
    $region61: #{frozen_clip_t5_forward.3} parent=5 // pred_check
      %p2532 = pneg %p2531
    $region62: #{frozen_clip_t5_forward.3} parent=5 // pred_check_branch
      %2534 = sbr.rel (%p2532) target = $region64
    $region63: #{frozen_clip_t5_forward.3} parent=5 // pred_region
      %s2535 = ssub.s32 %s12, 2
    $region64: #{frozen_clip_t5_forward.3} parent=5 // pred_fallthru
      _
  $region6: #{frozen_clip_t5_forward.3} parent=0 // loop_footer
    %s16 = sadd.s32 1, %s12
  $region7: #{frozen_clip_t5_forward.3} parent=0 // loop_footer_branch
    %11 = sbr.rel target = $region3
  $region8: #{frozen_clip_t5_forward.3} parent=0 // loop_exit
    _

</llo_original>
